<compile_context>
chip_gen: v7x
topology: tpu7x:2x2x1
jax: 0.10.0
libtpu: 0.0.40
codegen_flags: <defaults>
</compile_context>

<pallas_src>
import functools

import numpy as np
import jax
import jax.numpy as jnp
from jax.experimental import pallas as pl
from jax.experimental.pallas import tpu as pltpu

NEG_SLOPE = 0.2
BN_EPS = 1e-5


# --------------------------------------------------------------------------- #
# Kernel
# --------------------------------------------------------------------------- #
def _residual_block_kernel(x_ref, w1_ref, b1_ref, w2_ref, bc_ref, ws_ref,
                           caw1_ref, cab1_ref, caw2_ref, cab2_ref,
                           out_ref, acc_ref, cat_ref, *, H, W):
    HW = H * W
    C = out_ref.shape[-1]                        # Cout

    def leaky(v):
        return jnp.maximum(v, NEG_SLOPE * v)

    # ---- conv1 (+folded BN1): 3 fat matmuls, K = 3*Cin, aligned ref slices --
    for ky in range(3):
        off = ky * W                             # 0, W, 2W  (16-row aligned)
        tap = jnp.dot(x_ref[0, off:off + HW, :], w1_ref[ky],
                      preferred_element_type=jnp.float32)
        if ky == 0:
            acc_ref[...] = tap
        else:
            acc_ref[...] += tap

    h1 = leaky(acc_ref[...] + b1_ref[...])       # (HW, C) f32
    h1b = h1.astype(jnp.bfloat16)

    # ---- build conv2 kx-im2col scratch (bf16): blocks [center, left, right] --
    # re-zero only the 2*W border rows (top/bottom zero-pad rows) every step.
    zrow_blk = jnp.zeros((W, 3 * C), jnp.bfloat16)
    cat_ref[0:W, :] = zrow_blk
    cat_ref[(H + 1) * W:(H + 2) * W, :] = zrow_blk

    col = jax.lax.broadcasted_iota(jnp.int32, (HW, 1), 0) % W
    zrow = jnp.zeros((1, C), jnp.float32)
    h1_m1 = jnp.concatenate([zrow, h1[:HW - 1, :]], axis=0)      # h1[i-1]
    h1_p1 = jnp.concatenate([h1[1:, :], zrow], axis=0)           # h1[i+1]
    zeros_hw = jnp.zeros_like(h1)

    cat_ref[W:W + HW, 0:C] = h1b                                            # kx=1
    cat_ref[W:W + HW, C:2 * C] = jnp.where(col == 0, zeros_hw,
                                           h1_m1).astype(jnp.bfloat16)      # kx=0
    cat_ref[W:W + HW, 2 * C:3 * C] = jnp.where(col == W - 1, zeros_hw,
                                               h1_p1).astype(jnp.bfloat16)  # kx=2

    # ---- shortcut 1x1 conv (+BN) then conv2 (+BN): same f32 accumulator -----
    acc_ref[...] = jnp.dot(x_ref[0, W:W + HW, :], ws_ref[...],
                           preferred_element_type=jnp.float32)
    for ky in range(3):
        off = ky * W
        acc_ref[...] += jnp.dot(cat_ref[off:off + HW, :], w2_ref[ky],
                                preferred_element_type=jnp.float32)

    act = leaky(acc_ref[...] + bc_ref[...])      # (HW, C) f32

    # ---- CALayer: global avg pool -> FC+ReLU -> FC+Sigmoid -> gate ----------
    pooled = jnp.sum(act, axis=0, keepdims=True) * (1.0 / float(HW))  # (1, C)
    y1 = jnp.maximum(
        jnp.dot(pooled, caw1_ref[...], preferred_element_type=jnp.float32)
        + cab1_ref[...], 0.0)                                          # (1, Cr)
    z = (jnp.dot(y1, caw2_ref[...], preferred_element_type=jnp.float32)
         + cab2_ref[...])                                              # (1, C)
    gate = 1.0 / (1.0 + jnp.exp(-z))                                   # sigmoid

    out_ref[0] = (act * gate).astype(out_ref.dtype)


# --------------------------------------------------------------------------- #
# Wrapper
# --------------------------------------------------------------------------- #
def _fold_bn(w, bn_stats):
    gamma, beta, mean, var = bn_stats
    scale = gamma / jnp.sqrt(var + BN_EPS)
    return w * scale[:, None, None, None], beta - mean * scale


_KX_ORDER = (1, 0, 2)   # kx block order: center, left, right


def _taps_k_concat(wf):
    """(O, I, 3, 3) conv weight -> (3, 3*I, O): ky-indexed, kx concat on K."""
    mats = []
    for ky in range(3):
        blocks = [jnp.transpose(wf[:, :, ky, kx], (1, 0)) for kx in _KX_ORDER]
        mats.append(jnp.concatenate(blocks, axis=0))
    return jnp.stack(mats, axis=0)


@jax.jit
def residual_block_forward(x, p):
    """x: (N, Cin, H, W) float32 -> (N, Cout, H, W) float32."""
    n, c_in, h, w = x.shape
    c_out = p["w1"].shape[0]
    c_r = p["caw1"].shape[0]
    hw = h * w
    rows_in = (h + 2) * w

    # fold inference-mode BatchNorm into the bias-free convs
    w1f, b1 = _fold_bn(p["w1"], p["bn1"])
    w2f, b2 = _fold_bn(p["w2"], p["bn2"])
    wsf, bs = _fold_bn(p["ws"], p["bns"])

    w1cat = _taps_k_concat(w1f).astype(jnp.bfloat16)       # (3, 3*Cin, Cout)
    w2cat = _taps_k_concat(w2f).astype(jnp.bfloat16)       # (3, 3*Cout, Cout)
    ws_m = jnp.transpose(wsf[:, :, 0, 0], (1, 0))          # (Cin, Cout)
    ws_full = jnp.concatenate(                              # center block only
        [ws_m, jnp.zeros((2 * c_in, c_out), ws_m.dtype)], axis=0
    ).astype(jnp.bfloat16)                                  # (3*Cin, Cout)
    caw1 = jnp.transpose(p["caw1"][:, :, 0, 0], (1, 0))     # (Cout, Cr) f32
    caw2 = jnp.transpose(p["caw2"][:, :, 0, 0], (1, 0))     # (Cr, Cout) f32
    bc = (b2 + bs).reshape(1, c_out)                        # conv2 + shortcut bias

    # NCHW -> NHWC, pad H/W by 1, fold kx taps into channels (kx-im2col), bf16
    x_nhwc = jnp.transpose(x, (0, 2, 3, 1)).astype(jnp.float32)
    x_pad = jnp.pad(x_nhwc, ((0, 0), (1, 1), (1, 1), (0, 0)))   # (N,H+2,W+2,Cin)
    xcat = jnp.concatenate([x_pad[:, :, kx:kx + w, :] for kx in _KX_ORDER],
                           axis=-1)                             # (N,H+2,W,3Cin)
    xcat = xcat.reshape(n, rows_in, 3 * c_in).astype(jnp.bfloat16)

    kernel = functools.partial(_residual_block_kernel, H=h, W=w)
    out_flat = pl.pallas_call(
        kernel,
        out_shape=jax.ShapeDtypeStruct((n, hw, c_out), jnp.float32),
        grid_spec=pltpu.PrefetchScalarGridSpec(
            num_scalar_prefetch=0,
            grid=(n,),
            in_specs=[
                pl.BlockSpec((1, rows_in, 3 * c_in), lambda i: (i, 0, 0)),
                pl.BlockSpec((3, 3 * c_in, c_out), lambda i: (0, 0, 0)),
                pl.BlockSpec((1, c_out), lambda i: (0, 0)),
                pl.BlockSpec((3, 3 * c_out, c_out), lambda i: (0, 0, 0)),
                pl.BlockSpec((1, c_out), lambda i: (0, 0)),
                pl.BlockSpec((3 * c_in, c_out), lambda i: (0, 0)),
                pl.BlockSpec((c_out, c_r), lambda i: (0, 0)),
                pl.BlockSpec((1, c_r), lambda i: (0, 0)),
                pl.BlockSpec((c_r, c_out), lambda i: (0, 0)),
                pl.BlockSpec((1, c_out), lambda i: (0, 0)),
            ],
            out_specs=pl.BlockSpec((1, hw, c_out), lambda i: (i, 0, 0)),
            scratch_shapes=[
                pltpu.VMEM((hw, c_out), jnp.float32),              # conv accumulator
                pltpu.VMEM((rows_in, 3 * c_out), jnp.bfloat16),    # conv2 im2col
            ],
        ),
        compiler_params=pltpu.CompilerParams(
            dimension_semantics=("parallel",),
        ),
    )(
        xcat, w1cat, b1.reshape(1, c_out), w2cat, bc, ws_full,
        caw1, p["cab1"].reshape(1, c_r), caw2, p["cab2"].reshape(1, c_out),
    )

    out = out_flat.reshape(n, h, w, c_out)
    return jnp.transpose(out, (0, 3, 1, 2))


# --------------------------------------------------------------------------- #
# Deterministic parameters + pure-JAX reference
# --------------------------------------------------------------------------- #
def make_params(key, c_in, c_out, reduction=16):
    ks = jax.random.split(key, 10)
    c_r = c_out // reduction

    def conv_w(k, co, ci, kh, kw):
        return jax.random.normal(k, (co, ci, kh, kw), jnp.float32) / np.sqrt(ci * kh * kw)

    def bn_stats(k, c):
        k1, k2, k3, k4 = jax.random.split(k, 4)
        gamma = 1.0 + 0.1 * jax.random.normal(k1, (c,), jnp.float32)
        beta = 0.1 * jax.random.normal(k2, (c,), jnp.float32)
        mean = 0.1 * jax.random.normal(k3, (c,), jnp.float32)
        var = jax.random.uniform(k4, (c,), jnp.float32, minval=0.5, maxval=1.5)
        return gamma, beta, mean, var

    return dict(
        w1=conv_w(ks[0], c_out, c_in, 3, 3), bn1=bn_stats(ks[1], c_out),
        w2=conv_w(ks[2], c_out, c_out, 3, 3), bn2=bn_stats(ks[3], c_out),
        ws=conv_w(ks[4], c_out, c_in, 1, 1), bns=bn_stats(ks[5], c_out),
        caw1=conv_w(ks[6], c_r, c_out, 1, 1),
        cab1=0.1 * jax.random.normal(ks[7], (c_r,), jnp.float32),
        caw2=conv_w(ks[8], c_out, c_r, 1, 1),
        cab2=0.1 * jax.random.normal(ks[9], (c_out,), jnp.float32),
    )


def _ref_forward(x, p):
    prec = jax.lax.Precision.HIGHEST

    def conv(v, w, pad):
        return jax.lax.conv_general_dilated(
            v, w, window_strides=(1, 1), padding=((pad, pad), (pad, pad)),
            dimension_numbers=("NCHW", "OIHW", "NCHW"), precision=prec)

    def bn(v, stats):
        gamma, beta, mean, var = stats
        s = gamma / jnp.sqrt(var + BN_EPS)
        return v * s[None, :, None, None] + (beta - mean * s)[None, :, None, None]

    def lrelu(v):
        return jnp.where(v >= 0, v, NEG_SLOPE * v)

    h = lrelu(bn(conv(x, p["w1"], 1), p["bn1"]))
    h = bn(conv(h, p["w2"], 1), p["bn2"])
    s = bn(conv(x, p["ws"], 0), p["bns"])
    a = lrelu(h + s)
    pooled = jnp.mean(a, axis=(2, 3), keepdims=True)
    y1 = jnp.maximum(conv(pooled, p["caw1"], 0) + p["cab1"][None, :, None, None], 0.0)
    z = conv(y1, p["caw2"], 0) + p["cab2"][None, :, None, None]
    return a * (1.0 / (1.0 + jnp.exp(-z)))


# --------------------------------------------------------------------------- #
if __name__ == "__main__":
    key = jax.random.PRNGKey(0)
    kx, kp = jax.random.split(key)
    N, C_IN, C_OUT, H, W = 2, 64, 128, 16, 16

    x = jax.random.normal(kx, (N, C_IN, H, W), jnp.float32)
    params = make_params(kp, C_IN, C_OUT, reduction=16)

    out = residual_block_forward(x, params)
    jax.block_until_ready(out)

    ref = _ref_forward(x, params)
    assert out.shape == (N, C_OUT, H, W)
    max_err = float(jnp.max(jnp.abs(out - ref)))
    assert max_err < 5e-2, f"max abs err {max_err}"
    print("KERNEL_OK")
</pallas_src>

<mosaic_0001>
module attributes {stable_mosaic.version = 11 : i64} {
  func.func @_residual_block_kernel(%arg0: i32, %arg1: memref<1x288x192xbf16, #tpu.memory_space<vmem>>, %arg2: memref<3x192x128xbf16, #tpu.memory_space<vmem>>, %arg3: memref<1x128xf32, #tpu.memory_space<vmem>>, %arg4: memref<3x384x128xbf16, #tpu.memory_space<vmem>>, %arg5: memref<1x128xf32, #tpu.memory_space<vmem>>, %arg6: memref<192x128xbf16, #tpu.memory_space<vmem>>, %arg7: memref<128x8xf32, #tpu.memory_space<vmem>>, %arg8: memref<1x8xf32, #tpu.memory_space<vmem>>, %arg9: memref<8x128xf32, #tpu.memory_space<vmem>>, %arg10: memref<1x128xf32, #tpu.memory_space<vmem>>, %arg11: memref<1x256x128xf32, #tpu.memory_space<vmem>>, %arg12: memref<256x128xf32, #tpu.memory_space<vmem>>, %arg13: memref<288x384xbf16, #tpu.memory_space<vmem>>) attributes {dimension_semantics = [#tpu.dimension_semantics<parallel>], iteration_bounds = array<i64: 2>, scalar_prefetch = 0 : i64, scratch_operands = 2 : i64, tpu.core_type = #tpu.core_type<tc>, window_params = [{transform_indices = @transform_0, window_bounds = array<i64: 1, 288, 192>}, {pipeline_mode = #tpu.pipeline_mode<synchronous>, transform_indices = @transform_1, window_bounds = array<i64: 3, 192, 128>}, {pipeline_mode = #tpu.pipeline_mode<synchronous>, transform_indices = @transform_2, window_bounds = array<i64: 1, 128>}, {pipeline_mode = #tpu.pipeline_mode<synchronous>, transform_indices = @transform_3, window_bounds = array<i64: 3, 384, 128>}, {pipeline_mode = #tpu.pipeline_mode<synchronous>, transform_indices = @transform_4, window_bounds = array<i64: 1, 128>}, {pipeline_mode = #tpu.pipeline_mode<synchronous>, transform_indices = @transform_5, window_bounds = array<i64: 192, 128>}, {pipeline_mode = #tpu.pipeline_mode<synchronous>, transform_indices = @transform_6, window_bounds = array<i64: 128, 8>}, {pipeline_mode = #tpu.pipeline_mode<synchronous>, transform_indices = @transform_7, window_bounds = array<i64: 1, 8>}, {pipeline_mode = #tpu.pipeline_mode<synchronous>, transform_indices = @transform_8, window_bounds = array<i64: 8, 128>}, {pipeline_mode = #tpu.pipeline_mode<synchronous>, transform_indices = @transform_9, window_bounds = array<i64: 1, 128>}, {transform_indices = @transform_10, window_bounds = array<i64: 1, 256, 128>}]} {
    %c0 = arith.constant 0 : index
    %c0_0 = arith.constant 0 : index
    %c0_1 = arith.constant 0 : index
    %0 = vector.load %arg1[%c0, %c0_0, %c0_1] : memref<1x288x192xbf16, #tpu.memory_space<vmem>>, vector<1x256x192xbf16>
    %1 = vector.shape_cast %0 : vector<1x256x192xbf16> to vector<256x192xbf16>
    %c0_2 = arith.constant 0 : index
    %c0_3 = arith.constant 0 : index
    %c0_4 = arith.constant 0 : index
    %2 = vector.load %arg2[%c0_2, %c0_3, %c0_4] : memref<3x192x128xbf16, #tpu.memory_space<vmem>>, vector<1x192x128xbf16>
    %3 = vector.shape_cast %2 : vector<1x192x128xbf16> to vector<192x128xbf16>
    %cst = arith.constant dense<0.000000e+00> : vector<256x128xf32>
    %4 = tpu.matmul %1, %3, %cst {dimension_numbers = #tpu.dot_dimension_numbers<[1], [0], [0], [1], [0, 0, 1, 1], [], []>} : vector<256x192xbf16>, vector<192x128xbf16>, vector<256x128xf32> -> vector<256x128xf32>
    %c0_5 = arith.constant 0 : index
    %c0_6 = arith.constant 0 : index
    %5 = vector.load %arg12[%c0_5, %c0_6] : memref<256x128xf32, #tpu.memory_space<vmem>>, vector<256x128xf32>
    tpu.vector_store %arg12[%c0_5, %c0_6], %4 {strides = array<i32>} : memref<256x128xf32, #tpu.memory_space<vmem>>, vector<256x128xf32>,
    %c0_7 = arith.constant 0 : index
    %c16 = arith.constant 16 : index
    %c0_8 = arith.constant 0 : index
    %6 = vector.load %arg1[%c0_7, %c16, %c0_8] : memref<1x288x192xbf16, #tpu.memory_space<vmem>>, vector<1x256x192xbf16>
    %7 = vector.shape_cast %6 : vector<1x256x192xbf16> to vector<256x192xbf16>
    %c1 = arith.constant 1 : index
    %c0_9 = arith.constant 0 : index
    %c0_10 = arith.constant 0 : index
    %8 = vector.load %arg2[%c1, %c0_9, %c0_10] : memref<3x192x128xbf16, #tpu.memory_space<vmem>>, vector<1x192x128xbf16>
    %9 = vector.shape_cast %8 : vector<1x192x128xbf16> to vector<192x128xbf16>
    %cst_11 = arith.constant dense<0.000000e+00> : vector<256x128xf32>
    %10 = tpu.matmul %7, %9, %cst_11 {dimension_numbers = #tpu.dot_dimension_numbers<[1], [0], [0], [1], [0, 0, 1, 1], [], []>} : vector<256x192xbf16>, vector<192x128xbf16>, vector<256x128xf32> -> vector<256x128xf32>
    %c0_12 = arith.constant 0 : index
    %c0_13 = arith.constant 0 : index
    %11 = vector.load %arg12[%c0_12, %c0_13] : memref<256x128xf32, #tpu.memory_space<vmem>>, vector<256x128xf32>
    %12 = arith.addf %11, %10 : vector<256x128xf32>
    %c0_14 = arith.constant 0 : index
    %c0_15 = arith.constant 0 : index
    %13 = vector.load %arg12[%c0_14, %c0_15] : memref<256x128xf32, #tpu.memory_space<vmem>>, vector<256x128xf32>
    tpu.vector_store %arg12[%c0_14, %c0_15], %12 {strides = array<i32>} : memref<256x128xf32, #tpu.memory_space<vmem>>, vector<256x128xf32>,
    %c0_16 = arith.constant 0 : index
    %c32 = arith.constant 32 : index
    %c0_17 = arith.constant 0 : index
    %14 = vector.load %arg1[%c0_16, %c32, %c0_17] : memref<1x288x192xbf16, #tpu.memory_space<vmem>>, vector<1x256x192xbf16>
    %15 = vector.shape_cast %14 : vector<1x256x192xbf16> to vector<256x192xbf16>
    %c2 = arith.constant 2 : index
    %c0_18 = arith.constant 0 : index
    %c0_19 = arith.constant 0 : index
    %16 = vector.load %arg2[%c2, %c0_18, %c0_19] : memref<3x192x128xbf16, #tpu.memory_space<vmem>>, vector<1x192x128xbf16>
    %17 = vector.shape_cast %16 : vector<1x192x128xbf16> to vector<192x128xbf16>
    %cst_20 = arith.constant dense<0.000000e+00> : vector<256x128xf32>
    %18 = tpu.matmul %15, %17, %cst_20 {dimension_numbers = #tpu.dot_dimension_numbers<[1], [0], [0], [1], [0, 0, 1, 1], [], []>} : vector<256x192xbf16>, vector<192x128xbf16>, vector<256x128xf32> -> vector<256x128xf32>
    %c0_21 = arith.constant 0 : index
    %c0_22 = arith.constant 0 : index
    %19 = vector.load %arg12[%c0_21, %c0_22] : memref<256x128xf32, #tpu.memory_space<vmem>>, vector<256x128xf32>
    %20 = arith.addf %19, %18 : vector<256x128xf32>
    %c0_23 = arith.constant 0 : index
    %c0_24 = arith.constant 0 : index
    %21 = vector.load %arg12[%c0_23, %c0_24] : memref<256x128xf32, #tpu.memory_space<vmem>>, vector<256x128xf32>
    tpu.vector_store %arg12[%c0_23, %c0_24], %20 {strides = array<i32>} : memref<256x128xf32, #tpu.memory_space<vmem>>, vector<256x128xf32>,
    %c0_25 = arith.constant 0 : index
    %c0_26 = arith.constant 0 : index
    %22 = vector.load %arg12[%c0_25, %c0_26] : memref<256x128xf32, #tpu.memory_space<vmem>>, vector<256x128xf32>
    %c0_27 = arith.constant 0 : index
    %c0_28 = arith.constant 0 : index
    %23 = vector.load %arg3[%c0_27, %c0_28] : memref<1x128xf32, #tpu.memory_space<vmem>>, vector<1x128xf32>
    %24 = vector.broadcast %23 : vector<1x128xf32> to vector<256x128xf32>
    %25 = arith.addf %22, %24 : vector<256x128xf32>
    %cst_29 = arith.constant 2.000000e-01 : f32
    %26 = vector.broadcast %cst_29 : f32 to vector<256x128xf32>
    %27 = arith.mulf %26, %25 : vector<256x128xf32>
    %28 = arith.maximumf %25, %27 : vector<256x128xf32>
    %29 = arith.truncf %28 : vector<256x128xf32> to vector<256x128xbf16>
    %cst_30 = arith.constant 0.000000e+00 : bf16
    %30 = vector.broadcast %cst_30 : bf16 to vector<16x384xbf16>
    %c0_31 = arith.constant 0 : index
    %c0_32 = arith.constant 0 : index
    %31 = vector.load %arg13[%c0_31, %c0_32] : memref<288x384xbf16, #tpu.memory_space<vmem>>, vector<16x384xbf16>
    tpu.vector_store %arg13[%c0_31, %c0_32], %30 {strides = array<i32>} : memref<288x384xbf16, #tpu.memory_space<vmem>>, vector<16x384xbf16>,
    %c272 = arith.constant 272 : index
    %c0_33 = arith.constant 0 : index
    %32 = vector.load %arg13[%c272, %c0_33] : memref<288x384xbf16, #tpu.memory_space<vmem>>, vector<16x384xbf16>
    tpu.vector_store %arg13[%c272, %c0_33], %30 {strides = array<i32>} : memref<288x384xbf16, #tpu.memory_space<vmem>>, vector<16x384xbf16>,
    %33 = tpu.iota {dimensions = array<i32: 0>} : vector<256x1xi32>
    %c16_i32 = arith.constant 16 : i32
    %c0_i32 = arith.constant 0 : i32
    %34 = arith.cmpi eq, %c16_i32, %c0_i32 : i32
    %c1_i32 = arith.constant 1 : i32
    %35 = arith.select %34, %c1_i32, %c16_i32 : i32
    %36 = vector.broadcast %35 : i32 to vector<256x1xi32>
    %37 = arith.remsi %33, %36 : vector<256x1xi32>
    %c0_i32_34 = arith.constant 0 : i32
    %38 = vector.broadcast %c0_i32_34 : i32 to vector<256x1xi32>
    %39 = arith.cmpi ne, %37, %38 : vector<256x1xi32>
    %c0_i32_35 = arith.constant 0 : i32
    %40 = vector.broadcast %c0_i32_35 : i32 to vector<256x1xi32>
    %41 = arith.cmpi slt, %37, %40 : vector<256x1xi32>
    %c0_i32_36 = arith.constant 0 : i32
    %42 = arith.cmpi slt, %35, %c0_i32_36 : i32
    %43 = vector.broadcast %42 : i1 to vector<256x1xi1>
    %44 = vector.broadcast %43 : vector<256x1xi1> to vector<256x1xi1>
    %45 = arith.xori %41, %44 : vector<256x1xi1>
    %46 = arith.andi %45, %39 : vector<256x1xi1>
    %47 = vector.broadcast %35 : i32 to vector<256x1xi32>
    %48 = arith.addi %37, %47 : vector<256x1xi32>
    %49 = arith.select %46, %48, %37 : vector<256x1xi1>, vector<256x1xi32>
    %cst_37 = arith.constant 0.000000e+00 : f32
    %50 = vector.broadcast %cst_37 : f32 to vector<1x128xf32>
    %51 = vector.extract_strided_slice %28 {offsets = [0, 0], sizes = [255, 128], strides = [1, 1]} : vector<256x128xf32> to vector<255x128xf32>
    %52 = tpu.concatenate %50, %51 in 0 : vector<1x128xf32>, vector<255x128xf32> -> vector<256x128xf32>
    %53 = vector.extract_strided_slice %28 {offsets = [1, 0], sizes = [255, 128], strides = [1, 1]} : vector<256x128xf32> to vector<255x128xf32>
    %54 = tpu.concatenate %53, %50 in 0 : vector<255x128xf32>, vector<1x128xf32> -> vector<256x128xf32>
    %cst_38 = arith.constant 0.000000e+00 : f32
    %55 = vector.broadcast %cst_38 : f32 to vector<256x128xf32>
    %c16_39 = arith.constant 16 : index
    %c0_40 = arith.constant 0 : index
    %56 = vector.load %arg13[%c16_39, %c0_40] : memref<288x384xbf16, #tpu.memory_space<vmem>>, vector<256x128xbf16>
    tpu.vector_store %arg13[%c16_39, %c0_40], %29 {strides = array<i32>} : memref<288x384xbf16, #tpu.memory_space<vmem>>, vector<256x128xbf16>,
    %c0_i32_41 = arith.constant 0 : i32
    %57 = vector.broadcast %c0_i32_41 : i32 to vector<256x1xi32>
    %58 = arith.cmpi eq, %49, %57 : vector<256x1xi32>
    %59 = vector.shape_cast %58 : vector<256x1xi1> to vector<256x1xi1>
    %60 = vector.broadcast %59 : vector<256x1xi1> to vector<256x128xi1>
    %61 = arith.select %60, %55, %52 : vector<256x128xi1>, vector<256x128xf32>
    %62 = arith.truncf %61 : vector<256x128xf32> to vector<256x128xbf16>
    %c16_42 = arith.constant 16 : index
    %c128 = arith.constant 128 : index
    %63 = vector.load %arg13[%c16_42, %c128] : memref<288x384xbf16, #tpu.memory_space<vmem>>, vector<256x128xbf16>
    tpu.vector_store %arg13[%c16_42, %c128], %62 {strides = array<i32>} : memref<288x384xbf16, #tpu.memory_space<vmem>>, vector<256x128xbf16>,
    %c15_i32 = arith.constant 15 : i32
    %64 = vector.broadcast %c15_i32 : i32 to vector<256x1xi32>
    %65 = arith.cmpi eq, %49, %64 : vector<256x1xi32>
    %66 = vector.shape_cast %65 : vector<256x1xi1> to vector<256x1xi1>
    %67 = vector.broadcast %66 : vector<256x1xi1> to vector<256x128xi1>
    %68 = arith.select %67, %55, %54 : vector<256x128xi1>, vector<256x128xf32>
    %69 = arith.truncf %68 : vector<256x128xf32> to vector<256x128xbf16>
    %c16_43 = arith.constant 16 : index
    %c256 = arith.constant 256 : index
    %70 = vector.load %arg13[%c16_43, %c256] : memref<288x384xbf16, #tpu.memory_space<vmem>>, vector<256x128xbf16>
    tpu.vector_store %arg13[%c16_43, %c256], %69 {strides = array<i32>} : memref<288x384xbf16, #tpu.memory_space<vmem>>, vector<256x128xbf16>,
    %c0_44 = arith.constant 0 : index
    %c16_45 = arith.constant 16 : index
    %c0_46 = arith.constant 0 : index
    %71 = vector.load %arg1[%c0_44, %c16_45, %c0_46] : memref<1x288x192xbf16, #tpu.memory_space<vmem>>, vector<1x256x192xbf16>
    %72 = vector.shape_cast %71 : vector<1x256x192xbf16> to vector<256x192xbf16>
    %c0_47 = arith.constant 0 : index
    %c0_48 = arith.constant 0 : index
    %73 = vector.load %arg6[%c0_47, %c0_48] : memref<192x128xbf16, #tpu.memory_space<vmem>>, vector<192x128xbf16>
    %cst_49 = arith.constant dense<0.000000e+00> : vector<256x128xf32>
    %74 = tpu.matmul %72, %73, %cst_49 {dimension_numbers = #tpu.dot_dimension_numbers<[1], [0], [0], [1], [0, 0, 1, 1], [], []>} : vector<256x192xbf16>, vector<192x128xbf16>, vector<256x128xf32> -> vector<256x128xf32>
    %c0_50 = arith.constant 0 : index
    %c0_51 = arith.constant 0 : index
    %75 = vector.load %arg12[%c0_50, %c0_51] : memref<256x128xf32, #tpu.memory_space<vmem>>, vector<256x128xf32>
    tpu.vector_store %arg12[%c0_50, %c0_51], %74 {strides = array<i32>} : memref<256x128xf32, #tpu.memory_space<vmem>>, vector<256x128xf32>,
    %c0_52 = arith.constant 0 : index
    %c0_53 = arith.constant 0 : index
    %76 = vector.load %arg12[%c0_52, %c0_53] : memref<256x128xf32, #tpu.memory_space<vmem>>, vector<256x128xf32>
    %c0_54 = arith.constant 0 : index
    %c0_55 = arith.constant 0 : index
    %77 = vector.load %arg13[%c0_54, %c0_55] : memref<288x384xbf16, #tpu.memory_space<vmem>>, vector<256x384xbf16>
    %c0_56 = arith.constant 0 : index
    %c0_57 = arith.constant 0 : index
    %c0_58 = arith.constant 0 : index
    %78 = vector.load %arg4[%c0_56, %c0_57, %c0_58] : memref<3x384x128xbf16, #tpu.memory_space<vmem>>, vector<1x384x128xbf16>
    %79 = vector.shape_cast %78 : vector<1x384x128xbf16> to vector<384x128xbf16>
    %cst_59 = arith.constant dense<0.000000e+00> : vector<256x128xf32>
    %80 = tpu.matmul %77, %79, %cst_59 {dimension_numbers = #tpu.dot_dimension_numbers<[1], [0], [0], [1], [0, 0, 1, 1], [], []>} : vector<256x384xbf16>, vector<384x128xbf16>, vector<256x128xf32> -> vector<256x128xf32>
    %81 = arith.addf %76, %80 : vector<256x128xf32>
    %c0_60 = arith.constant 0 : index
    %c0_61 = arith.constant 0 : index
    %82 = vector.load %arg12[%c0_60, %c0_61] : memref<256x128xf32, #tpu.memory_space<vmem>>, vector<256x128xf32>
    tpu.vector_store %arg12[%c0_60, %c0_61], %81 {strides = array<i32>} : memref<256x128xf32, #tpu.memory_space<vmem>>, vector<256x128xf32>,
    %c0_62 = arith.constant 0 : index
    %c0_63 = arith.constant 0 : index
    %83 = vector.load %arg12[%c0_62, %c0_63] : memref<256x128xf32, #tpu.memory_space<vmem>>, vector<256x128xf32>
    %c16_64 = arith.constant 16 : index
    %c0_65 = arith.constant 0 : index
    %84 = vector.load %arg13[%c16_64, %c0_65] : memref<288x384xbf16, #tpu.memory_space<vmem>>, vector<256x384xbf16>
    %c1_66 = arith.constant 1 : index
    %c0_67 = arith.constant 0 : index
    %c0_68 = arith.constant 0 : index
    %85 = vector.load %arg4[%c1_66, %c0_67, %c0_68] : memref<3x384x128xbf16, #tpu.memory_space<vmem>>, vector<1x384x128xbf16>
    %86 = vector.shape_cast %85 : vector<1x384x128xbf16> to vector<384x128xbf16>
    %cst_69 = arith.constant dense<0.000000e+00> : vector<256x128xf32>
    %87 = tpu.matmul %84, %86, %cst_69 {dimension_numbers = #tpu.dot_dimension_numbers<[1], [0], [0], [1], [0, 0, 1, 1], [], []>} : vector<256x384xbf16>, vector<384x128xbf16>, vector<256x128xf32> -> vector<256x128xf32>
    %88 = arith.addf %83, %87 : vector<256x128xf32>
    %c0_70 = arith.constant 0 : index
    %c0_71 = arith.constant 0 : index
    %89 = vector.load %arg12[%c0_70, %c0_71] : memref<256x128xf32, #tpu.memory_space<vmem>>, vector<256x128xf32>
    tpu.vector_store %arg12[%c0_70, %c0_71], %88 {strides = array<i32>} : memref<256x128xf32, #tpu.memory_space<vmem>>, vector<256x128xf32>,
    %c0_72 = arith.constant 0 : index
    %c0_73 = arith.constant 0 : index
    %90 = vector.load %arg12[%c0_72, %c0_73] : memref<256x128xf32, #tpu.memory_space<vmem>>, vector<256x128xf32>
    %c32_74 = arith.constant 32 : index
    %c0_75 = arith.constant 0 : index
    %91 = vector.load %arg13[%c32_74, %c0_75] : memref<288x384xbf16, #tpu.memory_space<vmem>>, vector<256x384xbf16>
    %c2_76 = arith.constant 2 : index
    %c0_77 = arith.constant 0 : index
    %c0_78 = arith.constant 0 : index
    %92 = vector.load %arg4[%c2_76, %c0_77, %c0_78] : memref<3x384x128xbf16, #tpu.memory_space<vmem>>, vector<1x384x128xbf16>
    %93 = vector.shape_cast %92 : vector<1x384x128xbf16> to vector<384x128xbf16>
    %cst_79 = arith.constant dense<0.000000e+00> : vector<256x128xf32>
    %94 = tpu.matmul %91, %93, %cst_79 {dimension_numbers = #tpu.dot_dimension_numbers<[1], [0], [0], [1], [0, 0, 1, 1], [], []>} : vector<256x384xbf16>, vector<384x128xbf16>, vector<256x128xf32> -> vector<256x128xf32>
    %95 = arith.addf %90, %94 : vector<256x128xf32>
    %c0_80 = arith.constant 0 : index
    %c0_81 = arith.constant 0 : index
    %96 = vector.load %arg12[%c0_80, %c0_81] : memref<256x128xf32, #tpu.memory_space<vmem>>, vector<256x128xf32>
    tpu.vector_store %arg12[%c0_80, %c0_81], %95 {strides = array<i32>} : memref<256x128xf32, #tpu.memory_space<vmem>>, vector<256x128xf32>,
    %c0_82 = arith.constant 0 : index
    %c0_83 = arith.constant 0 : index
    %97 = vector.load %arg12[%c0_82, %c0_83] : memref<256x128xf32, #tpu.memory_space<vmem>>, vector<256x128xf32>
    %c0_84 = arith.constant 0 : index
    %c0_85 = arith.constant 0 : index
    %98 = vector.load %arg5[%c0_84, %c0_85] : memref<1x128xf32, #tpu.memory_space<vmem>>, vector<1x128xf32>
    %99 = vector.broadcast %98 : vector<1x128xf32> to vector<256x128xf32>
    %100 = arith.addf %97, %99 : vector<256x128xf32>
    %cst_86 = arith.constant 2.000000e-01 : f32
    %101 = vector.broadcast %cst_86 : f32 to vector<256x128xf32>
    %102 = arith.mulf %101, %100 : vector<256x128xf32>
    %103 = arith.maximumf %100, %102 : vector<256x128xf32>
    %cst_87 = arith.constant dense<0.000000e+00> : vector<128xf32>
    %104 = vector.multi_reduction <add>, %103, %cst_87 [0] : vector<256x128xf32> to vector<128xf32>
    %105 = vector.shape_cast %104 : vector<128xf32> to vector<1x128xf32>
    %cst_88 = arith.constant 3.906250e-03 : f32
    %106 = vector.broadcast %cst_88 : f32 to vector<1x128xf32>
    %107 = arith.mulf %105, %106 : vector<1x128xf32>
    %c0_89 = arith.constant 0 : index
    %c0_90 = arith.constant 0 : index
    %108 = vector.load %arg7[%c0_89, %c0_90] : memref<128x8xf32, #tpu.memory_space<vmem>>, vector<128x8xf32>
    %cst_91 = arith.constant dense<0.000000e+00> : vector<1x8xf32>
    %109 = tpu.matmul %107, %108, %cst_91 {dimension_numbers = #tpu.dot_dimension_numbers<[1], [0], [0], [1], [0, 0, 1, 1], [], []>} : vector<1x128xf32>, vector<128x8xf32>, vector<1x8xf32> -> vector<1x8xf32>
    %c0_92 = arith.constant 0 : index
    %c0_93 = arith.constant 0 : index
    %110 = vector.load %arg8[%c0_92, %c0_93] : memref<1x8xf32, #tpu.memory_space<vmem>>, vector<1x8xf32>
    %111 = arith.addf %109, %110 : vector<1x8xf32>
    %cst_94 = arith.constant 0.000000e+00 : f32
    %112 = vector.broadcast %cst_94 : f32 to vector<1x8xf32>
    %113 = arith.maximumf %111, %112 : vector<1x8xf32>
    %c0_95 = arith.constant 0 : index
    %c0_96 = arith.constant 0 : index
    %114 = vector.load %arg9[%c0_95, %c0_96] : memref<8x128xf32, #tpu.memory_space<vmem>>, vector<8x128xf32>
    %cst_97 = arith.constant dense<0.000000e+00> : vector<1x128xf32>
    %115 = tpu.matmul %113, %114, %cst_97 {dimension_numbers = #tpu.dot_dimension_numbers<[1], [0], [0], [1], [0, 0, 1, 1], [], []>} : vector<1x8xf32>, vector<8x128xf32>, vector<1x128xf32> -> vector<1x128xf32>
    %c0_98 = arith.constant 0 : index
    %c0_99 = arith.constant 0 : index
    %116 = vector.load %arg10[%c0_98, %c0_99] : memref<1x128xf32, #tpu.memory_space<vmem>>, vector<1x128xf32>
    %117 = arith.addf %115, %116 : vector<1x128xf32>
    %cst_100 = arith.constant 0.000000e+00 : f32
    %118 = vector.broadcast %cst_100 : f32 to vector<1x128xf32>
    %119 = arith.subf %118, %117 : vector<1x128xf32>
    %120 = math.exp %119 : vector<1x128xf32>
    %cst_101 = arith.constant 1.000000e+00 : f32
    %121 = vector.broadcast %cst_101 : f32 to vector<1x128xf32>
    %122 = arith.addf %121, %120 : vector<1x128xf32>
    %cst_102 = arith.constant 1.000000e+00 : f32
    %123 = vector.broadcast %cst_102 : f32 to vector<1x128xf32>
    %124 = arith.divf %123, %122 : vector<1x128xf32>
    %125 = vector.broadcast %124 : vector<1x128xf32> to vector<256x128xf32>
    %126 = arith.mulf %103, %125 : vector<256x128xf32>
    %c0_103 = arith.constant 0 : index
    %c0_104 = arith.constant 0 : index
    %c0_105 = arith.constant 0 : index
    %127 = vector.load %arg11[%c0_103, %c0_104, %c0_105] : memref<1x256x128xf32, #tpu.memory_space<vmem>>, vector<1x256x128xf32>
    %128 = vector.shape_cast %127 : vector<1x256x128xf32> to vector<256x128xf32>
    %129 = vector.shape_cast %126 : vector<256x128xf32> to vector<1x256x128xf32>
    tpu.vector_store %arg11[%c0_103, %c0_104, %c0_105], %129 {strides = array<i32>} : memref<1x256x128xf32, #tpu.memory_space<vmem>>, vector<1x256x128xf32>,
    return
  }
  func.func @transform_0(%arg0: i32) -> (i32, i32, i32) {
    %c0_i32 = arith.constant 0 : i32
    %c0_i32_0 = arith.constant 0 : i32
    %c0_i32_1 = arith.constant 0 : i32
    return %arg0, %c0_i32, %c0_i32_0 : i32, i32, i32
  }
  func.func @transform_1(%arg0: i32) -> (i32, i32, i32) {
    %c0_i32 = arith.constant 0 : i32
    %c0_i32_0 = arith.constant 0 : i32
    %c0_i32_1 = arith.constant 0 : i32
    %c0_i32_2 = arith.constant 0 : i32
    return %c0_i32, %c0_i32_0, %c0_i32_1 : i32, i32, i32
  }
  func.func @transform_2(%arg0: i32) -> (i32, i32) {
    %c0_i32 = arith.constant 0 : i32
    %c0_i32_0 = arith.constant 0 : i32
    %c0_i32_1 = arith.constant 0 : i32
    return %c0_i32, %c0_i32_0 : i32, i32
  }
  func.func @transform_3(%arg0: i32) -> (i32, i32, i32) {
    %c0_i32 = arith.constant 0 : i32
    %c0_i32_0 = arith.constant 0 : i32
    %c0_i32_1 = arith.constant 0 : i32
    %c0_i32_2 = arith.constant 0 : i32
    return %c0_i32, %c0_i32_0, %c0_i32_1 : i32, i32, i32
  }
  func.func @transform_4(%arg0: i32) -> (i32, i32) {
    %c0_i32 = arith.constant 0 : i32
    %c0_i32_0 = arith.constant 0 : i32
    %c0_i32_1 = arith.constant 0 : i32
    return %c0_i32, %c0_i32_0 : i32, i32
  }
  func.func @transform_5(%arg0: i32) -> (i32, i32) {
    %c0_i32 = arith.constant 0 : i32
    %c0_i32_0 = arith.constant 0 : i32
    %c0_i32_1 = arith.constant 0 : i32
    return %c0_i32, %c0_i32_0 : i32, i32
  }
  func.func @transform_6(%arg0: i32) -> (i32, i32) {
    %c0_i32 = arith.constant 0 : i32
    %c0_i32_0 = arith.constant 0 : i32
    %c0_i32_1 = arith.constant 0 : i32
    return %c0_i32, %c0_i32_0 : i32, i32
  }
  func.func @transform_7(%arg0: i32) -> (i32, i32) {
    %c0_i32 = arith.constant 0 : i32
    %c0_i32_0 = arith.constant 0 : i32
    %c0_i32_1 = arith.constant 0 : i32
    return %c0_i32, %c0_i32_0 : i32, i32
  }
  func.func @transform_8(%arg0: i32) -> (i32, i32) {
    %c0_i32 = arith.constant 0 : i32
    %c0_i32_0 = arith.constant 0 : i32
    %c0_i32_1 = arith.constant 0 : i32
    return %c0_i32, %c0_i32_0 : i32, i32
  }
  func.func @transform_9(%arg0: i32) -> (i32, i32) {
    %c0_i32 = arith.constant 0 : i32
    %c0_i32_0 = arith.constant 0 : i32
    %c0_i32_1 = arith.constant 0 : i32
    return %c0_i32, %c0_i32_0 : i32, i32
  }
  func.func @transform_10(%arg0: i32) -> (i32, i32, i32) {
    %c0_i32 = arith.constant 0 : i32
    %c0_i32_0 = arith.constant 0 : i32
    %c0_i32_1 = arith.constant 0 : i32
    return %arg0, %c0_i32, %c0_i32_0 : i32, i32, i32
  }
}

</mosaic_0001>

<llo_original>
// kernel: residual_block_forward.1
$region0: #{residual_block_forward.1}
  #allocation0 [shape = 'u32[]', space=smem, size = 0x4, offset = 0x4, fixed_abs, tag = 'smem constant byte address 0x4 - core index']
  #allocation1 [shape = 'u32[144,128]{1,0:T(1,128)}', space=vmem, size = 0x12000, scoped, tag = 'internal scratch']
  #allocation2 [shape = 'f32[256,128]{1,0:T(8,128)}', space=vmem, size = 0x20000, scoped, tag = 'scratch operand']
  #allocation3 [shape = 'bf16[288,384]{1,0:T(16,128)(2,1)}', space=vmem, size = 0x36000, scoped, tag = 'scratch operand']
  %s0 = inlined_call_operand.vmem [shape: bf16[2,288,192], index: 0, kind: input, shape index: {}]
  %s1 = inlined_call_operand.vmem [shape: bf16[3,192,128], index: 1, kind: input, shape index: {}]
  %s2 = inlined_call_operand.vmem [shape: f32[1,128], index: 2, kind: input, shape index: {}]
  %s3 = inlined_call_operand.vmem [shape: bf16[3,384,128], index: 3, kind: input, shape index: {}]
  %s4 = inlined_call_operand.vmem [shape: f32[1,128], index: 4, kind: input, shape index: {}]
  %s5 = inlined_call_operand.vmem [shape: bf16[192,128], index: 5, kind: input, shape index: {}]
  %s6 = inlined_call_operand.vmem [shape: f32[128,8], index: 6, kind: input, shape index: {}]
  %s7 = inlined_call_operand.vmem [shape: f32[1,8], index: 7, kind: input, shape index: {}]
  %s8 = inlined_call_operand.vmem [shape: f32[8,128], index: 8, kind: input, shape index: {}]
  %s9 = inlined_call_operand.vmem [shape: f32[1,128], index: 9, kind: input, shape index: {}]
  %s10 = inlined_call_operand.hbm [shape: f32[2,256,128], index: 10, kind: output, shape index: {}]
  %s11 = sld [smem:[#allocation0]]
  $region73: #{residual_block_forward.1} parent=0
    _
  %s13 = ssub.s32 1, %s11
  %s14 = scalar_select 0, %s13, %s11
  $region1: #{residual_block_forward.1} parent=0
    #allocation4 [shape = 'u8[262144]{0}', space=vmem, size = 0x40000, scoped, tag = 'output window, operand 0']
    #allocation5 [shape = 's32[2]{0}', space=sflag, size = 0x8, scoped, tag = 'scoped memory for residual_block_forward.1']
    %15 = vsyncpa [#allocation5], 0
    %s16 = scalar_lea.sflag [#allocation5], 1
    %17 = vsyncpa %s16, 0
    loop: start=0, step=1, limit=4
    $region2: #{residual_block_forward.1} parent=1 // loop_pre_header
      _
    $region3: #{residual_block_forward.1} parent=1 // loop_header
      %s19 = sphi 0, %s23
      %p20 = scmp.ge.s32.totalorder %s19, 4
      %s29 = sphi 0, %s31
      %s32 = sphi 0, %s29
      %s33 = sphi 0, %s32
      %s49 = sphi 0, %s33
      %s53 = sphi 0, %s53
      %s55 = sphi 0, %s53
      %s56 = sphi 0, %s55
      %s70 = sphi 0, %s56
      %s74 = sphi 0, %s74
      %s76 = sphi 0, %s74
      %s77 = sphi 0, %s76
      %s91 = sphi 0, %s77
      %s95 = sphi 0, %s95
      %s97 = sphi 0, %s95
      %s98 = sphi 0, %s97
      %s112 = sphi 0, %s98
      %s116 = sphi 0, %s116
      %s118 = sphi 0, %s116
      %s119 = sphi 0, %s118
      %s133 = sphi 0, %s119
      %s137 = sphi 0, %s137
      %s139 = sphi 0, %s137
      %s140 = sphi 0, %s139
      %s154 = sphi 0, %s140
      %s158 = sphi 0, %s158
      %s160 = sphi 0, %s158
      %s161 = sphi 0, %s160
      %s175 = sphi 0, %s161
      %s179 = sphi 0, %s179
      %s181 = sphi 0, %s179
      %s182 = sphi 0, %s181
      %s196 = sphi 0, %s182
      %s200 = sphi 0, %s200
      %s202 = sphi 0, %s200
      %s203 = sphi 0, %s202
      %s217 = sphi 0, %s203
      %s221 = sphi 0, %s221
      %s223 = sphi 0, %s221
      %s224 = sphi 0, %s223
      %s238 = sphi 0, %s224
      %s244 = sphi 0, %s246
      %s247 = sphi 0, %s244
      %s248 = sphi 0, %s247
      %s264 = sphi 0, %s248
    $region4: #{residual_block_forward.1} parent=1 // loop_header_branch
      %22 = sbr.rel (%p20) target = $region8
    $region5: #{residual_block_forward.1} parent=1 // loop_body
      %s24 = ssub.s32 %s19, 1
      %s25 = ssub.s32 %s19, 2
      %s26 = sadd.s32 %s19, 1
      %s27 = ssub.s32 %s19, %s26
      %p28 = scmp.eq.s32.totalorder %s27, 0
      %s30 = sadd.s32 %s29, 1
      %s31 = scalar_select %p28, %s29, %s30
      %p34 = pneg %p28
      %p35 = scmp.eq.s32.totalorder %s19, 1
      %p36 = por %p34, %p35
      %p37 = scmp.ne.s32.totalorder %s29, %s32
      %p38 = scmp.eq.s32.totalorder %s19, 0
      %p39 = por %p37, %p38
      %p40 = scmp.ne.s32.totalorder %s29, %s32
      %p41 = scmp.eq.s32.totalorder %s24, 1
      %p42 = por %p40, %p41
      %p43 = scmp.ne.s32.totalorder %s32, %s33
      %p44 = scmp.eq.s32.totalorder %s24, 0
      %p45 = por %p43, %p44
      %p46 = scmp.ne.s32.totalorder %s32, %s33
      %p47 = scmp.eq.s32.totalorder %s25, 1
      %p48 = por %p46, %p47
      %p50 = scmp.ne.s32.totalorder %s33, %s49
      %p51 = scmp.eq.s32.totalorder %s25, 0
      %p52 = por %p50, %p51
      %s54 = sadd.s32 %s53, 1
      %p57 = scmp.eq.s32.totalorder %s19, 1
      %p58 = scmp.ne.s32.totalorder %s53, %s55
      %p59 = scmp.eq.s32.totalorder %s19, 0
      %p60 = por %p58, %p59
      %p61 = scmp.ne.s32.totalorder %s53, %s55
      %p62 = scmp.eq.s32.totalorder %s24, 1
      %p63 = por %p61, %p62
      %p64 = scmp.ne.s32.totalorder %s55, %s56
      %p65 = scmp.eq.s32.totalorder %s24, 0
      %p66 = por %p64, %p65
      %p67 = scmp.ne.s32.totalorder %s55, %s56
      %p68 = scmp.eq.s32.totalorder %s25, 1
      %p69 = por %p67, %p68
      %p71 = scmp.ne.s32.totalorder %s56, %s70
      %p72 = scmp.eq.s32.totalorder %s25, 0
      %p73 = por %p71, %p72
      %s75 = sadd.s32 %s74, 1
      %p78 = scmp.eq.s32.totalorder %s19, 1
      %p79 = scmp.ne.s32.totalorder %s74, %s76
      %p80 = scmp.eq.s32.totalorder %s19, 0
      %p81 = por %p79, %p80
      %p82 = scmp.ne.s32.totalorder %s74, %s76
      %p83 = scmp.eq.s32.totalorder %s24, 1
      %p84 = por %p82, %p83
      %p85 = scmp.ne.s32.totalorder %s76, %s77
      %p86 = scmp.eq.s32.totalorder %s24, 0
      %p87 = por %p85, %p86
      %p88 = scmp.ne.s32.totalorder %s76, %s77
      %p89 = scmp.eq.s32.totalorder %s25, 1
      %p90 = por %p88, %p89
      %p92 = scmp.ne.s32.totalorder %s77, %s91
      %p93 = scmp.eq.s32.totalorder %s25, 0
      %p94 = por %p92, %p93
      %s96 = sadd.s32 %s95, 1
      %p99 = scmp.eq.s32.totalorder %s19, 1
      %p100 = scmp.ne.s32.totalorder %s95, %s97
      %p101 = scmp.eq.s32.totalorder %s19, 0
      %p102 = por %p100, %p101
      %p103 = scmp.ne.s32.totalorder %s95, %s97
      %p104 = scmp.eq.s32.totalorder %s24, 1
      %p105 = por %p103, %p104
      %p106 = scmp.ne.s32.totalorder %s97, %s98
      %p107 = scmp.eq.s32.totalorder %s24, 0
      %p108 = por %p106, %p107
      %p109 = scmp.ne.s32.totalorder %s97, %s98
      %p110 = scmp.eq.s32.totalorder %s25, 1
      %p111 = por %p109, %p110
      %p113 = scmp.ne.s32.totalorder %s98, %s112
      %p114 = scmp.eq.s32.totalorder %s25, 0
      %p115 = por %p113, %p114
      %s117 = sadd.s32 %s116, 1
      %p120 = scmp.eq.s32.totalorder %s19, 1
      %p121 = scmp.ne.s32.totalorder %s116, %s118
      %p122 = scmp.eq.s32.totalorder %s19, 0
      %p123 = por %p121, %p122
      %p124 = scmp.ne.s32.totalorder %s116, %s118
      %p125 = scmp.eq.s32.totalorder %s24, 1
      %p126 = por %p124, %p125
      %p127 = scmp.ne.s32.totalorder %s118, %s119
      %p128 = scmp.eq.s32.totalorder %s24, 0
      %p129 = por %p127, %p128
      %p130 = scmp.ne.s32.totalorder %s118, %s119
      %p131 = scmp.eq.s32.totalorder %s25, 1
      %p132 = por %p130, %p131
      %p134 = scmp.ne.s32.totalorder %s119, %s133
      %p135 = scmp.eq.s32.totalorder %s25, 0
      %p136 = por %p134, %p135
      %s138 = sadd.s32 %s137, 1
      %p141 = scmp.eq.s32.totalorder %s19, 1
      %p142 = scmp.ne.s32.totalorder %s137, %s139
      %p143 = scmp.eq.s32.totalorder %s19, 0
      %p144 = por %p142, %p143
      %p145 = scmp.ne.s32.totalorder %s137, %s139
      %p146 = scmp.eq.s32.totalorder %s24, 1
      %p147 = por %p145, %p146
      %p148 = scmp.ne.s32.totalorder %s139, %s140
      %p149 = scmp.eq.s32.totalorder %s24, 0
      %p150 = por %p148, %p149
      %p151 = scmp.ne.s32.totalorder %s139, %s140
      %p152 = scmp.eq.s32.totalorder %s25, 1
      %p153 = por %p151, %p152
      %p155 = scmp.ne.s32.totalorder %s140, %s154
      %p156 = scmp.eq.s32.totalorder %s25, 0
      %p157 = por %p155, %p156
      %s159 = sadd.s32 %s158, 1
      %p162 = scmp.eq.s32.totalorder %s19, 1
      %p163 = scmp.ne.s32.totalorder %s158, %s160
      %p164 = scmp.eq.s32.totalorder %s19, 0
      %p165 = por %p163, %p164
      %p166 = scmp.ne.s32.totalorder %s158, %s160
      %p167 = scmp.eq.s32.totalorder %s24, 1
      %p168 = por %p166, %p167
      %p169 = scmp.ne.s32.totalorder %s160, %s161
      %p170 = scmp.eq.s32.totalorder %s24, 0
      %p171 = por %p169, %p170
      %p172 = scmp.ne.s32.totalorder %s160, %s161
      %p173 = scmp.eq.s32.totalorder %s25, 1
      %p174 = por %p172, %p173
      %p176 = scmp.ne.s32.totalorder %s161, %s175
      %p177 = scmp.eq.s32.totalorder %s25, 0
      %p178 = por %p176, %p177
      %s180 = sadd.s32 %s179, 1
      %p183 = scmp.eq.s32.totalorder %s19, 1
      %p184 = scmp.ne.s32.totalorder %s179, %s181
      %p185 = scmp.eq.s32.totalorder %s19, 0
      %p186 = por %p184, %p185
      %p187 = scmp.ne.s32.totalorder %s179, %s181
      %p188 = scmp.eq.s32.totalorder %s24, 1
      %p189 = por %p187, %p188
      %p190 = scmp.ne.s32.totalorder %s181, %s182
      %p191 = scmp.eq.s32.totalorder %s24, 0
      %p192 = por %p190, %p191
      %p193 = scmp.ne.s32.totalorder %s181, %s182
      %p194 = scmp.eq.s32.totalorder %s25, 1
      %p195 = por %p193, %p194
      %p197 = scmp.ne.s32.totalorder %s182, %s196
      %p198 = scmp.eq.s32.totalorder %s25, 0
      %p199 = por %p197, %p198
      %s201 = sadd.s32 %s200, 1
      %p204 = scmp.eq.s32.totalorder %s19, 1
      %p205 = scmp.ne.s32.totalorder %s200, %s202
      %p206 = scmp.eq.s32.totalorder %s19, 0
      %p207 = por %p205, %p206
      %p208 = scmp.ne.s32.totalorder %s200, %s202
      %p209 = scmp.eq.s32.totalorder %s24, 1
      %p210 = por %p208, %p209
      %p211 = scmp.ne.s32.totalorder %s202, %s203
      %p212 = scmp.eq.s32.totalorder %s24, 0
      %p213 = por %p211, %p212
      %p214 = scmp.ne.s32.totalorder %s202, %s203
      %p215 = scmp.eq.s32.totalorder %s25, 1
      %p216 = por %p214, %p215
      %p218 = scmp.ne.s32.totalorder %s203, %s217
      %p219 = scmp.eq.s32.totalorder %s25, 0
      %p220 = por %p218, %p219
      %s222 = sadd.s32 %s221, 1
      %p225 = scmp.eq.s32.totalorder %s19, 1
      %p226 = scmp.ne.s32.totalorder %s221, %s223
      %p227 = scmp.eq.s32.totalorder %s19, 0
      %p228 = por %p226, %p227
      %p229 = scmp.ne.s32.totalorder %s221, %s223
      %p230 = scmp.eq.s32.totalorder %s24, 1
      %p231 = por %p229, %p230
      %p232 = scmp.ne.s32.totalorder %s223, %s224
      %p233 = scmp.eq.s32.totalorder %s24, 0
      %p234 = por %p232, %p233
      %p235 = scmp.ne.s32.totalorder %s223, %s224
      %p236 = scmp.eq.s32.totalorder %s25, 1
      %p237 = por %p235, %p236
      %p239 = scmp.ne.s32.totalorder %s224, %s238
      %p240 = scmp.eq.s32.totalorder %s25, 0
      %p241 = por %p239, %p240
      %s242 = ssub.s32 %s19, %s26
      %p243 = scmp.eq.s32.totalorder %s242, 0
      %s245 = sadd.s32 %s244, 1
      %s246 = scalar_select %p243, %s244, %s245
      %p249 = pneg %p243
      %p250 = scmp.eq.s32.totalorder %s19, 1
      %p251 = por %p249, %p250
      %p252 = scmp.ne.s32.totalorder %s244, %s247
      %p253 = scmp.eq.s32.totalorder %s19, 0
      %p254 = por %p252, %p253
      %p255 = scmp.ne.s32.totalorder %s244, %s247
      %p256 = scmp.eq.s32.totalorder %s24, 1
      %p257 = por %p255, %p256
      %p258 = scmp.ne.s32.totalorder %s247, %s248
      %p259 = scmp.eq.s32.totalorder %s24, 0
      %p260 = por %p258, %p259
      %p261 = scmp.ne.s32.totalorder %s247, %s248
      %p262 = scmp.eq.s32.totalorder %s25, 1
      %p263 = por %p261, %p262
      %p265 = scmp.ne.s32.totalorder %s248, %s264
      %p266 = scmp.eq.s32.totalorder %s25, 0
      %p267 = por %p265, %p266
      %p268 = scmp.le.s32.totalorder 1, %s19
      %p269 = scmp.lt.s32.totalorder %s19, 3
      %p270 = pnand %p268, %p269
      %p271 = pneg %p270
      // Predicated region
      $region9: #{residual_block_forward.1} parent=5 // pred_check
        _
      $region10: #{residual_block_forward.1} parent=5 // pred_check_branch
        %273 = sbr.rel (%p270) target = $region12
      $region11: #{residual_block_forward.1} parent=5 // pred_region
        %s274 = ssub.s32 %s19, 1
        // Predicated region
        $region13: #{residual_block_forward.1} parent=11 // pred_check
          %p275 = pneg %p66
        $region14: #{residual_block_forward.1} parent=11 // pred_check_branch
          %277 = sbr.rel (%p275) target = $region16
        $region15: #{residual_block_forward.1} parent=11 // pred_region
          _
        $region16: #{residual_block_forward.1} parent=11 // pred_fallthru
          _
        // Predicated region
        $region17: #{residual_block_forward.1} parent=11 // pred_check
          %p278 = pneg %p87
        $region18: #{residual_block_forward.1} parent=11 // pred_check_branch
          %280 = sbr.rel (%p278) target = $region20
        $region19: #{residual_block_forward.1} parent=11 // pred_region
          _
        $region20: #{residual_block_forward.1} parent=11 // pred_fallthru
          _
        // Predicated region
        $region21: #{residual_block_forward.1} parent=11 // pred_check
          %p281 = pneg %p108
        $region22: #{residual_block_forward.1} parent=11 // pred_check_branch
          %283 = sbr.rel (%p281) target = $region24
        $region23: #{residual_block_forward.1} parent=11 // pred_region
          _
        $region24: #{residual_block_forward.1} parent=11 // pred_fallthru
          _
        // Predicated region
        $region25: #{residual_block_forward.1} parent=11 // pred_check
          %p284 = pneg %p129
        $region26: #{residual_block_forward.1} parent=11 // pred_check_branch
          %286 = sbr.rel (%p284) target = $region28
        $region27: #{residual_block_forward.1} parent=11 // pred_region
          _
        $region28: #{residual_block_forward.1} parent=11 // pred_fallthru
          _
        // Predicated region
        $region29: #{residual_block_forward.1} parent=11 // pred_check
          %p287 = pneg %p150
        $region30: #{residual_block_forward.1} parent=11 // pred_check_branch
          %289 = sbr.rel (%p287) target = $region32
        $region31: #{residual_block_forward.1} parent=11 // pred_region
          _
        $region32: #{residual_block_forward.1} parent=11 // pred_fallthru
          _
        // Predicated region
        $region33: #{residual_block_forward.1} parent=11 // pred_check
          %p290 = pneg %p171
        $region34: #{residual_block_forward.1} parent=11 // pred_check_branch
          %292 = sbr.rel (%p290) target = $region36
        $region35: #{residual_block_forward.1} parent=11 // pred_region
          _
        $region36: #{residual_block_forward.1} parent=11 // pred_fallthru
          _
        // Predicated region
        $region37: #{residual_block_forward.1} parent=11 // pred_check
          %p293 = pneg %p192
        $region38: #{residual_block_forward.1} parent=11 // pred_check_branch
          %295 = sbr.rel (%p293) target = $region40
        $region39: #{residual_block_forward.1} parent=11 // pred_region
          _
        $region40: #{residual_block_forward.1} parent=11 // pred_fallthru
          _
        // Predicated region
        $region41: #{residual_block_forward.1} parent=11 // pred_check
          %p296 = pneg %p213
        $region42: #{residual_block_forward.1} parent=11 // pred_check_branch
          %298 = sbr.rel (%p296) target = $region44
        $region43: #{residual_block_forward.1} parent=11 // pred_region
          _
        $region44: #{residual_block_forward.1} parent=11 // pred_fallthru
          _
        // Predicated region
        $region45: #{residual_block_forward.1} parent=11 // pred_check
          %p299 = pneg %p234
        $region46: #{residual_block_forward.1} parent=11 // pred_check_branch
          %301 = sbr.rel (%p299) target = $region48
        $region47: #{residual_block_forward.1} parent=11 // pred_region
          _
        $region48: #{residual_block_forward.1} parent=11 // pred_fallthru
          _
      $region12: #{residual_block_forward.1} parent=5 // pred_fallthru
        _
      %p302 = scmp.lt.s32.totalorder %s19, 2
      // Predicated region
      $region49: #{residual_block_forward.1} parent=5 // pred_check
        %p303 = pneg %p302
      $region50: #{residual_block_forward.1} parent=5 // pred_check_branch
        %305 = sbr.rel (%p303) target = $region52
      $region51: #{residual_block_forward.1} parent=5 // pred_region
        // Predicated region
        $region53: #{residual_block_forward.1} parent=51 // pred_check
          %p306 = pneg %p39
        $region54: #{residual_block_forward.1} parent=51 // pred_check_branch
          %308 = sbr.rel (%p306) target = $region56
        $region55: #{residual_block_forward.1} parent=51 // pred_region
          %p309 = scmp.lt.s32.totalorder %s19, 1
          %s310 = scalar_select %p309, %s19, 1
          %s311 = smul.addr %s310, 72
          %s312 = smul.addr %s311, 4
          %s313 = scalar_lea.vmem %s0, %s312
        $region56: #{residual_block_forward.1} parent=51 // pred_fallthru
          _
      $region52: #{residual_block_forward.1} parent=5 // pred_fallthru
        _
      %p314 = scmp.le.s32.totalorder 1, %s19
      %p315 = scmp.lt.s32.totalorder %s19, 3
      %p316 = pnand %p314, %p315
      %p317 = pneg %p316
      // Predicated region
      $region57: #{residual_block_forward.1} parent=5 // pred_check
        _
      $region58: #{residual_block_forward.1} parent=5 // pred_check_branch
        %319 = sbr.rel (%p316) target = $region60
      $region59: #{residual_block_forward.1} parent=5 // pred_region
        %s320 = ssub.s32 %s19, 1
        %p321 = scmp.lt.s32.totalorder %s24, 1
        %s322 = scalar_select %p321, %s24, 1
        %s323 = smul.addr %s322, 72
        %s324 = smul.addr %s323, 4
        %s325 = scalar_lea.vmem %s0, %s324
        %p326 = pneg %p45
        %p327 = pneg %p42
        %p328 = pneg %p66
        %p329 = pneg %p63
        %p330 = pneg %p87
        %p331 = pneg %p84
        %p332 = pneg %p108
        %p333 = pneg %p105
        %p334 = pneg %p129
        %p335 = pneg %p126
        %p336 = pneg %p150
        %p337 = pneg %p147
        %p338 = pneg %p171
        %p339 = pneg %p168
        %p340 = pneg %p192
        %p341 = pneg %p189
        %p342 = pneg %p213
        %p343 = pneg %p210
        %p344 = pneg %p234
        %p345 = pneg %p231
        %p346 = pneg %p260
        %p347 = pneg %p257
        %s348 = sand.u32 %s247, 1
        %s349 = scalar_lea.sflag [#allocation5], %s348
        %s350 = sand.u32 %s247, 1
        %s351 = smul.addr %s350, 256
        %s352 = scalar_lea.vmem [#allocation4], %s351
        %p353 = scmp.lt.s32.totalorder %s24, 1
        %s354 = scalar_select %p353, %s24, 1
        %s355 = smul.addr %s354, 72
        %s356 = smul.addr %s355, 4
        %s357 = scalar_lea.vmem %s0, %s356
        %v359 = vld [vmem:[%s357] sm:$0xff]
        %v360 = vld [vmem:[%s357 + $0x8] sm:$0xff]
        %v361 = vld [vmem:[%s357 + $0x10] sm:$0xff]
        %v362 = vld [vmem:[%s357 + $0x18] sm:$0xff]
        %v363 = vld [vmem:[%s357 + $0x20] sm:$0xff]
        %v364 = vld [vmem:[%s357 + $0x28] sm:$0xff]
        %v365 = vld [vmem:[%s357 + $0x30] sm:$0xff]
        %v366 = vld [vmem:[%s357 + $0x38] sm:$0xff]
        %v367 = vld [vmem:[%s357 + $0x40] sm:$0xff]
        %v368 = vld [vmem:[%s357 + $0x48] sm:$0xff]
        %v369 = vld [vmem:[%s357 + $0x50] sm:$0xff]
        %v370 = vld [vmem:[%s357 + $0x58] sm:$0xff]
        %v371 = vld [vmem:[%s357 + $0x60] sm:$0xff]
        %v372 = vld [vmem:[%s357 + $0x68] sm:$0xff]
        %v373 = vld [vmem:[%s357 + $0x70] sm:$0xff]
        %v374 = vld [vmem:[%s357 + $0x78] sm:$0xff]
        %v375 = vld [vmem:[%s357 + $0x80] sm:$0xff]
        %v376 = vld [vmem:[%s357 + $0x88] sm:$0xff]
        %v377 = vld [vmem:[%s357 + $0x90] sm:$0xff]
        %v378 = vld [vmem:[%s357 + $0x98] sm:$0xff]
        %v379 = vld [vmem:[%s357 + $0xa0] sm:$0xff]
        %v380 = vld [vmem:[%s357 + $0xa8] sm:$0xff]
        %v381 = vld [vmem:[%s357 + $0xb0] sm:$0xff]
        %v382 = vld [vmem:[%s357 + $0xb8] sm:$0xff]
        %v383 = vld [vmem:[%s357 + $0xc0] sm:$0xff]
        %v384 = vld [vmem:[%s357 + $0xc8] sm:$0xff]
        %v385 = vld [vmem:[%s357 + $0xd0] sm:$0xff]
        %v386 = vld [vmem:[%s357 + $0xd8] sm:$0xff]
        %v387 = vld [vmem:[%s357 + $0xe0] sm:$0xff]
        %v388 = vld [vmem:[%s357 + $0xe8] sm:$0xff]
        %v389 = vld [vmem:[%s357 + $0xf0] sm:$0xff]
        %v390 = vld [vmem:[%s357 + $0xf8] sm:$0xff]
        %v391 = vld [vmem:[%s1] sm:$0xf]
        %v392 = vld [vmem:[%s1 + $0x4] sm:$0xf]
        %v393 = vld [vmem:[%s1 + $0x8] sm:$0xf]
        %v394 = vld [vmem:[%s1 + $0xc] sm:$0xf]
        %v395 = vld [vmem:[%s1 + $0x10] sm:$0xf]
        %v396 = vld [vmem:[%s1 + $0x14] sm:$0xf]
        %v397 = vld [vmem:[%s1 + $0x18] sm:$0xf]
        %v398 = vld [vmem:[%s1 + $0x1c] sm:$0xf]
        %v399 = vld [vmem:[%s1 + $0x20] sm:$0xf]
        %v400 = vld [vmem:[%s1 + $0x24] sm:$0xf]
        %v401 = vld [vmem:[%s1 + $0x28] sm:$0xf]
        %v402 = vld [vmem:[%s1 + $0x2c] sm:$0xf]
        %v403 = vld [vmem:[%s1 + $0x30] sm:$0xf]
        %v404 = vld [vmem:[%s1 + $0x34] sm:$0xf]
        %v405 = vld [vmem:[%s1 + $0x38] sm:$0xf]
        %v406 = vld [vmem:[%s1 + $0x3c] sm:$0xf]
        %v407 = vld [vmem:[%s1 + $0x40] sm:$0xf]
        %v408 = vld [vmem:[%s1 + $0x44] sm:$0xf]
        %v409 = vld [vmem:[%s1 + $0x48] sm:$0xf]
        %v410 = vld [vmem:[%s1 + $0x4c] sm:$0xf]
        %v411 = vld [vmem:[%s1 + $0x50] sm:$0xf]
        %v412 = vld [vmem:[%s1 + $0x54] sm:$0xf]
        %v413 = vld [vmem:[%s1 + $0x58] sm:$0xf]
        %v414 = vld [vmem:[%s1 + $0x5c] sm:$0xf]
        %v447 = vunpack.c.l.b16 %v359
        %v448 = vunpack.c.h.b16 %v359
        %v449 = vunpack.c.l.b16 %v360
        %v450 = vunpack.c.h.b16 %v360
        %v451 = vunpack.c.l.b16 %v361
        %v452 = vunpack.c.h.b16 %v361
        %v453 = vunpack.c.l.b16 %v362
        %v454 = vunpack.c.h.b16 %v362
        %v455 = vunpack.c.l.b16 %v363
        %v456 = vunpack.c.h.b16 %v363
        %v457 = vunpack.c.l.b16 %v364
        %v458 = vunpack.c.h.b16 %v364
        %v459 = vunpack.c.l.b16 %v365
        %v460 = vunpack.c.h.b16 %v365
        %v461 = vunpack.c.l.b16 %v366
        %v462 = vunpack.c.h.b16 %v366
        %v463 = vunpack.c.l.b16 %v367
        %v464 = vunpack.c.h.b16 %v367
        %v465 = vunpack.c.l.b16 %v368
        %v466 = vunpack.c.h.b16 %v368
        %v467 = vunpack.c.l.b16 %v369
        %v468 = vunpack.c.h.b16 %v369
        %v469 = vunpack.c.l.b16 %v370
        %v470 = vunpack.c.h.b16 %v370
        %v471 = vunpack.c.l.b16 %v371
        %v472 = vunpack.c.h.b16 %v371
        %v473 = vunpack.c.l.b16 %v372
        %v474 = vunpack.c.h.b16 %v372
        %v475 = vunpack.c.l.b16 %v373
        %v476 = vunpack.c.h.b16 %v373
        %v477 = vunpack.c.l.b16 %v374
        %v478 = vunpack.c.h.b16 %v374
        %v479 = vunpack.c.l.b16 %v375
        %v480 = vunpack.c.h.b16 %v375
        %v481 = vunpack.c.l.b16 %v376
        %v482 = vunpack.c.h.b16 %v376
        %v483 = vunpack.c.l.b16 %v377
        %v484 = vunpack.c.h.b16 %v377
        %v485 = vunpack.c.l.b16 %v378
        %v486 = vunpack.c.h.b16 %v378
        %v487 = vunpack.c.l.b16 %v379
        %v488 = vunpack.c.h.b16 %v379
        %v489 = vunpack.c.l.b16 %v380
        %v490 = vunpack.c.h.b16 %v380
        %v491 = vunpack.c.l.b16 %v381
        %v492 = vunpack.c.h.b16 %v381
        %v493 = vunpack.c.l.b16 %v382
        %v494 = vunpack.c.h.b16 %v382
        %v495 = vunpack.c.l.b16 %v383
        %v496 = vunpack.c.h.b16 %v383
        %v497 = vunpack.c.l.b16 %v384
        %v498 = vunpack.c.h.b16 %v384
        %v499 = vunpack.c.l.b16 %v385
        %v500 = vunpack.c.h.b16 %v385
        %v501 = vunpack.c.l.b16 %v386
        %v502 = vunpack.c.h.b16 %v386
        %v503 = vunpack.c.l.b16 %v387
        %v504 = vunpack.c.h.b16 %v387
        %v505 = vunpack.c.l.b16 %v388
        %v506 = vunpack.c.h.b16 %v388
        %v507 = vunpack.c.l.b16 %v389
        %v508 = vunpack.c.h.b16 %v389
        %v509 = vunpack.c.l.b16 %v390
        %v510 = vunpack.c.h.b16 %v390
        %v511 = vpack.c.b16 %v449, %v447
        %v512 = vpack.c.b16 %v450, %v448
        %v513 = vpack.c.b16 %v453, %v451
        %v514 = vpack.c.b16 %v454, %v452
        %v515 = vpack.c.b16 %v457, %v455
        %v516 = vpack.c.b16 %v458, %v456
        %v517 = vpack.c.b16 %v461, %v459
        %v518 = vpack.c.b16 %v462, %v460
        %v519 = vpack.c.b16 %v465, %v463
        %v520 = vpack.c.b16 %v466, %v464
        %v521 = vpack.c.b16 %v469, %v467
        %v522 = vpack.c.b16 %v470, %v468
        %v523 = vpack.c.b16 %v473, %v471
        %v524 = vpack.c.b16 %v474, %v472
        %v525 = vpack.c.b16 %v477, %v475
        %v526 = vpack.c.b16 %v478, %v476
        %v527 = vpack.c.b16 %v481, %v479
        %v528 = vpack.c.b16 %v482, %v480
        %v529 = vpack.c.b16 %v485, %v483
        %v530 = vpack.c.b16 %v486, %v484
        %v531 = vpack.c.b16 %v489, %v487
        %v532 = vpack.c.b16 %v490, %v488
        %v533 = vpack.c.b16 %v493, %v491
        %v534 = vpack.c.b16 %v494, %v492
        %v535 = vpack.c.b16 %v497, %v495
        %v536 = vpack.c.b16 %v498, %v496
        %v537 = vpack.c.b16 %v501, %v499
        %v538 = vpack.c.b16 %v502, %v500
        %v539 = vpack.c.b16 %v505, %v503
        %v540 = vpack.c.b16 %v506, %v504
        %v541 = vpack.c.b16 %v509, %v507
        %v542 = vpack.c.b16 %v510, %v508
        %v583 = vunpack.c.l.b16 %v391
        %v584 = vunpack.c.l.b16 %v392
        %v585 = vunpack.c.l.b16 %v393
        %v586 = vunpack.c.l.b16 %v394
        %v587 = vunpack.c.l.b16 %v395
        %v588 = vunpack.c.l.b16 %v396
        %v589 = vunpack.c.l.b16 %v397
        %v590 = vunpack.c.l.b16 %v398
        %v591 = vunpack.c.l.b16 %v399
        %v592 = vunpack.c.l.b16 %v400
        %v593 = vunpack.c.l.b16 %v401
        %v594 = vunpack.c.l.b16 %v402
        %v595 = vunpack.c.l.b16 %v403
        %v596 = vunpack.c.l.b16 %v404
        %v597 = vunpack.c.l.b16 %v405
        %v598 = vunpack.c.l.b16 %v406
        %v599 = vunpack.c.l.b16 %v407
        %v600 = vunpack.c.l.b16 %v408
        %v601 = vunpack.c.l.b16 %v409
        %v602 = vunpack.c.l.b16 %v410
        %v603 = vunpack.c.l.b16 %v411
        %v604 = vunpack.c.l.b16 %v412
        %v605 = vunpack.c.l.b16 %v413
        %v606 = vunpack.c.l.b16 %v414
        %v607 = vpack.c.b16 %v584, %v583
        %v608 = vpack.c.b16 %v586, %v585
        %v609 = vpack.c.b16 %v588, %v587
        %v610 = vpack.c.b16 %v590, %v589
        %v611 = vpack.c.b16 %v592, %v591
        %v612 = vpack.c.b16 %v594, %v593
        %v613 = vpack.c.b16 %v596, %v595
        %v614 = vpack.c.b16 %v598, %v597
        %v615 = vpack.c.b16 %v600, %v599
        %v616 = vpack.c.b16 %v602, %v601
        %v617 = vpack.c.b16 %v604, %v603
        %v618 = vpack.c.b16 %v606, %v605
        %vm631 = vcmask 523264
        %v633 = vsel %vm631, %v512, 0
        %v636 = vsel %vm631, %v514, 0
        %v639 = vsel %vm631, %v516, 0
        %v642 = vsel %vm631, %v518, 0
        %v645 = vsel %vm631, %v520, 0
        %v648 = vsel %vm631, %v522, 0
        %v651 = vsel %vm631, %v524, 0
        %v654 = vsel %vm631, %v526, 0
        %v657 = vsel %vm631, %v528, 0
        %v660 = vsel %vm631, %v530, 0
        %v663 = vsel %vm631, %v532, 0
        %v666 = vsel %vm631, %v534, 0
        %v669 = vsel %vm631, %v536, 0
        %v672 = vsel %vm631, %v538, 0
        %v675 = vsel %vm631, %v540, 0
        %v678 = vsel %vm631, %v542, 0
        %680 = vmatprep.subr.bf16.mxu0 0
        %681 = vmatpush1.bf16.msra.mxu0 %v607
        %682 = vmatprep.subr.bf16.mxu0 0
        %683 = vmatpush1.bf16.msra.mxu0 %v608
        %684 = vmatprep.subr.bf16.mxu0 0
        %685 = vmatpush1.bf16.msra.mxu0 %v609
        %686 = vmatprep.subr.bf16.mxu0 0
        %687 = vmatpush1.bf16.msra.mxu0 %v610
        %688 = vmatprep.subr.bf16.mxu0 0
        %689 = vmatpush1.bf16.msra.mxu0 %v611
        %690 = vmatprep.subr.bf16.mxu0 0
        %691 = vmatpush1.bf16.msra.mxu0 %v612
        %692 = vmatprep.subr.bf16.mxu0 0
        %693 = vmatpush1.bf16.msra.mxu0 %v613
        %694 = vmatprep.subr.bf16.mxu0 0
        %695 = vmatpush1.bf16.msra.mxu0 %v614
        %696 = vmatprep.subr.bf16.mxu0 0
        %697 = vmatpush1.bf16.msra.mxu0 %v615
        %698 = vmatprep.subr.bf16.mxu0 0
        %699 = vmatpush1.bf16.msra.mxu0 %v616
        %700 = vmatprep.subr.bf16.mxu0 0
        %701 = vmatpush1.bf16.msra.mxu0 %v617
        %702 = vmatprep.subr.bf16.mxu0 0
        %703 = vmatpush1.bf16.msra.mxu0 %v618
        %704 = vmatprep.subr.bf16.mxu0 0
        %705 = vmatpush1.bf16.msra.mxu0 0
        %706 = vmatprep.subr.bf16.mxu0 0
        %707 = vmatpush1.bf16.msra.mxu0 0
        %708 = vmatprep.subr.bf16.mxu0 0
        %709 = vmatpush1.bf16.msra.mxu0 0
        %710 = vmatprep.subr.bf16.mxu0 0
        %711 = vmatpush1.bf16.msra.mxu0 0
        %712 = vmatprep.mubr.bf16.mxu0 %v633
        %713 = vmatmul.mubr.bf16.gmra.mrb[0].mxu0 %v511
        %v714 = vpop.f32.mrb[0].mxu0
        %v715 = vadd.f32 0.0, %v714
        %v716 = vpop.f32.mrb[0].mxu0
        %v717 = vpop.f32.mrb[0].mxu0
        %v718 = vadd.f32 0.0, %v717
        %v719 = vpop.f32.mrb[0].mxu0
        %720 = vmatprep.mubr.bf16.mxu0 %v636
        %721 = vmatmul.mubr.bf16.gmra.mrb[0].mxu0 %v513
        %v722 = vpop.f32.mrb[0].mxu0
        %v723 = vadd.f32 0.0, %v722
        %v724 = vpop.f32.mrb[0].mxu0
        %v725 = vpop.f32.mrb[0].mxu0
        %v726 = vadd.f32 0.0, %v725
        %v727 = vpop.f32.mrb[0].mxu0
        %728 = vmatprep.mubr.bf16.mxu0 %v639
        %729 = vmatmul.mubr.bf16.gmra.mrb[0].mxu0 %v515
        %v730 = vpop.f32.mrb[0].mxu0
        %v731 = vadd.f32 0.0, %v730
        %v732 = vpop.f32.mrb[0].mxu0
        %v733 = vpop.f32.mrb[0].mxu0
        %v734 = vadd.f32 0.0, %v733
        %v735 = vpop.f32.mrb[0].mxu0
        %736 = vmatprep.mubr.bf16.mxu0 %v642
        %737 = vmatmul.mubr.bf16.gmra.mrb[0].mxu0 %v517
        %v738 = vpop.f32.mrb[0].mxu0
        %v739 = vadd.f32 0.0, %v738
        %v740 = vpop.f32.mrb[0].mxu0
        %v741 = vpop.f32.mrb[0].mxu0
        %v742 = vadd.f32 0.0, %v741
        %v743 = vpop.f32.mrb[0].mxu0
        %744 = vmatprep.mubr.bf16.mxu0 %v645
        %745 = vmatmul.mubr.bf16.gmra.mrb[0].mxu0 %v519
        %v746 = vpop.f32.mrb[0].mxu0
        %v747 = vadd.f32 0.0, %v746
        %v748 = vpop.f32.mrb[0].mxu0
        %v749 = vpop.f32.mrb[0].mxu0
        %v750 = vadd.f32 0.0, %v749
        %v751 = vpop.f32.mrb[0].mxu0
        %752 = vmatprep.mubr.bf16.mxu0 %v648
        %753 = vmatmul.mubr.bf16.gmra.mrb[0].mxu0 %v521
        %v754 = vpop.f32.mrb[0].mxu0
        %v755 = vadd.f32 0.0, %v754
        %v756 = vpop.f32.mrb[0].mxu0
        %v757 = vpop.f32.mrb[0].mxu0
        %v758 = vadd.f32 0.0, %v757
        %v759 = vpop.f32.mrb[0].mxu0
        %760 = vmatprep.mubr.bf16.mxu0 %v651
        %761 = vmatmul.mubr.bf16.gmra.mrb[0].mxu0 %v523
        %v762 = vpop.f32.mrb[0].mxu0
        %v763 = vadd.f32 0.0, %v762
        %v764 = vpop.f32.mrb[0].mxu0
        %v765 = vpop.f32.mrb[0].mxu0
        %v766 = vadd.f32 0.0, %v765
        %v767 = vpop.f32.mrb[0].mxu0
        %768 = vmatprep.mubr.bf16.mxu0 %v654
        %769 = vmatmul.mubr.bf16.gmra.mrb[0].mxu0 %v525
        %v770 = vpop.f32.mrb[0].mxu0
        %v771 = vadd.f32 0.0, %v770
        %v772 = vpop.f32.mrb[0].mxu0
        %v773 = vpop.f32.mrb[0].mxu0
        %v774 = vadd.f32 0.0, %v773
        %v775 = vpop.f32.mrb[0].mxu0
        %776 = vmatprep.mubr.bf16.mxu0 %v657
        %777 = vmatmul.mubr.bf16.gmra.mrb[0].mxu0 %v527
        %v778 = vpop.f32.mrb[0].mxu0
        %v779 = vadd.f32 0.0, %v778
        %v780 = vpop.f32.mrb[0].mxu0
        %v781 = vpop.f32.mrb[0].mxu0
        %v782 = vadd.f32 0.0, %v781
        %v783 = vpop.f32.mrb[0].mxu0
        %784 = vmatprep.mubr.bf16.mxu0 %v660
        %785 = vmatmul.mubr.bf16.gmra.mrb[0].mxu0 %v529
        %v786 = vpop.f32.mrb[0].mxu0
        %v787 = vadd.f32 0.0, %v786
        %v788 = vpop.f32.mrb[0].mxu0
        %v789 = vpop.f32.mrb[0].mxu0
        %v790 = vadd.f32 0.0, %v789
        %v791 = vpop.f32.mrb[0].mxu0
        %792 = vmatprep.mubr.bf16.mxu0 %v663
        %793 = vmatmul.mubr.bf16.gmra.mrb[0].mxu0 %v531
        %v794 = vpop.f32.mrb[0].mxu0
        %v795 = vadd.f32 0.0, %v794
        %v796 = vpop.f32.mrb[0].mxu0
        %v797 = vpop.f32.mrb[0].mxu0
        %v798 = vadd.f32 0.0, %v797
        %v799 = vpop.f32.mrb[0].mxu0
        %800 = vmatprep.mubr.bf16.mxu0 %v666
        %801 = vmatmul.mubr.bf16.gmra.mrb[0].mxu0 %v533
        %v802 = vpop.f32.mrb[0].mxu0
        %v803 = vadd.f32 0.0, %v802
        %v804 = vpop.f32.mrb[0].mxu0
        %v805 = vpop.f32.mrb[0].mxu0
        %v806 = vadd.f32 0.0, %v805
        %v807 = vpop.f32.mrb[0].mxu0
        %808 = vmatprep.mubr.bf16.mxu0 %v669
        %809 = vmatmul.mubr.bf16.gmra.mrb[0].mxu0 %v535
        %v810 = vpop.f32.mrb[0].mxu0
        %v811 = vadd.f32 0.0, %v810
        %v812 = vpop.f32.mrb[0].mxu0
        %v813 = vpop.f32.mrb[0].mxu0
        %v814 = vadd.f32 0.0, %v813
        %v815 = vpop.f32.mrb[0].mxu0
        %816 = vmatprep.mubr.bf16.mxu0 %v672
        %817 = vmatmul.mubr.bf16.gmra.mrb[0].mxu0 %v537
        %v818 = vpop.f32.mrb[0].mxu0
        %v819 = vadd.f32 0.0, %v818
        %v820 = vpop.f32.mrb[0].mxu0
        %v821 = vpop.f32.mrb[0].mxu0
        %v822 = vadd.f32 0.0, %v821
        %v823 = vpop.f32.mrb[0].mxu0
        %824 = vmatprep.mubr.bf16.mxu0 %v675
        %825 = vmatmul.mubr.bf16.gmra.mrb[0].mxu0 %v539
        %v826 = vpop.f32.mrb[0].mxu0
        %v827 = vadd.f32 0.0, %v826
        %v828 = vpop.f32.mrb[0].mxu0
        %v829 = vpop.f32.mrb[0].mxu0
        %v830 = vadd.f32 0.0, %v829
        %v831 = vpop.f32.mrb[0].mxu0
        %832 = vmatprep.mubr.bf16.mxu0 %v678
        %833 = vmatmul.mubr.bf16.gmra.mrb[0].mxu0 %v541
        %v834 = vpop.f32.mrb[0].mxu0
        %v835 = vadd.f32 0.0, %v834
        %v836 = vpop.f32.mrb[0].mxu0
        %v837 = vpop.f32.mrb[0].mxu0
        %v838 = vadd.f32 0.0, %v837
        %v839 = vpop.f32.mrb[0].mxu0
        %840 = vdwg.mxu0
        %841 = vst [vmem:[#allocation2] sm:$0xff] %v715
        %842 = vst [vmem:[#allocation2 + $0x8] sm:$0xff] %v718
        %843 = vst [vmem:[#allocation2 + $0x10] sm:$0xff] %v723
        %844 = vst [vmem:[#allocation2 + $0x18] sm:$0xff] %v726
        %845 = vst [vmem:[#allocation2 + $0x20] sm:$0xff] %v731
        %846 = vst [vmem:[#allocation2 + $0x28] sm:$0xff] %v734
        %847 = vst [vmem:[#allocation2 + $0x30] sm:$0xff] %v739
        %848 = vst [vmem:[#allocation2 + $0x38] sm:$0xff] %v742
        %849 = vst [vmem:[#allocation2 + $0x40] sm:$0xff] %v747
        %850 = vst [vmem:[#allocation2 + $0x48] sm:$0xff] %v750
        %851 = vst [vmem:[#allocation2 + $0x50] sm:$0xff] %v755
        %852 = vst [vmem:[#allocation2 + $0x58] sm:$0xff] %v758
        %853 = vst [vmem:[#allocation2 + $0x60] sm:$0xff] %v763
        %854 = vst [vmem:[#allocation2 + $0x68] sm:$0xff] %v766
        %855 = vst [vmem:[#allocation2 + $0x70] sm:$0xff] %v771
        %856 = vst [vmem:[#allocation2 + $0x78] sm:$0xff] %v774
        %857 = vst [vmem:[#allocation2 + $0x80] sm:$0xff] %v779
        %858 = vst [vmem:[#allocation2 + $0x88] sm:$0xff] %v782
        %859 = vst [vmem:[#allocation2 + $0x90] sm:$0xff] %v787
        %860 = vst [vmem:[#allocation2 + $0x98] sm:$0xff] %v790
        %861 = vst [vmem:[#allocation2 + $0xa0] sm:$0xff] %v795
        %862 = vst [vmem:[#allocation2 + $0xa8] sm:$0xff] %v798
        %863 = vst [vmem:[#allocation2 + $0xb0] sm:$0xff] %v803
        %864 = vst [vmem:[#allocation2 + $0xb8] sm:$0xff] %v806
        %865 = vst [vmem:[#allocation2 + $0xc0] sm:$0xff] %v811
        %866 = vst [vmem:[#allocation2 + $0xc8] sm:$0xff] %v814
        %867 = vst [vmem:[#allocation2 + $0xd0] sm:$0xff] %v819
        %868 = vst [vmem:[#allocation2 + $0xd8] sm:$0xff] %v822
        %869 = vst [vmem:[#allocation2 + $0xe0] sm:$0xff] %v827
        %870 = vst [vmem:[#allocation2 + $0xe8] sm:$0xff] %v830
        %871 = vst [vmem:[#allocation2 + $0xf0] sm:$0xff] %v835
        %872 = vst [vmem:[#allocation2 + $0xf8] sm:$0xff] %v838
        %v873 = vld [vmem:[%s357 + $0x10] sm:$0xff]
        %v874 = vld [vmem:[%s357 + $0x18] sm:$0xff]
        %v875 = vld [vmem:[%s357 + $0x20] sm:$0xff]
        %v876 = vld [vmem:[%s357 + $0x28] sm:$0xff]
        %v877 = vld [vmem:[%s357 + $0x30] sm:$0xff]
        %v878 = vld [vmem:[%s357 + $0x38] sm:$0xff]
        %v879 = vld [vmem:[%s357 + $0x40] sm:$0xff]
        %v880 = vld [vmem:[%s357 + $0x48] sm:$0xff]
        %v881 = vld [vmem:[%s357 + $0x50] sm:$0xff]
        %v882 = vld [vmem:[%s357 + $0x58] sm:$0xff]
        %v883 = vld [vmem:[%s357 + $0x60] sm:$0xff]
        %v884 = vld [vmem:[%s357 + $0x68] sm:$0xff]
        %v885 = vld [vmem:[%s357 + $0x70] sm:$0xff]
        %v886 = vld [vmem:[%s357 + $0x78] sm:$0xff]
        %v887 = vld [vmem:[%s357 + $0x80] sm:$0xff]
        %v888 = vld [vmem:[%s357 + $0x88] sm:$0xff]
        %v889 = vld [vmem:[%s357 + $0x90] sm:$0xff]
        %v890 = vld [vmem:[%s357 + $0x98] sm:$0xff]
        %v891 = vld [vmem:[%s357 + $0xa0] sm:$0xff]
        %v892 = vld [vmem:[%s357 + $0xa8] sm:$0xff]
        %v893 = vld [vmem:[%s357 + $0xb0] sm:$0xff]
        %v894 = vld [vmem:[%s357 + $0xb8] sm:$0xff]
        %v895 = vld [vmem:[%s357 + $0xc0] sm:$0xff]
        %v896 = vld [vmem:[%s357 + $0xc8] sm:$0xff]
        %v897 = vld [vmem:[%s357 + $0xd0] sm:$0xff]
        %v898 = vld [vmem:[%s357 + $0xd8] sm:$0xff]
        %v899 = vld [vmem:[%s357 + $0xe0] sm:$0xff]
        %v900 = vld [vmem:[%s357 + $0xe8] sm:$0xff]
        %v901 = vld [vmem:[%s357 + $0xf0] sm:$0xff]
        %v902 = vld [vmem:[%s357 + $0xf8] sm:$0xff]
        %v903 = vld [vmem:[%s357 + $0x100] sm:$0xff]
        %v904 = vld [vmem:[%s357 + $0x108] sm:$0xff]
        %s905 = scalar_lea.vmem %s1, 96
        %v906 = vld [vmem:[%s905] sm:$0xf]
        %v907 = vld [vmem:[%s905 + $0x4] sm:$0xf]
        %v908 = vld [vmem:[%s905 + $0x8] sm:$0xf]
        %v909 = vld [vmem:[%s905 + $0xc] sm:$0xf]
        %v910 = vld [vmem:[%s905 + $0x10] sm:$0xf]
        %v911 = vld [vmem:[%s905 + $0x14] sm:$0xf]
        %v912 = vld [vmem:[%s905 + $0x18] sm:$0xf]
        %v913 = vld [vmem:[%s905 + $0x1c] sm:$0xf]
        %v914 = vld [vmem:[%s905 + $0x20] sm:$0xf]
        %v915 = vld [vmem:[%s905 + $0x24] sm:$0xf]
        %v916 = vld [vmem:[%s905 + $0x28] sm:$0xf]
        %v917 = vld [vmem:[%s905 + $0x2c] sm:$0xf]
        %v918 = vld [vmem:[%s905 + $0x30] sm:$0xf]
        %v919 = vld [vmem:[%s905 + $0x34] sm:$0xf]
        %v920 = vld [vmem:[%s905 + $0x38] sm:$0xf]
        %v921 = vld [vmem:[%s905 + $0x3c] sm:$0xf]
        %v922 = vld [vmem:[%s905 + $0x40] sm:$0xf]
        %v923 = vld [vmem:[%s905 + $0x44] sm:$0xf]
        %v924 = vld [vmem:[%s905 + $0x48] sm:$0xf]
        %v925 = vld [vmem:[%s905 + $0x4c] sm:$0xf]
        %v926 = vld [vmem:[%s905 + $0x50] sm:$0xf]
        %v927 = vld [vmem:[%s905 + $0x54] sm:$0xf]
        %v928 = vld [vmem:[%s905 + $0x58] sm:$0xf]
        %v929 = vld [vmem:[%s905 + $0x5c] sm:$0xf]
        %v962 = vunpack.c.l.b16 %v873
        %v963 = vunpack.c.h.b16 %v873
        %v964 = vunpack.c.l.b16 %v874
        %v965 = vunpack.c.h.b16 %v874
        %v966 = vunpack.c.l.b16 %v875
        %v967 = vunpack.c.h.b16 %v875
        %v968 = vunpack.c.l.b16 %v876
        %v969 = vunpack.c.h.b16 %v876
        %v970 = vunpack.c.l.b16 %v877
        %v971 = vunpack.c.h.b16 %v877
        %v972 = vunpack.c.l.b16 %v878
        %v973 = vunpack.c.h.b16 %v878
        %v974 = vunpack.c.l.b16 %v879
        %v975 = vunpack.c.h.b16 %v879
        %v976 = vunpack.c.l.b16 %v880
        %v977 = vunpack.c.h.b16 %v880
        %v978 = vunpack.c.l.b16 %v881
        %v979 = vunpack.c.h.b16 %v881
        %v980 = vunpack.c.l.b16 %v882
        %v981 = vunpack.c.h.b16 %v882
        %v982 = vunpack.c.l.b16 %v883
        %v983 = vunpack.c.h.b16 %v883
        %v984 = vunpack.c.l.b16 %v884
        %v985 = vunpack.c.h.b16 %v884
        %v986 = vunpack.c.l.b16 %v885
        %v987 = vunpack.c.h.b16 %v885
        %v988 = vunpack.c.l.b16 %v886
        %v989 = vunpack.c.h.b16 %v886
        %v990 = vunpack.c.l.b16 %v887
        %v991 = vunpack.c.h.b16 %v887
        %v992 = vunpack.c.l.b16 %v888
        %v993 = vunpack.c.h.b16 %v888
        %v994 = vunpack.c.l.b16 %v889
        %v995 = vunpack.c.h.b16 %v889
        %v996 = vunpack.c.l.b16 %v890
        %v997 = vunpack.c.h.b16 %v890
        %v998 = vunpack.c.l.b16 %v891
        %v999 = vunpack.c.h.b16 %v891
        %v1000 = vunpack.c.l.b16 %v892
        %v1001 = vunpack.c.h.b16 %v892
        %v1002 = vunpack.c.l.b16 %v893
        %v1003 = vunpack.c.h.b16 %v893
        %v1004 = vunpack.c.l.b16 %v894
        %v1005 = vunpack.c.h.b16 %v894
        %v1006 = vunpack.c.l.b16 %v895
        %v1007 = vunpack.c.h.b16 %v895
        %v1008 = vunpack.c.l.b16 %v896
        %v1009 = vunpack.c.h.b16 %v896
        %v1010 = vunpack.c.l.b16 %v897
        %v1011 = vunpack.c.h.b16 %v897
        %v1012 = vunpack.c.l.b16 %v898
        %v1013 = vunpack.c.h.b16 %v898
        %v1014 = vunpack.c.l.b16 %v899
        %v1015 = vunpack.c.h.b16 %v899
        %v1016 = vunpack.c.l.b16 %v900
        %v1017 = vunpack.c.h.b16 %v900
        %v1018 = vunpack.c.l.b16 %v901
        %v1019 = vunpack.c.h.b16 %v901
        %v1020 = vunpack.c.l.b16 %v902
        %v1021 = vunpack.c.h.b16 %v902
        %v1022 = vunpack.c.l.b16 %v903
        %v1023 = vunpack.c.h.b16 %v903
        %v1024 = vunpack.c.l.b16 %v904
        %v1025 = vunpack.c.h.b16 %v904
        %v1026 = vpack.c.b16 %v964, %v962
        %v1027 = vpack.c.b16 %v965, %v963
        %v1028 = vpack.c.b16 %v968, %v966
        %v1029 = vpack.c.b16 %v969, %v967
        %v1030 = vpack.c.b16 %v972, %v970
        %v1031 = vpack.c.b16 %v973, %v971
        %v1032 = vpack.c.b16 %v976, %v974
        %v1033 = vpack.c.b16 %v977, %v975
        %v1034 = vpack.c.b16 %v980, %v978
        %v1035 = vpack.c.b16 %v981, %v979
        %v1036 = vpack.c.b16 %v984, %v982
        %v1037 = vpack.c.b16 %v985, %v983
        %v1038 = vpack.c.b16 %v988, %v986
        %v1039 = vpack.c.b16 %v989, %v987
        %v1040 = vpack.c.b16 %v992, %v990
        %v1041 = vpack.c.b16 %v993, %v991
        %v1042 = vpack.c.b16 %v996, %v994
        %v1043 = vpack.c.b16 %v997, %v995
        %v1044 = vpack.c.b16 %v1000, %v998
        %v1045 = vpack.c.b16 %v1001, %v999
        %v1046 = vpack.c.b16 %v1004, %v1002
        %v1047 = vpack.c.b16 %v1005, %v1003
        %v1048 = vpack.c.b16 %v1008, %v1006
        %v1049 = vpack.c.b16 %v1009, %v1007
        %v1050 = vpack.c.b16 %v1012, %v1010
        %v1051 = vpack.c.b16 %v1013, %v1011
        %v1052 = vpack.c.b16 %v1016, %v1014
        %v1053 = vpack.c.b16 %v1017, %v1015
        %v1054 = vpack.c.b16 %v1020, %v1018
        %v1055 = vpack.c.b16 %v1021, %v1019
        %v1056 = vpack.c.b16 %v1024, %v1022
        %v1057 = vpack.c.b16 %v1025, %v1023
        %v1098 = vunpack.c.l.b16 %v906
        %v1099 = vunpack.c.l.b16 %v907
        %v1100 = vunpack.c.l.b16 %v908
        %v1101 = vunpack.c.l.b16 %v909
        %v1102 = vunpack.c.l.b16 %v910
        %v1103 = vunpack.c.l.b16 %v911
        %v1104 = vunpack.c.l.b16 %v912
        %v1105 = vunpack.c.l.b16 %v913
        %v1106 = vunpack.c.l.b16 %v914
        %v1107 = vunpack.c.l.b16 %v915
        %v1108 = vunpack.c.l.b16 %v916
        %v1109 = vunpack.c.l.b16 %v917
        %v1110 = vunpack.c.l.b16 %v918
        %v1111 = vunpack.c.l.b16 %v919
        %v1112 = vunpack.c.l.b16 %v920
        %v1113 = vunpack.c.l.b16 %v921
        %v1114 = vunpack.c.l.b16 %v922
        %v1115 = vunpack.c.l.b16 %v923
        %v1116 = vunpack.c.l.b16 %v924
        %v1117 = vunpack.c.l.b16 %v925
        %v1118 = vunpack.c.l.b16 %v926
        %v1119 = vunpack.c.l.b16 %v927
        %v1120 = vunpack.c.l.b16 %v928
        %v1121 = vunpack.c.l.b16 %v929
        %v1122 = vpack.c.b16 %v1099, %v1098
        %v1123 = vpack.c.b16 %v1101, %v1100
        %v1124 = vpack.c.b16 %v1103, %v1102
        %v1125 = vpack.c.b16 %v1105, %v1104
        %v1126 = vpack.c.b16 %v1107, %v1106
        %v1127 = vpack.c.b16 %v1109, %v1108
        %v1128 = vpack.c.b16 %v1111, %v1110
        %v1129 = vpack.c.b16 %v1113, %v1112
        %v1130 = vpack.c.b16 %v1115, %v1114
        %v1131 = vpack.c.b16 %v1117, %v1116
        %v1132 = vpack.c.b16 %v1119, %v1118
        %v1133 = vpack.c.b16 %v1121, %v1120
        %v1147 = vsel %vm631, %v1027, 0
        %v1150 = vsel %vm631, %v1029, 0
        %v1153 = vsel %vm631, %v1031, 0
        %v1156 = vsel %vm631, %v1033, 0
        %v1159 = vsel %vm631, %v1035, 0
        %v1162 = vsel %vm631, %v1037, 0
        %v1165 = vsel %vm631, %v1039, 0
        %v1168 = vsel %vm631, %v1041, 0
        %v1171 = vsel %vm631, %v1043, 0
        %v1174 = vsel %vm631, %v1045, 0
        %v1177 = vsel %vm631, %v1047, 0
        %v1180 = vsel %vm631, %v1049, 0
        %v1183 = vsel %vm631, %v1051, 0
        %v1186 = vsel %vm631, %v1053, 0
        %v1189 = vsel %vm631, %v1055, 0
        %v1192 = vsel %vm631, %v1057, 0
        %1194 = vmatprep.subr.bf16.mxu0 0
        %1195 = vmatpush1.bf16.msra.mxu0 %v1122
        %1196 = vmatprep.subr.bf16.mxu0 0
        %1197 = vmatpush1.bf16.msra.mxu0 %v1123
        %1198 = vmatprep.subr.bf16.mxu0 0
        %1199 = vmatpush1.bf16.msra.mxu0 %v1124
        %1200 = vmatprep.subr.bf16.mxu0 0
        %1201 = vmatpush1.bf16.msra.mxu0 %v1125
        %1202 = vmatprep.subr.bf16.mxu0 0
        %1203 = vmatpush1.bf16.msra.mxu0 %v1126
        %1204 = vmatprep.subr.bf16.mxu0 0
        %1205 = vmatpush1.bf16.msra.mxu0 %v1127
        %1206 = vmatprep.subr.bf16.mxu0 0
        %1207 = vmatpush1.bf16.msra.mxu0 %v1128
        %1208 = vmatprep.subr.bf16.mxu0 0
        %1209 = vmatpush1.bf16.msra.mxu0 %v1129
        %1210 = vmatprep.subr.bf16.mxu0 0
        %1211 = vmatpush1.bf16.msra.mxu0 %v1130
        %1212 = vmatprep.subr.bf16.mxu0 0
        %1213 = vmatpush1.bf16.msra.mxu0 %v1131
        %1214 = vmatprep.subr.bf16.mxu0 0
        %1215 = vmatpush1.bf16.msra.mxu0 %v1132
        %1216 = vmatprep.subr.bf16.mxu0 0
        %1217 = vmatpush1.bf16.msra.mxu0 %v1133
        %1218 = vmatprep.subr.bf16.mxu0 0
        %1219 = vmatpush1.bf16.msra.mxu0 0
        %1220 = vmatprep.subr.bf16.mxu0 0
        %1221 = vmatpush1.bf16.msra.mxu0 0
        %1222 = vmatprep.subr.bf16.mxu0 0
        %1223 = vmatpush1.bf16.msra.mxu0 0
        %1224 = vmatprep.subr.bf16.mxu0 0
        %1225 = vmatpush1.bf16.msra.mxu0 0
        %1226 = vmatprep.mubr.bf16.mxu0 %v1147
        %1227 = vmatmul.mubr.bf16.gmra.mrb[0].mxu0 %v1026
        %v1228 = vpop.f32.mrb[0].mxu0
        %v1229 = vadd.f32 0.0, %v1228
        %v1230 = vpop.f32.mrb[0].mxu0
        %v1231 = vpop.f32.mrb[0].mxu0
        %v1232 = vadd.f32 0.0, %v1231
        %v1233 = vpop.f32.mrb[0].mxu0
        %1234 = vmatprep.mubr.bf16.mxu0 %v1150
        %1235 = vmatmul.mubr.bf16.gmra.mrb[0].mxu0 %v1028
        %v1236 = vpop.f32.mrb[0].mxu0
        %v1237 = vadd.f32 0.0, %v1236
        %v1238 = vpop.f32.mrb[0].mxu0
        %v1239 = vpop.f32.mrb[0].mxu0
        %v1240 = vadd.f32 0.0, %v1239
        %v1241 = vpop.f32.mrb[0].mxu0
        %1242 = vmatprep.mubr.bf16.mxu0 %v1153
        %1243 = vmatmul.mubr.bf16.gmra.mrb[0].mxu0 %v1030
        %v1244 = vpop.f32.mrb[0].mxu0
        %v1245 = vadd.f32 0.0, %v1244
        %v1246 = vpop.f32.mrb[0].mxu0
        %v1247 = vpop.f32.mrb[0].mxu0
        %v1248 = vadd.f32 0.0, %v1247
        %v1249 = vpop.f32.mrb[0].mxu0
        %1250 = vmatprep.mubr.bf16.mxu0 %v1156
        %1251 = vmatmul.mubr.bf16.gmra.mrb[0].mxu0 %v1032
        %v1252 = vpop.f32.mrb[0].mxu0
        %v1253 = vadd.f32 0.0, %v1252
        %v1254 = vpop.f32.mrb[0].mxu0
        %v1255 = vpop.f32.mrb[0].mxu0
        %v1256 = vadd.f32 0.0, %v1255
        %v1257 = vpop.f32.mrb[0].mxu0
        %1258 = vmatprep.mubr.bf16.mxu0 %v1159
        %1259 = vmatmul.mubr.bf16.gmra.mrb[0].mxu0 %v1034
        %v1260 = vpop.f32.mrb[0].mxu0
        %v1261 = vadd.f32 0.0, %v1260
        %v1262 = vpop.f32.mrb[0].mxu0
        %v1263 = vpop.f32.mrb[0].mxu0
        %v1264 = vadd.f32 0.0, %v1263
        %v1265 = vpop.f32.mrb[0].mxu0
        %1266 = vmatprep.mubr.bf16.mxu0 %v1162
        %1267 = vmatmul.mubr.bf16.gmra.mrb[0].mxu0 %v1036
        %v1268 = vpop.f32.mrb[0].mxu0
        %v1269 = vadd.f32 0.0, %v1268
        %v1270 = vpop.f32.mrb[0].mxu0
        %v1271 = vpop.f32.mrb[0].mxu0
        %v1272 = vadd.f32 0.0, %v1271
        %v1273 = vpop.f32.mrb[0].mxu0
        %1274 = vmatprep.mubr.bf16.mxu0 %v1165
        %1275 = vmatmul.mubr.bf16.gmra.mrb[0].mxu0 %v1038
        %v1276 = vpop.f32.mrb[0].mxu0
        %v1277 = vadd.f32 0.0, %v1276
        %v1278 = vpop.f32.mrb[0].mxu0
        %v1279 = vpop.f32.mrb[0].mxu0
        %v1280 = vadd.f32 0.0, %v1279
        %v1281 = vpop.f32.mrb[0].mxu0
        %1282 = vmatprep.mubr.bf16.mxu0 %v1168
        %1283 = vmatmul.mubr.bf16.gmra.mrb[0].mxu0 %v1040
        %v1284 = vpop.f32.mrb[0].mxu0
        %v1285 = vadd.f32 0.0, %v1284
        %v1286 = vpop.f32.mrb[0].mxu0
        %v1287 = vpop.f32.mrb[0].mxu0
        %v1288 = vadd.f32 0.0, %v1287
        %v1289 = vpop.f32.mrb[0].mxu0
        %1290 = vmatprep.mubr.bf16.mxu0 %v1171
        %1291 = vmatmul.mubr.bf16.gmra.mrb[0].mxu0 %v1042
        %v1292 = vpop.f32.mrb[0].mxu0
        %v1293 = vadd.f32 0.0, %v1292
        %v1294 = vpop.f32.mrb[0].mxu0
        %v1295 = vpop.f32.mrb[0].mxu0
        %v1296 = vadd.f32 0.0, %v1295
        %v1297 = vpop.f32.mrb[0].mxu0
        %1298 = vmatprep.mubr.bf16.mxu0 %v1174
        %1299 = vmatmul.mubr.bf16.gmra.mrb[0].mxu0 %v1044
        %v1300 = vpop.f32.mrb[0].mxu0
        %v1301 = vadd.f32 0.0, %v1300
        %v1302 = vpop.f32.mrb[0].mxu0
        %v1303 = vpop.f32.mrb[0].mxu0
        %v1304 = vadd.f32 0.0, %v1303
        %v1305 = vpop.f32.mrb[0].mxu0
        %1306 = vmatprep.mubr.bf16.mxu0 %v1177
        %1307 = vmatmul.mubr.bf16.gmra.mrb[0].mxu0 %v1046
        %v1308 = vpop.f32.mrb[0].mxu0
        %v1309 = vadd.f32 0.0, %v1308
        %v1310 = vpop.f32.mrb[0].mxu0
        %v1311 = vpop.f32.mrb[0].mxu0
        %v1312 = vadd.f32 0.0, %v1311
        %v1313 = vpop.f32.mrb[0].mxu0
        %1314 = vmatprep.mubr.bf16.mxu0 %v1180
        %1315 = vmatmul.mubr.bf16.gmra.mrb[0].mxu0 %v1048
        %v1316 = vpop.f32.mrb[0].mxu0
        %v1317 = vadd.f32 0.0, %v1316
        %v1318 = vpop.f32.mrb[0].mxu0
        %v1319 = vpop.f32.mrb[0].mxu0
        %v1320 = vadd.f32 0.0, %v1319
        %v1321 = vpop.f32.mrb[0].mxu0
        %1322 = vmatprep.mubr.bf16.mxu0 %v1183
        %1323 = vmatmul.mubr.bf16.gmra.mrb[0].mxu0 %v1050
        %v1324 = vpop.f32.mrb[0].mxu0
        %v1325 = vadd.f32 0.0, %v1324
        %v1326 = vpop.f32.mrb[0].mxu0
        %v1327 = vpop.f32.mrb[0].mxu0
        %v1328 = vadd.f32 0.0, %v1327
        %v1329 = vpop.f32.mrb[0].mxu0
        %1330 = vmatprep.mubr.bf16.mxu0 %v1186
        %1331 = vmatmul.mubr.bf16.gmra.mrb[0].mxu0 %v1052
        %v1332 = vpop.f32.mrb[0].mxu0
        %v1333 = vadd.f32 0.0, %v1332
        %v1334 = vpop.f32.mrb[0].mxu0
        %v1335 = vpop.f32.mrb[0].mxu0
        %v1336 = vadd.f32 0.0, %v1335
        %v1337 = vpop.f32.mrb[0].mxu0
        %1338 = vmatprep.mubr.bf16.mxu0 %v1189
        %1339 = vmatmul.mubr.bf16.gmra.mrb[0].mxu0 %v1054
        %v1340 = vpop.f32.mrb[0].mxu0
        %v1341 = vadd.f32 0.0, %v1340
        %v1342 = vpop.f32.mrb[0].mxu0
        %v1343 = vpop.f32.mrb[0].mxu0
        %v1344 = vadd.f32 0.0, %v1343
        %v1345 = vpop.f32.mrb[0].mxu0
        %1346 = vmatprep.mubr.bf16.mxu0 %v1192
        %1347 = vmatmul.mubr.bf16.gmra.mrb[0].mxu0 %v1056
        %v1348 = vpop.f32.mrb[0].mxu0
        %v1349 = vadd.f32 0.0, %v1348
        %v1350 = vpop.f32.mrb[0].mxu0
        %v1351 = vpop.f32.mrb[0].mxu0
        %v1352 = vadd.f32 0.0, %v1351
        %v1353 = vpop.f32.mrb[0].mxu0
        %1354 = vdwg.mxu0
        %v1355 = vld [vmem:[#allocation2] sm:$0xff]
        %v1356 = vld [vmem:[#allocation2 + $0x8] sm:$0xff]
        %v1357 = vld [vmem:[#allocation2 + $0x10] sm:$0xff]
        %v1358 = vld [vmem:[#allocation2 + $0x18] sm:$0xff]
        %v1359 = vld [vmem:[#allocation2 + $0x20] sm:$0xff]
        %v1360 = vld [vmem:[#allocation2 + $0x28] sm:$0xff]
        %v1361 = vld [vmem:[#allocation2 + $0x30] sm:$0xff]
        %v1362 = vld [vmem:[#allocation2 + $0x38] sm:$0xff]
        %v1363 = vld [vmem:[#allocation2 + $0x40] sm:$0xff]
        %v1364 = vld [vmem:[#allocation2 + $0x48] sm:$0xff]
        %v1365 = vld [vmem:[#allocation2 + $0x50] sm:$0xff]
        %v1366 = vld [vmem:[#allocation2 + $0x58] sm:$0xff]
        %v1367 = vld [vmem:[#allocation2 + $0x60] sm:$0xff]
        %v1368 = vld [vmem:[#allocation2 + $0x68] sm:$0xff]
        %v1369 = vld [vmem:[#allocation2 + $0x70] sm:$0xff]
        %v1370 = vld [vmem:[#allocation2 + $0x78] sm:$0xff]
        %v1371 = vld [vmem:[#allocation2 + $0x80] sm:$0xff]
        %v1372 = vld [vmem:[#allocation2 + $0x88] sm:$0xff]
        %v1373 = vld [vmem:[#allocation2 + $0x90] sm:$0xff]
        %v1374 = vld [vmem:[#allocation2 + $0x98] sm:$0xff]
        %v1375 = vld [vmem:[#allocation2 + $0xa0] sm:$0xff]
        %v1376 = vld [vmem:[#allocation2 + $0xa8] sm:$0xff]
        %v1377 = vld [vmem:[#allocation2 + $0xb0] sm:$0xff]
        %v1378 = vld [vmem:[#allocation2 + $0xb8] sm:$0xff]
        %v1379 = vld [vmem:[#allocation2 + $0xc0] sm:$0xff]
        %v1380 = vld [vmem:[#allocation2 + $0xc8] sm:$0xff]
        %v1381 = vld [vmem:[#allocation2 + $0xd0] sm:$0xff]
        %v1382 = vld [vmem:[#allocation2 + $0xd8] sm:$0xff]
        %v1383 = vld [vmem:[#allocation2 + $0xe0] sm:$0xff]
        %v1384 = vld [vmem:[#allocation2 + $0xe8] sm:$0xff]
        %v1385 = vld [vmem:[#allocation2 + $0xf0] sm:$0xff]
        %v1386 = vld [vmem:[#allocation2 + $0xf8] sm:$0xff]
        %v1387 = vadd.f32 %v1355, %v1229
        %v1388 = vadd.f32 %v1356, %v1232
        %v1389 = vadd.f32 %v1357, %v1237
        %v1390 = vadd.f32 %v1358, %v1240
        %v1391 = vadd.f32 %v1359, %v1245
        %v1392 = vadd.f32 %v1360, %v1248
        %v1393 = vadd.f32 %v1361, %v1253
        %v1394 = vadd.f32 %v1362, %v1256
        %v1395 = vadd.f32 %v1363, %v1261
        %v1396 = vadd.f32 %v1364, %v1264
        %v1397 = vadd.f32 %v1365, %v1269
        %v1398 = vadd.f32 %v1366, %v1272
        %v1399 = vadd.f32 %v1367, %v1277
        %v1400 = vadd.f32 %v1368, %v1280
        %v1401 = vadd.f32 %v1369, %v1285
        %v1402 = vadd.f32 %v1370, %v1288
        %v1403 = vadd.f32 %v1371, %v1293
        %v1404 = vadd.f32 %v1372, %v1296
        %v1405 = vadd.f32 %v1373, %v1301
        %v1406 = vadd.f32 %v1374, %v1304
        %v1407 = vadd.f32 %v1375, %v1309
        %v1408 = vadd.f32 %v1376, %v1312
        %v1409 = vadd.f32 %v1377, %v1317
        %v1410 = vadd.f32 %v1378, %v1320
        %v1411 = vadd.f32 %v1379, %v1325
        %v1412 = vadd.f32 %v1380, %v1328
        %v1413 = vadd.f32 %v1381, %v1333
        %v1414 = vadd.f32 %v1382, %v1336
        %v1415 = vadd.f32 %v1383, %v1341
        %v1416 = vadd.f32 %v1384, %v1344
        %v1417 = vadd.f32 %v1385, %v1349
        %v1418 = vadd.f32 %v1386, %v1352
        %1419 = vst [vmem:[#allocation2] sm:$0xff] %v1387
        %1420 = vst [vmem:[#allocation2 + $0x8] sm:$0xff] %v1388
        %1421 = vst [vmem:[#allocation2 + $0x10] sm:$0xff] %v1389
        %1422 = vst [vmem:[#allocation2 + $0x18] sm:$0xff] %v1390
        %1423 = vst [vmem:[#allocation2 + $0x20] sm:$0xff] %v1391
        %1424 = vst [vmem:[#allocation2 + $0x28] sm:$0xff] %v1392
        %1425 = vst [vmem:[#allocation2 + $0x30] sm:$0xff] %v1393
        %1426 = vst [vmem:[#allocation2 + $0x38] sm:$0xff] %v1394
        %1427 = vst [vmem:[#allocation2 + $0x40] sm:$0xff] %v1395
        %1428 = vst [vmem:[#allocation2 + $0x48] sm:$0xff] %v1396
        %1429 = vst [vmem:[#allocation2 + $0x50] sm:$0xff] %v1397
        %1430 = vst [vmem:[#allocation2 + $0x58] sm:$0xff] %v1398
        %1431 = vst [vmem:[#allocation2 + $0x60] sm:$0xff] %v1399
        %1432 = vst [vmem:[#allocation2 + $0x68] sm:$0xff] %v1400
        %1433 = vst [vmem:[#allocation2 + $0x70] sm:$0xff] %v1401
        %1434 = vst [vmem:[#allocation2 + $0x78] sm:$0xff] %v1402
        %1435 = vst [vmem:[#allocation2 + $0x80] sm:$0xff] %v1403
        %1436 = vst [vmem:[#allocation2 + $0x88] sm:$0xff] %v1404
        %1437 = vst [vmem:[#allocation2 + $0x90] sm:$0xff] %v1405
        %1438 = vst [vmem:[#allocation2 + $0x98] sm:$0xff] %v1406
        %1439 = vst [vmem:[#allocation2 + $0xa0] sm:$0xff] %v1407
        %1440 = vst [vmem:[#allocation2 + $0xa8] sm:$0xff] %v1408
        %1441 = vst [vmem:[#allocation2 + $0xb0] sm:$0xff] %v1409
        %1442 = vst [vmem:[#allocation2 + $0xb8] sm:$0xff] %v1410
        %1443 = vst [vmem:[#allocation2 + $0xc0] sm:$0xff] %v1411
        %1444 = vst [vmem:[#allocation2 + $0xc8] sm:$0xff] %v1412
        %1445 = vst [vmem:[#allocation2 + $0xd0] sm:$0xff] %v1413
        %1446 = vst [vmem:[#allocation2 + $0xd8] sm:$0xff] %v1414
        %1447 = vst [vmem:[#allocation2 + $0xe0] sm:$0xff] %v1415
        %1448 = vst [vmem:[#allocation2 + $0xe8] sm:$0xff] %v1416
        %1449 = vst [vmem:[#allocation2 + $0xf0] sm:$0xff] %v1417
        %1450 = vst [vmem:[#allocation2 + $0xf8] sm:$0xff] %v1418
        %v1451 = vld [vmem:[%s357 + $0x20] sm:$0xff]
        %v1452 = vld [vmem:[%s357 + $0x28] sm:$0xff]
        %v1453 = vld [vmem:[%s357 + $0x30] sm:$0xff]
        %v1454 = vld [vmem:[%s357 + $0x38] sm:$0xff]
        %v1455 = vld [vmem:[%s357 + $0x40] sm:$0xff]
        %v1456 = vld [vmem:[%s357 + $0x48] sm:$0xff]
        %v1457 = vld [vmem:[%s357 + $0x50] sm:$0xff]
        %v1458 = vld [vmem:[%s357 + $0x58] sm:$0xff]
        %v1459 = vld [vmem:[%s357 + $0x60] sm:$0xff]
        %v1460 = vld [vmem:[%s357 + $0x68] sm:$0xff]
        %v1461 = vld [vmem:[%s357 + $0x70] sm:$0xff]
        %v1462 = vld [vmem:[%s357 + $0x78] sm:$0xff]
        %v1463 = vld [vmem:[%s357 + $0x80] sm:$0xff]
        %v1464 = vld [vmem:[%s357 + $0x88] sm:$0xff]
        %v1465 = vld [vmem:[%s357 + $0x90] sm:$0xff]
        %v1466 = vld [vmem:[%s357 + $0x98] sm:$0xff]
        %v1467 = vld [vmem:[%s357 + $0xa0] sm:$0xff]
        %v1468 = vld [vmem:[%s357 + $0xa8] sm:$0xff]
        %v1469 = vld [vmem:[%s357 + $0xb0] sm:$0xff]
        %v1470 = vld [vmem:[%s357 + $0xb8] sm:$0xff]
        %v1471 = vld [vmem:[%s357 + $0xc0] sm:$0xff]
        %v1472 = vld [vmem:[%s357 + $0xc8] sm:$0xff]
        %v1473 = vld [vmem:[%s357 + $0xd0] sm:$0xff]
        %v1474 = vld [vmem:[%s357 + $0xd8] sm:$0xff]
        %v1475 = vld [vmem:[%s357 + $0xe0] sm:$0xff]
        %v1476 = vld [vmem:[%s357 + $0xe8] sm:$0xff]
        %v1477 = vld [vmem:[%s357 + $0xf0] sm:$0xff]
        %v1478 = vld [vmem:[%s357 + $0xf8] sm:$0xff]
        %v1479 = vld [vmem:[%s357 + $0x100] sm:$0xff]
        %v1480 = vld [vmem:[%s357 + $0x108] sm:$0xff]
        %v1481 = vld [vmem:[%s357 + $0x110] sm:$0xff]
        %v1482 = vld [vmem:[%s357 + $0x118] sm:$0xff]
        %s1483 = scalar_lea.vmem %s1, 192
        %v1484 = vld [vmem:[%s1483] sm:$0xf]
        %v1485 = vld [vmem:[%s1483 + $0x4] sm:$0xf]
        %v1486 = vld [vmem:[%s1483 + $0x8] sm:$0xf]
        %v1487 = vld [vmem:[%s1483 + $0xc] sm:$0xf]
        %v1488 = vld [vmem:[%s1483 + $0x10] sm:$0xf]
        %v1489 = vld [vmem:[%s1483 + $0x14] sm:$0xf]
        %v1490 = vld [vmem:[%s1483 + $0x18] sm:$0xf]
        %v1491 = vld [vmem:[%s1483 + $0x1c] sm:$0xf]
        %v1492 = vld [vmem:[%s1483 + $0x20] sm:$0xf]
        %v1493 = vld [vmem:[%s1483 + $0x24] sm:$0xf]
        %v1494 = vld [vmem:[%s1483 + $0x28] sm:$0xf]
        %v1495 = vld [vmem:[%s1483 + $0x2c] sm:$0xf]
        %v1496 = vld [vmem:[%s1483 + $0x30] sm:$0xf]
        %v1497 = vld [vmem:[%s1483 + $0x34] sm:$0xf]
        %v1498 = vld [vmem:[%s1483 + $0x38] sm:$0xf]
        %v1499 = vld [vmem:[%s1483 + $0x3c] sm:$0xf]
        %v1500 = vld [vmem:[%s1483 + $0x40] sm:$0xf]
        %v1501 = vld [vmem:[%s1483 + $0x44] sm:$0xf]
        %v1502 = vld [vmem:[%s1483 + $0x48] sm:$0xf]
        %v1503 = vld [vmem:[%s1483 + $0x4c] sm:$0xf]
        %v1504 = vld [vmem:[%s1483 + $0x50] sm:$0xf]
        %v1505 = vld [vmem:[%s1483 + $0x54] sm:$0xf]
        %v1506 = vld [vmem:[%s1483 + $0x58] sm:$0xf]
        %v1507 = vld [vmem:[%s1483 + $0x5c] sm:$0xf]
        %v1540 = vunpack.c.l.b16 %v1451
        %v1541 = vunpack.c.h.b16 %v1451
        %v1542 = vunpack.c.l.b16 %v1452
        %v1543 = vunpack.c.h.b16 %v1452
        %v1544 = vunpack.c.l.b16 %v1453
        %v1545 = vunpack.c.h.b16 %v1453
        %v1546 = vunpack.c.l.b16 %v1454
        %v1547 = vunpack.c.h.b16 %v1454
        %v1548 = vunpack.c.l.b16 %v1455
        %v1549 = vunpack.c.h.b16 %v1455
        %v1550 = vunpack.c.l.b16 %v1456
        %v1551 = vunpack.c.h.b16 %v1456
        %v1552 = vunpack.c.l.b16 %v1457
        %v1553 = vunpack.c.h.b16 %v1457
        %v1554 = vunpack.c.l.b16 %v1458
        %v1555 = vunpack.c.h.b16 %v1458
        %v1556 = vunpack.c.l.b16 %v1459
        %v1557 = vunpack.c.h.b16 %v1459
        %v1558 = vunpack.c.l.b16 %v1460
        %v1559 = vunpack.c.h.b16 %v1460
        %v1560 = vunpack.c.l.b16 %v1461
        %v1561 = vunpack.c.h.b16 %v1461
        %v1562 = vunpack.c.l.b16 %v1462
        %v1563 = vunpack.c.h.b16 %v1462
        %v1564 = vunpack.c.l.b16 %v1463
        %v1565 = vunpack.c.h.b16 %v1463
        %v1566 = vunpack.c.l.b16 %v1464
        %v1567 = vunpack.c.h.b16 %v1464
        %v1568 = vunpack.c.l.b16 %v1465
        %v1569 = vunpack.c.h.b16 %v1465
        %v1570 = vunpack.c.l.b16 %v1466
        %v1571 = vunpack.c.h.b16 %v1466
        %v1572 = vunpack.c.l.b16 %v1467
        %v1573 = vunpack.c.h.b16 %v1467
        %v1574 = vunpack.c.l.b16 %v1468
        %v1575 = vunpack.c.h.b16 %v1468
        %v1576 = vunpack.c.l.b16 %v1469
        %v1577 = vunpack.c.h.b16 %v1469
        %v1578 = vunpack.c.l.b16 %v1470
        %v1579 = vunpack.c.h.b16 %v1470
        %v1580 = vunpack.c.l.b16 %v1471
        %v1581 = vunpack.c.h.b16 %v1471
        %v1582 = vunpack.c.l.b16 %v1472
        %v1583 = vunpack.c.h.b16 %v1472
        %v1584 = vunpack.c.l.b16 %v1473
        %v1585 = vunpack.c.h.b16 %v1473
        %v1586 = vunpack.c.l.b16 %v1474
        %v1587 = vunpack.c.h.b16 %v1474
        %v1588 = vunpack.c.l.b16 %v1475
        %v1589 = vunpack.c.h.b16 %v1475
        %v1590 = vunpack.c.l.b16 %v1476
        %v1591 = vunpack.c.h.b16 %v1476
        %v1592 = vunpack.c.l.b16 %v1477
        %v1593 = vunpack.c.h.b16 %v1477
        %v1594 = vunpack.c.l.b16 %v1478
        %v1595 = vunpack.c.h.b16 %v1478
        %v1596 = vunpack.c.l.b16 %v1479
        %v1597 = vunpack.c.h.b16 %v1479
        %v1598 = vunpack.c.l.b16 %v1480
        %v1599 = vunpack.c.h.b16 %v1480
        %v1600 = vunpack.c.l.b16 %v1481
        %v1601 = vunpack.c.h.b16 %v1481
        %v1602 = vunpack.c.l.b16 %v1482
        %v1603 = vunpack.c.h.b16 %v1482
        %v1604 = vpack.c.b16 %v1542, %v1540
        %v1605 = vpack.c.b16 %v1543, %v1541
        %v1606 = vpack.c.b16 %v1546, %v1544
        %v1607 = vpack.c.b16 %v1547, %v1545
        %v1608 = vpack.c.b16 %v1550, %v1548
        %v1609 = vpack.c.b16 %v1551, %v1549
        %v1610 = vpack.c.b16 %v1554, %v1552
        %v1611 = vpack.c.b16 %v1555, %v1553
        %v1612 = vpack.c.b16 %v1558, %v1556
        %v1613 = vpack.c.b16 %v1559, %v1557
        %v1614 = vpack.c.b16 %v1562, %v1560
        %v1615 = vpack.c.b16 %v1563, %v1561
        %v1616 = vpack.c.b16 %v1566, %v1564
        %v1617 = vpack.c.b16 %v1567, %v1565
        %v1618 = vpack.c.b16 %v1570, %v1568
        %v1619 = vpack.c.b16 %v1571, %v1569
        %v1620 = vpack.c.b16 %v1574, %v1572
        %v1621 = vpack.c.b16 %v1575, %v1573
        %v1622 = vpack.c.b16 %v1578, %v1576
        %v1623 = vpack.c.b16 %v1579, %v1577
        %v1624 = vpack.c.b16 %v1582, %v1580
        %v1625 = vpack.c.b16 %v1583, %v1581
        %v1626 = vpack.c.b16 %v1586, %v1584
        %v1627 = vpack.c.b16 %v1587, %v1585
        %v1628 = vpack.c.b16 %v1590, %v1588
        %v1629 = vpack.c.b16 %v1591, %v1589
        %v1630 = vpack.c.b16 %v1594, %v1592
        %v1631 = vpack.c.b16 %v1595, %v1593
        %v1632 = vpack.c.b16 %v1598, %v1596
        %v1633 = vpack.c.b16 %v1599, %v1597
        %v1634 = vpack.c.b16 %v1602, %v1600
        %v1635 = vpack.c.b16 %v1603, %v1601
        %v1676 = vunpack.c.l.b16 %v1484
        %v1677 = vunpack.c.l.b16 %v1485
        %v1678 = vunpack.c.l.b16 %v1486
        %v1679 = vunpack.c.l.b16 %v1487
        %v1680 = vunpack.c.l.b16 %v1488
        %v1681 = vunpack.c.l.b16 %v1489
        %v1682 = vunpack.c.l.b16 %v1490
        %v1683 = vunpack.c.l.b16 %v1491
        %v1684 = vunpack.c.l.b16 %v1492
        %v1685 = vunpack.c.l.b16 %v1493
        %v1686 = vunpack.c.l.b16 %v1494
        %v1687 = vunpack.c.l.b16 %v1495
        %v1688 = vunpack.c.l.b16 %v1496
        %v1689 = vunpack.c.l.b16 %v1497
        %v1690 = vunpack.c.l.b16 %v1498
        %v1691 = vunpack.c.l.b16 %v1499
        %v1692 = vunpack.c.l.b16 %v1500
        %v1693 = vunpack.c.l.b16 %v1501
        %v1694 = vunpack.c.l.b16 %v1502
        %v1695 = vunpack.c.l.b16 %v1503
        %v1696 = vunpack.c.l.b16 %v1504
        %v1697 = vunpack.c.l.b16 %v1505
        %v1698 = vunpack.c.l.b16 %v1506
        %v1699 = vunpack.c.l.b16 %v1507
        %v1700 = vpack.c.b16 %v1677, %v1676
        %v1701 = vpack.c.b16 %v1679, %v1678
        %v1702 = vpack.c.b16 %v1681, %v1680
        %v1703 = vpack.c.b16 %v1683, %v1682
        %v1704 = vpack.c.b16 %v1685, %v1684
        %v1705 = vpack.c.b16 %v1687, %v1686
        %v1706 = vpack.c.b16 %v1689, %v1688
        %v1707 = vpack.c.b16 %v1691, %v1690
        %v1708 = vpack.c.b16 %v1693, %v1692
        %v1709 = vpack.c.b16 %v1695, %v1694
        %v1710 = vpack.c.b16 %v1697, %v1696
        %v1711 = vpack.c.b16 %v1699, %v1698
        %v1725 = vsel %vm631, %v1605, 0
        %v1728 = vsel %vm631, %v1607, 0
        %v1731 = vsel %vm631, %v1609, 0
        %v1734 = vsel %vm631, %v1611, 0
        %v1737 = vsel %vm631, %v1613, 0
        %v1740 = vsel %vm631, %v1615, 0
        %v1743 = vsel %vm631, %v1617, 0
        %v1746 = vsel %vm631, %v1619, 0
        %v1749 = vsel %vm631, %v1621, 0
        %v1752 = vsel %vm631, %v1623, 0
        %v1755 = vsel %vm631, %v1625, 0
        %v1758 = vsel %vm631, %v1627, 0
        %v1761 = vsel %vm631, %v1629, 0
        %v1764 = vsel %vm631, %v1631, 0
        %v1767 = vsel %vm631, %v1633, 0
        %v1770 = vsel %vm631, %v1635, 0
        %1772 = vmatprep.subr.bf16.mxu0 0
        %1773 = vmatpush1.bf16.msra.mxu0 %v1700
        %1774 = vmatprep.subr.bf16.mxu0 0
        %1775 = vmatpush1.bf16.msra.mxu0 %v1701
        %1776 = vmatprep.subr.bf16.mxu0 0
        %1777 = vmatpush1.bf16.msra.mxu0 %v1702
        %1778 = vmatprep.subr.bf16.mxu0 0
        %1779 = vmatpush1.bf16.msra.mxu0 %v1703
        %1780 = vmatprep.subr.bf16.mxu0 0
        %1781 = vmatpush1.bf16.msra.mxu0 %v1704
        %1782 = vmatprep.subr.bf16.mxu0 0
        %1783 = vmatpush1.bf16.msra.mxu0 %v1705
        %1784 = vmatprep.subr.bf16.mxu0 0
        %1785 = vmatpush1.bf16.msra.mxu0 %v1706
        %1786 = vmatprep.subr.bf16.mxu0 0
        %1787 = vmatpush1.bf16.msra.mxu0 %v1707
        %1788 = vmatprep.subr.bf16.mxu0 0
        %1789 = vmatpush1.bf16.msra.mxu0 %v1708
        %1790 = vmatprep.subr.bf16.mxu0 0
        %1791 = vmatpush1.bf16.msra.mxu0 %v1709
        %1792 = vmatprep.subr.bf16.mxu0 0
        %1793 = vmatpush1.bf16.msra.mxu0 %v1710
        %1794 = vmatprep.subr.bf16.mxu0 0
        %1795 = vmatpush1.bf16.msra.mxu0 %v1711
        %1796 = vmatprep.subr.bf16.mxu0 0
        %1797 = vmatpush1.bf16.msra.mxu0 0
        %1798 = vmatprep.subr.bf16.mxu0 0
        %1799 = vmatpush1.bf16.msra.mxu0 0
        %1800 = vmatprep.subr.bf16.mxu0 0
        %1801 = vmatpush1.bf16.msra.mxu0 0
        %1802 = vmatprep.subr.bf16.mxu0 0
        %1803 = vmatpush1.bf16.msra.mxu0 0
        %1804 = vmatprep.mubr.bf16.mxu0 %v1725
        %1805 = vmatmul.mubr.bf16.gmra.mrb[0].mxu0 %v1604
        %v1806 = vpop.f32.mrb[0].mxu0
        %v1807 = vadd.f32 0.0, %v1806
        %v1808 = vpop.f32.mrb[0].mxu0
        %v1809 = vpop.f32.mrb[0].mxu0
        %v1810 = vadd.f32 0.0, %v1809
        %v1811 = vpop.f32.mrb[0].mxu0
        %1812 = vmatprep.mubr.bf16.mxu0 %v1728
        %1813 = vmatmul.mubr.bf16.gmra.mrb[0].mxu0 %v1606
        %v1814 = vpop.f32.mrb[0].mxu0
        %v1815 = vadd.f32 0.0, %v1814
        %v1816 = vpop.f32.mrb[0].mxu0
        %v1817 = vpop.f32.mrb[0].mxu0
        %v1818 = vadd.f32 0.0, %v1817
        %v1819 = vpop.f32.mrb[0].mxu0
        %1820 = vmatprep.mubr.bf16.mxu0 %v1731
        %1821 = vmatmul.mubr.bf16.gmra.mrb[0].mxu0 %v1608
        %v1822 = vpop.f32.mrb[0].mxu0
        %v1823 = vadd.f32 0.0, %v1822
        %v1824 = vpop.f32.mrb[0].mxu0
        %v1825 = vpop.f32.mrb[0].mxu0
        %v1826 = vadd.f32 0.0, %v1825
        %v1827 = vpop.f32.mrb[0].mxu0
        %1828 = vmatprep.mubr.bf16.mxu0 %v1734
        %1829 = vmatmul.mubr.bf16.gmra.mrb[0].mxu0 %v1610
        %v1830 = vpop.f32.mrb[0].mxu0
        %v1831 = vadd.f32 0.0, %v1830
        %v1832 = vpop.f32.mrb[0].mxu0
        %v1833 = vpop.f32.mrb[0].mxu0
        %v1834 = vadd.f32 0.0, %v1833
        %v1835 = vpop.f32.mrb[0].mxu0
        %1836 = vmatprep.mubr.bf16.mxu0 %v1737
        %1837 = vmatmul.mubr.bf16.gmra.mrb[0].mxu0 %v1612
        %v1838 = vpop.f32.mrb[0].mxu0
        %v1839 = vadd.f32 0.0, %v1838
        %v1840 = vpop.f32.mrb[0].mxu0
        %v1841 = vpop.f32.mrb[0].mxu0
        %v1842 = vadd.f32 0.0, %v1841
        %v1843 = vpop.f32.mrb[0].mxu0
        %1844 = vmatprep.mubr.bf16.mxu0 %v1740
        %1845 = vmatmul.mubr.bf16.gmra.mrb[0].mxu0 %v1614
        %v1846 = vpop.f32.mrb[0].mxu0
        %v1847 = vadd.f32 0.0, %v1846
        %v1848 = vpop.f32.mrb[0].mxu0
        %v1849 = vpop.f32.mrb[0].mxu0
        %v1850 = vadd.f32 0.0, %v1849
        %v1851 = vpop.f32.mrb[0].mxu0
        %1852 = vmatprep.mubr.bf16.mxu0 %v1743
        %1853 = vmatmul.mubr.bf16.gmra.mrb[0].mxu0 %v1616
        %v1854 = vpop.f32.mrb[0].mxu0
        %v1855 = vadd.f32 0.0, %v1854
        %v1856 = vpop.f32.mrb[0].mxu0
        %v1857 = vpop.f32.mrb[0].mxu0
        %v1858 = vadd.f32 0.0, %v1857
        %v1859 = vpop.f32.mrb[0].mxu0
        %1860 = vmatprep.mubr.bf16.mxu0 %v1746
        %1861 = vmatmul.mubr.bf16.gmra.mrb[0].mxu0 %v1618
        %v1862 = vpop.f32.mrb[0].mxu0
        %v1863 = vadd.f32 0.0, %v1862
        %v1864 = vpop.f32.mrb[0].mxu0
        %v1865 = vpop.f32.mrb[0].mxu0
        %v1866 = vadd.f32 0.0, %v1865
        %v1867 = vpop.f32.mrb[0].mxu0
        %1868 = vmatprep.mubr.bf16.mxu0 %v1749
        %1869 = vmatmul.mubr.bf16.gmra.mrb[0].mxu0 %v1620
        %v1870 = vpop.f32.mrb[0].mxu0
        %v1871 = vadd.f32 0.0, %v1870
        %v1872 = vpop.f32.mrb[0].mxu0
        %v1873 = vpop.f32.mrb[0].mxu0
        %v1874 = vadd.f32 0.0, %v1873
        %v1875 = vpop.f32.mrb[0].mxu0
        %1876 = vmatprep.mubr.bf16.mxu0 %v1752
        %1877 = vmatmul.mubr.bf16.gmra.mrb[0].mxu0 %v1622
        %v1878 = vpop.f32.mrb[0].mxu0
        %v1879 = vadd.f32 0.0, %v1878
        %v1880 = vpop.f32.mrb[0].mxu0
        %v1881 = vpop.f32.mrb[0].mxu0
        %v1882 = vadd.f32 0.0, %v1881
        %v1883 = vpop.f32.mrb[0].mxu0
        %1884 = vmatprep.mubr.bf16.mxu0 %v1755
        %1885 = vmatmul.mubr.bf16.gmra.mrb[0].mxu0 %v1624
        %v1886 = vpop.f32.mrb[0].mxu0
        %v1887 = vadd.f32 0.0, %v1886
        %v1888 = vpop.f32.mrb[0].mxu0
        %v1889 = vpop.f32.mrb[0].mxu0
        %v1890 = vadd.f32 0.0, %v1889
        %v1891 = vpop.f32.mrb[0].mxu0
        %1892 = vmatprep.mubr.bf16.mxu0 %v1758
        %1893 = vmatmul.mubr.bf16.gmra.mrb[0].mxu0 %v1626
        %v1894 = vpop.f32.mrb[0].mxu0
        %v1895 = vadd.f32 0.0, %v1894
        %v1896 = vpop.f32.mrb[0].mxu0
        %v1897 = vpop.f32.mrb[0].mxu0
        %v1898 = vadd.f32 0.0, %v1897
        %v1899 = vpop.f32.mrb[0].mxu0
        %1900 = vmatprep.mubr.bf16.mxu0 %v1761
        %1901 = vmatmul.mubr.bf16.gmra.mrb[0].mxu0 %v1628
        %v1902 = vpop.f32.mrb[0].mxu0
        %v1903 = vadd.f32 0.0, %v1902
        %v1904 = vpop.f32.mrb[0].mxu0
        %v1905 = vpop.f32.mrb[0].mxu0
        %v1906 = vadd.f32 0.0, %v1905
        %v1907 = vpop.f32.mrb[0].mxu0
        %1908 = vmatprep.mubr.bf16.mxu0 %v1764
        %1909 = vmatmul.mubr.bf16.gmra.mrb[0].mxu0 %v1630
        %v1910 = vpop.f32.mrb[0].mxu0
        %v1911 = vadd.f32 0.0, %v1910
        %v1912 = vpop.f32.mrb[0].mxu0
        %v1913 = vpop.f32.mrb[0].mxu0
        %v1914 = vadd.f32 0.0, %v1913
        %v1915 = vpop.f32.mrb[0].mxu0
        %1916 = vmatprep.mubr.bf16.mxu0 %v1767
        %1917 = vmatmul.mubr.bf16.gmra.mrb[0].mxu0 %v1632
        %v1918 = vpop.f32.mrb[0].mxu0
        %v1919 = vadd.f32 0.0, %v1918
        %v1920 = vpop.f32.mrb[0].mxu0
        %v1921 = vpop.f32.mrb[0].mxu0
        %v1922 = vadd.f32 0.0, %v1921
        %v1923 = vpop.f32.mrb[0].mxu0
        %1924 = vmatprep.mubr.bf16.mxu0 %v1770
        %1925 = vmatmul.mubr.bf16.gmra.mrb[0].mxu0 %v1634
        %v1926 = vpop.f32.mrb[0].mxu0
        %v1927 = vadd.f32 0.0, %v1926
        %v1928 = vpop.f32.mrb[0].mxu0
        %v1929 = vpop.f32.mrb[0].mxu0
        %v1930 = vadd.f32 0.0, %v1929
        %v1931 = vpop.f32.mrb[0].mxu0
        %1932 = vdwg.mxu0
        %v1933 = vld [vmem:[#allocation2] sm:$0xff]
        %v1934 = vld [vmem:[#allocation2 + $0x8] sm:$0xff]
        %v1935 = vld [vmem:[#allocation2 + $0x10] sm:$0xff]
        %v1936 = vld [vmem:[#allocation2 + $0x18] sm:$0xff]
        %v1937 = vld [vmem:[#allocation2 + $0x20] sm:$0xff]
        %v1938 = vld [vmem:[#allocation2 + $0x28] sm:$0xff]
        %v1939 = vld [vmem:[#allocation2 + $0x30] sm:$0xff]
        %v1940 = vld [vmem:[#allocation2 + $0x38] sm:$0xff]
        %v1941 = vld [vmem:[#allocation2 + $0x40] sm:$0xff]
        %v1942 = vld [vmem:[#allocation2 + $0x48] sm:$0xff]
        %v1943 = vld [vmem:[#allocation2 + $0x50] sm:$0xff]
        %v1944 = vld [vmem:[#allocation2 + $0x58] sm:$0xff]
        %v1945 = vld [vmem:[#allocation2 + $0x60] sm:$0xff]
        %v1946 = vld [vmem:[#allocation2 + $0x68] sm:$0xff]
        %v1947 = vld [vmem:[#allocation2 + $0x70] sm:$0xff]
        %v1948 = vld [vmem:[#allocation2 + $0x78] sm:$0xff]
        %v1949 = vld [vmem:[#allocation2 + $0x80] sm:$0xff]
        %v1950 = vld [vmem:[#allocation2 + $0x88] sm:$0xff]
        %v1951 = vld [vmem:[#allocation2 + $0x90] sm:$0xff]
        %v1952 = vld [vmem:[#allocation2 + $0x98] sm:$0xff]
        %v1953 = vld [vmem:[#allocation2 + $0xa0] sm:$0xff]
        %v1954 = vld [vmem:[#allocation2 + $0xa8] sm:$0xff]
        %v1955 = vld [vmem:[#allocation2 + $0xb0] sm:$0xff]
        %v1956 = vld [vmem:[#allocation2 + $0xb8] sm:$0xff]
        %v1957 = vld [vmem:[#allocation2 + $0xc0] sm:$0xff]
        %v1958 = vld [vmem:[#allocation2 + $0xc8] sm:$0xff]
        %v1959 = vld [vmem:[#allocation2 + $0xd0] sm:$0xff]
        %v1960 = vld [vmem:[#allocation2 + $0xd8] sm:$0xff]
        %v1961 = vld [vmem:[#allocation2 + $0xe0] sm:$0xff]
        %v1962 = vld [vmem:[#allocation2 + $0xe8] sm:$0xff]
        %v1963 = vld [vmem:[#allocation2 + $0xf0] sm:$0xff]
        %v1964 = vld [vmem:[#allocation2 + $0xf8] sm:$0xff]
        %v1965 = vadd.f32 %v1933, %v1807
        %v1966 = vadd.f32 %v1934, %v1810
        %v1967 = vadd.f32 %v1935, %v1815
        %v1968 = vadd.f32 %v1936, %v1818
        %v1969 = vadd.f32 %v1937, %v1823
        %v1970 = vadd.f32 %v1938, %v1826
        %v1971 = vadd.f32 %v1939, %v1831
        %v1972 = vadd.f32 %v1940, %v1834
        %v1973 = vadd.f32 %v1941, %v1839
        %v1974 = vadd.f32 %v1942, %v1842
        %v1975 = vadd.f32 %v1943, %v1847
        %v1976 = vadd.f32 %v1944, %v1850
        %v1977 = vadd.f32 %v1945, %v1855
        %v1978 = vadd.f32 %v1946, %v1858
        %v1979 = vadd.f32 %v1947, %v1863
        %v1980 = vadd.f32 %v1948, %v1866
        %v1981 = vadd.f32 %v1949, %v1871
        %v1982 = vadd.f32 %v1950, %v1874
        %v1983 = vadd.f32 %v1951, %v1879
        %v1984 = vadd.f32 %v1952, %v1882
        %v1985 = vadd.f32 %v1953, %v1887
        %v1986 = vadd.f32 %v1954, %v1890
        %v1987 = vadd.f32 %v1955, %v1895
        %v1988 = vadd.f32 %v1956, %v1898
        %v1989 = vadd.f32 %v1957, %v1903
        %v1990 = vadd.f32 %v1958, %v1906
        %v1991 = vadd.f32 %v1959, %v1911
        %v1992 = vadd.f32 %v1960, %v1914
        %v1993 = vadd.f32 %v1961, %v1919
        %v1994 = vadd.f32 %v1962, %v1922
        %v1995 = vadd.f32 %v1963, %v1927
        %v1996 = vadd.f32 %v1964, %v1930
        %1997 = vst [vmem:[#allocation2] sm:$0xff] %v1965
        %1998 = vst [vmem:[#allocation2 + $0x8] sm:$0xff] %v1966
        %1999 = vst [vmem:[#allocation2 + $0x10] sm:$0xff] %v1967
        %2000 = vst [vmem:[#allocation2 + $0x18] sm:$0xff] %v1968
        %2001 = vst [vmem:[#allocation2 + $0x20] sm:$0xff] %v1969
        %2002 = vst [vmem:[#allocation2 + $0x28] sm:$0xff] %v1970
        %2003 = vst [vmem:[#allocation2 + $0x30] sm:$0xff] %v1971
        %2004 = vst [vmem:[#allocation2 + $0x38] sm:$0xff] %v1972
        %2005 = vst [vmem:[#allocation2 + $0x40] sm:$0xff] %v1973
        %2006 = vst [vmem:[#allocation2 + $0x48] sm:$0xff] %v1974
        %2007 = vst [vmem:[#allocation2 + $0x50] sm:$0xff] %v1975
        %2008 = vst [vmem:[#allocation2 + $0x58] sm:$0xff] %v1976
        %2009 = vst [vmem:[#allocation2 + $0x60] sm:$0xff] %v1977
        %2010 = vst [vmem:[#allocation2 + $0x68] sm:$0xff] %v1978
        %2011 = vst [vmem:[#allocation2 + $0x70] sm:$0xff] %v1979
        %2012 = vst [vmem:[#allocation2 + $0x78] sm:$0xff] %v1980
        %2013 = vst [vmem:[#allocation2 + $0x80] sm:$0xff] %v1981
        %2014 = vst [vmem:[#allocation2 + $0x88] sm:$0xff] %v1982
        %2015 = vst [vmem:[#allocation2 + $0x90] sm:$0xff] %v1983
        %2016 = vst [vmem:[#allocation2 + $0x98] sm:$0xff] %v1984
        %2017 = vst [vmem:[#allocation2 + $0xa0] sm:$0xff] %v1985
        %2018 = vst [vmem:[#allocation2 + $0xa8] sm:$0xff] %v1986
        %2019 = vst [vmem:[#allocation2 + $0xb0] sm:$0xff] %v1987
        %2020 = vst [vmem:[#allocation2 + $0xb8] sm:$0xff] %v1988
        %2021 = vst [vmem:[#allocation2 + $0xc0] sm:$0xff] %v1989
        %2022 = vst [vmem:[#allocation2 + $0xc8] sm:$0xff] %v1990
        %2023 = vst [vmem:[#allocation2 + $0xd0] sm:$0xff] %v1991
        %2024 = vst [vmem:[#allocation2 + $0xd8] sm:$0xff] %v1992
        %2025 = vst [vmem:[#allocation2 + $0xe0] sm:$0xff] %v1993
        %2026 = vst [vmem:[#allocation2 + $0xe8] sm:$0xff] %v1994
        %2027 = vst [vmem:[#allocation2 + $0xf0] sm:$0xff] %v1995
        %2028 = vst [vmem:[#allocation2 + $0xf8] sm:$0xff] %v1996
        %v2029 = vld [vmem:[#allocation2] sm:$0xff]
        %v2030 = vld [vmem:[#allocation2 + $0x8] sm:$0xff]
        %v2031 = vld [vmem:[#allocation2 + $0x10] sm:$0xff]
        %v2032 = vld [vmem:[#allocation2 + $0x18] sm:$0xff]
        %v2033 = vld [vmem:[#allocation2 + $0x20] sm:$0xff]
        %v2034 = vld [vmem:[#allocation2 + $0x28] sm:$0xff]
        %v2035 = vld [vmem:[#allocation2 + $0x30] sm:$0xff]
        %v2036 = vld [vmem:[#allocation2 + $0x38] sm:$0xff]
        %v2037 = vld [vmem:[#allocation2 + $0x40] sm:$0xff]
        %v2038 = vld [vmem:[#allocation2 + $0x48] sm:$0xff]
        %v2039 = vld [vmem:[#allocation2 + $0x50] sm:$0xff]
        %v2040 = vld [vmem:[#allocation2 + $0x58] sm:$0xff]
        %v2041 = vld [vmem:[#allocation2 + $0x60] sm:$0xff]
        %v2042 = vld [vmem:[#allocation2 + $0x68] sm:$0xff]
        %v2043 = vld [vmem:[#allocation2 + $0x70] sm:$0xff]
        %v2044 = vld [vmem:[#allocation2 + $0x78] sm:$0xff]
        %v2045 = vld [vmem:[#allocation2 + $0x80] sm:$0xff]
        %v2046 = vld [vmem:[#allocation2 + $0x88] sm:$0xff]
        %v2047 = vld [vmem:[#allocation2 + $0x90] sm:$0xff]
        %v2048 = vld [vmem:[#allocation2 + $0x98] sm:$0xff]
        %v2049 = vld [vmem:[#allocation2 + $0xa0] sm:$0xff]
        %v2050 = vld [vmem:[#allocation2 + $0xa8] sm:$0xff]
        %v2051 = vld [vmem:[#allocation2 + $0xb0] sm:$0xff]
        %v2052 = vld [vmem:[#allocation2 + $0xb8] sm:$0xff]
        %v2053 = vld [vmem:[#allocation2 + $0xc0] sm:$0xff]
        %v2054 = vld [vmem:[#allocation2 + $0xc8] sm:$0xff]
        %v2055 = vld [vmem:[#allocation2 + $0xd0] sm:$0xff]
        %v2056 = vld [vmem:[#allocation2 + $0xd8] sm:$0xff]
        %v2057 = vld [vmem:[#allocation2 + $0xe0] sm:$0xff]
        %v2058 = vld [vmem:[#allocation2 + $0xe8] sm:$0xff]
        %v2059 = vld [vmem:[#allocation2 + $0xf0] sm:$0xff]
        %v2060 = vld [vmem:[#allocation2 + $0xf8] sm:$0xff]
        %v2061 = vld [vmem:[%s2] sm:$0x1]
        %v2063 = vlaneseq
        %v2064 = vshrl.u32 %v2063, 7
        %v2065 = vsub.s32 0, %v2064
        %v2066 = vrot.slane %v2061, %v2065
        %v2068 = vadd.f32 %v2029, %v2066
        %v2069 = vadd.f32 %v2030, %v2066
        %v2070 = vadd.f32 %v2031, %v2066
        %v2071 = vadd.f32 %v2032, %v2066
        %v2072 = vadd.f32 %v2033, %v2066
        %v2073 = vadd.f32 %v2034, %v2066
        %v2074 = vadd.f32 %v2035, %v2066
        %v2075 = vadd.f32 %v2036, %v2066
        %v2076 = vadd.f32 %v2037, %v2066
        %v2077 = vadd.f32 %v2038, %v2066
        %v2078 = vadd.f32 %v2039, %v2066
        %v2079 = vadd.f32 %v2040, %v2066
        %v2080 = vadd.f32 %v2041, %v2066
        %v2081 = vadd.f32 %v2042, %v2066
        %v2082 = vadd.f32 %v2043, %v2066
        %v2083 = vadd.f32 %v2044, %v2066
        %v2084 = vadd.f32 %v2045, %v2066
        %v2085 = vadd.f32 %v2046, %v2066
        %v2086 = vadd.f32 %v2047, %v2066
        %v2087 = vadd.f32 %v2048, %v2066
        %v2088 = vadd.f32 %v2049, %v2066
        %v2089 = vadd.f32 %v2050, %v2066
        %v2090 = vadd.f32 %v2051, %v2066
        %v2091 = vadd.f32 %v2052, %v2066
        %v2092 = vadd.f32 %v2053, %v2066
        %v2093 = vadd.f32 %v2054, %v2066
        %v2094 = vadd.f32 %v2055, %v2066
        %v2095 = vadd.f32 %v2056, %v2066
        %v2096 = vadd.f32 %v2057, %v2066
        %v2097 = vadd.f32 %v2058, %v2066
        %v2098 = vadd.f32 %v2059, %v2066
        %v2099 = vadd.f32 %v2060, %v2066
        %v2100 = vmul.f32 %v2068, 0.2
        %v2101 = vmul.f32 %v2069, 0.2
        %v2102 = vmul.f32 %v2070, 0.2
        %v2103 = vmul.f32 %v2071, 0.2
        %v2104 = vmul.f32 %v2072, 0.2
        %v2105 = vmul.f32 %v2073, 0.2
        %v2106 = vmul.f32 %v2074, 0.2
        %v2107 = vmul.f32 %v2075, 0.2
        %v2108 = vmul.f32 %v2076, 0.2
        %v2109 = vmul.f32 %v2077, 0.2
        %v2110 = vmul.f32 %v2078, 0.2
        %v2111 = vmul.f32 %v2079, 0.2
        %v2112 = vmul.f32 %v2080, 0.2
        %v2113 = vmul.f32 %v2081, 0.2
        %v2114 = vmul.f32 %v2082, 0.2
        %v2115 = vmul.f32 %v2083, 0.2
        %v2116 = vmul.f32 %v2084, 0.2
        %v2117 = vmul.f32 %v2085, 0.2
        %v2118 = vmul.f32 %v2086, 0.2
        %v2119 = vmul.f32 %v2087, 0.2
        %v2120 = vmul.f32 %v2088, 0.2
        %v2121 = vmul.f32 %v2089, 0.2
        %v2122 = vmul.f32 %v2090, 0.2
        %v2123 = vmul.f32 %v2091, 0.2
        %v2124 = vmul.f32 %v2092, 0.2
        %v2125 = vmul.f32 %v2093, 0.2
        %v2126 = vmul.f32 %v2094, 0.2
        %v2127 = vmul.f32 %v2095, 0.2
        %v2128 = vmul.f32 %v2096, 0.2
        %v2129 = vmul.f32 %v2097, 0.2
        %v2130 = vmul.f32 %v2098, 0.2
        %v2131 = vmul.f32 %v2099, 0.2
        %v2132 = vmax.f32 %v2068, %v2100
        %v2133 = vmax.f32 %v2069, %v2101
        %v2134 = vmax.f32 %v2070, %v2102
        %v2135 = vmax.f32 %v2071, %v2103
        %v2136 = vmax.f32 %v2072, %v2104
        %v2137 = vmax.f32 %v2073, %v2105
        %v2138 = vmax.f32 %v2074, %v2106
        %v2139 = vmax.f32 %v2075, %v2107
        %v2140 = vmax.f32 %v2076, %v2108
        %v2141 = vmax.f32 %v2077, %v2109
        %v2142 = vmax.f32 %v2078, %v2110
        %v2143 = vmax.f32 %v2079, %v2111
        %v2144 = vmax.f32 %v2080, %v2112
        %v2145 = vmax.f32 %v2081, %v2113
        %v2146 = vmax.f32 %v2082, %v2114
        %v2147 = vmax.f32 %v2083, %v2115
        %v2148 = vmax.f32 %v2084, %v2116
        %v2149 = vmax.f32 %v2085, %v2117
        %v2150 = vmax.f32 %v2086, %v2118
        %v2151 = vmax.f32 %v2087, %v2119
        %v2152 = vmax.f32 %v2088, %v2120
        %v2153 = vmax.f32 %v2089, %v2121
        %v2154 = vmax.f32 %v2090, %v2122
        %v2155 = vmax.f32 %v2091, %v2123
        %v2156 = vmax.f32 %v2092, %v2124
        %v2157 = vmax.f32 %v2093, %v2125
        %v2158 = vmax.f32 %v2094, %v2126
        %v2159 = vmax.f32 %v2095, %v2127
        %v2160 = vmax.f32 %v2096, %v2128
        %v2161 = vmax.f32 %v2097, %v2129
        %v2162 = vmax.f32 %v2098, %v2130
        %v2163 = vmax.f32 %v2099, %v2131
        %v2164 = vpack.c.bf16 %v2133, %v2132
        %v2165 = vpack.c.bf16 %v2135, %v2134
        %v2166 = vpack.c.bf16 %v2137, %v2136
        %v2167 = vpack.c.bf16 %v2139, %v2138
        %v2168 = vpack.c.bf16 %v2141, %v2140
        %v2169 = vpack.c.bf16 %v2143, %v2142
        %v2170 = vpack.c.bf16 %v2145, %v2144
        %v2171 = vpack.c.bf16 %v2147, %v2146
        %v2172 = vpack.c.bf16 %v2149, %v2148
        %v2173 = vpack.c.bf16 %v2151, %v2150
        %v2174 = vpack.c.bf16 %v2153, %v2152
        %v2175 = vpack.c.bf16 %v2155, %v2154
        %v2176 = vpack.c.bf16 %v2157, %v2156
        %v2177 = vpack.c.bf16 %v2159, %v2158
        %v2178 = vpack.c.bf16 %v2161, %v2160
        %v2179 = vpack.c.bf16 %v2163, %v2162
        %2180 = vst [vmem:[#allocation3] sm:$0xff] 0
        %2181 = vst [vmem:[#allocation3 + $0x8] sm:$0xff] 0
        %2182 = vst [vmem:[#allocation3 + $0x10] sm:$0xff] 0
        %2183 = vst [vmem:[#allocation3 + $0x198] sm:$0xff] 0
        %2184 = vst [vmem:[#allocation3 + $0x1a0] sm:$0xff] 0
        %2185 = vst [vmem:[#allocation3 + $0x1a8] sm:$0xff] 0
        %v2186 = vlaneseq
        %v2187 = vshrl.u32 %v2186, 7
        %v2188 = vadd.s32 %v2187, 8
        %v2189 = vadd.s32 %v2187, 16
        %v2190 = vadd.s32 %v2187, 24
        %v2191 = vadd.s32 %v2187, 32
        %v2192 = vadd.s32 %v2187, 40
        %v2193 = vadd.s32 %v2187, 48
        %v2194 = vadd.s32 %v2187, 56
        %v2195 = vadd.s32 %v2187, 64
        %v2196 = vadd.s32 %v2187, 72
        %v2197 = vadd.s32 %v2187, 80
        %v2198 = vadd.s32 %v2187, 88
        %v2199 = vadd.s32 %v2187, 96
        %v2200 = vadd.s32 %v2187, 104
        %v2201 = vadd.s32 %v2187, 112
        %v2202 = vadd.s32 %v2187, 120
        %v2203 = vadd.s32 %v2187, 128
        %v2204 = vadd.s32 %v2187, 136
        %v2205 = vadd.s32 %v2187, 144
        %v2206 = vadd.s32 %v2187, 152
        %v2207 = vadd.s32 %v2187, 160
        %v2208 = vadd.s32 %v2187, 168
        %v2209 = vadd.s32 %v2187, 176
        %v2210 = vadd.s32 %v2187, 184
        %v2211 = vadd.s32 %v2187, 192
        %v2212 = vadd.s32 %v2187, 200
        %v2213 = vadd.s32 %v2187, 208
        %v2214 = vadd.s32 %v2187, 216
        %v2215 = vadd.s32 %v2187, 224
        %v2216 = vadd.s32 %v2187, 232
        %v2217 = vadd.s32 %v2187, 240
        %v2218 = vadd.s32 %v2187, 248
        %vm2219 = vcmp.lt.s32.totalorder %v2187, 0
        %v2220 = vsub.s32 0, %v2187
        %v2221 = vsel %vm2219, %v2220, %v2187
        %v2222 = vshrl.u32 %v2221, 4
        %v2223 = vand.u32 %v2221, 15
        %v2224 = vsub.s32 0, %v2223
        %v2225 = vsel %vm2219, %v2224, %v2223
        %vm2226 = vcmp.lt.s32.totalorder %v2188, 0
        %v2227 = vsub.s32 0, %v2188
        %v2228 = vsel %vm2226, %v2227, %v2188
        %v2229 = vshrl.u32 %v2228, 4
        %v2230 = vand.u32 %v2228, 15
        %v2231 = vsub.s32 0, %v2230
        %v2232 = vsel %vm2226, %v2231, %v2230
        %vm2233 = vcmp.lt.s32.totalorder %v2189, 0
        %v2234 = vsub.s32 0, %v2189
        %v2235 = vsel %vm2233, %v2234, %v2189
        %v2236 = vshrl.u32 %v2235, 4
        %v2237 = vand.u32 %v2235, 15
        %v2238 = vsub.s32 0, %v2237
        %v2239 = vsel %vm2233, %v2238, %v2237
        %vm2240 = vcmp.lt.s32.totalorder %v2190, 0
        %v2241 = vsub.s32 0, %v2190
        %v2242 = vsel %vm2240, %v2241, %v2190
        %v2243 = vshrl.u32 %v2242, 4
        %v2244 = vand.u32 %v2242, 15
        %v2245 = vsub.s32 0, %v2244
        %v2246 = vsel %vm2240, %v2245, %v2244
        %vm2247 = vcmp.lt.s32.totalorder %v2191, 0
        %v2248 = vsub.s32 0, %v2191
        %v2249 = vsel %vm2247, %v2248, %v2191
        %v2250 = vshrl.u32 %v2249, 4
        %v2251 = vand.u32 %v2249, 15
        %v2252 = vsub.s32 0, %v2251
        %v2253 = vsel %vm2247, %v2252, %v2251
        %vm2254 = vcmp.lt.s32.totalorder %v2192, 0
        %v2255 = vsub.s32 0, %v2192
        %v2256 = vsel %vm2254, %v2255, %v2192
        %v2257 = vshrl.u32 %v2256, 4
        %v2258 = vand.u32 %v2256, 15
        %v2259 = vsub.s32 0, %v2258
        %v2260 = vsel %vm2254, %v2259, %v2258
        %vm2261 = vcmp.lt.s32.totalorder %v2193, 0
        %v2262 = vsub.s32 0, %v2193
        %v2263 = vsel %vm2261, %v2262, %v2193
        %v2264 = vshrl.u32 %v2263, 4
        %v2265 = vand.u32 %v2263, 15
        %v2266 = vsub.s32 0, %v2265
        %v2267 = vsel %vm2261, %v2266, %v2265
        %vm2268 = vcmp.lt.s32.totalorder %v2194, 0
        %v2269 = vsub.s32 0, %v2194
        %v2270 = vsel %vm2268, %v2269, %v2194
        %v2271 = vshrl.u32 %v2270, 4
        %v2272 = vand.u32 %v2270, 15
        %v2273 = vsub.s32 0, %v2272
        %v2274 = vsel %vm2268, %v2273, %v2272
        %vm2275 = vcmp.lt.s32.totalorder %v2195, 0
        %v2276 = vsub.s32 0, %v2195
        %v2277 = vsel %vm2275, %v2276, %v2195
        %v2278 = vshrl.u32 %v2277, 4
        %v2279 = vand.u32 %v2277, 15
        %v2280 = vsub.s32 0, %v2279
        %v2281 = vsel %vm2275, %v2280, %v2279
        %vm2282 = vcmp.lt.s32.totalorder %v2196, 0
        %v2283 = vsub.s32 0, %v2196
        %v2284 = vsel %vm2282, %v2283, %v2196
        %v2285 = vshrl.u32 %v2284, 4
        %v2286 = vand.u32 %v2284, 15
        %v2287 = vsub.s32 0, %v2286
        %v2288 = vsel %vm2282, %v2287, %v2286
        %vm2289 = vcmp.lt.s32.totalorder %v2197, 0
        %v2290 = vsub.s32 0, %v2197
        %v2291 = vsel %vm2289, %v2290, %v2197
        %v2292 = vshrl.u32 %v2291, 4
        %v2293 = vand.u32 %v2291, 15
        %v2294 = vsub.s32 0, %v2293
        %v2295 = vsel %vm2289, %v2294, %v2293
        %vm2296 = vcmp.lt.s32.totalorder %v2198, 0
        %v2297 = vsub.s32 0, %v2198
        %v2298 = vsel %vm2296, %v2297, %v2198
        %v2299 = vshrl.u32 %v2298, 4
        %v2300 = vand.u32 %v2298, 15
        %v2301 = vsub.s32 0, %v2300
        %v2302 = vsel %vm2296, %v2301, %v2300
        %vm2303 = vcmp.lt.s32.totalorder %v2199, 0
        %v2304 = vsub.s32 0, %v2199
        %v2305 = vsel %vm2303, %v2304, %v2199
        %v2306 = vshrl.u32 %v2305, 4
        %v2307 = vand.u32 %v2305, 15
        %v2308 = vsub.s32 0, %v2307
        %v2309 = vsel %vm2303, %v2308, %v2307
        %vm2310 = vcmp.lt.s32.totalorder %v2200, 0
        %v2311 = vsub.s32 0, %v2200
        %v2312 = vsel %vm2310, %v2311, %v2200
        %v2313 = vshrl.u32 %v2312, 4
        %v2314 = vand.u32 %v2312, 15
        %v2315 = vsub.s32 0, %v2314
        %v2316 = vsel %vm2310, %v2315, %v2314
        %vm2317 = vcmp.lt.s32.totalorder %v2201, 0
        %v2318 = vsub.s32 0, %v2201
        %v2319 = vsel %vm2317, %v2318, %v2201
        %v2320 = vshrl.u32 %v2319, 4
        %v2321 = vand.u32 %v2319, 15
        %v2322 = vsub.s32 0, %v2321
        %v2323 = vsel %vm2317, %v2322, %v2321
        %vm2324 = vcmp.lt.s32.totalorder %v2202, 0
        %v2325 = vsub.s32 0, %v2202
        %v2326 = vsel %vm2324, %v2325, %v2202
        %v2327 = vshrl.u32 %v2326, 4
        %v2328 = vand.u32 %v2326, 15
        %v2329 = vsub.s32 0, %v2328
        %v2330 = vsel %vm2324, %v2329, %v2328
        %vm2331 = vcmp.lt.s32.totalorder %v2203, 0
        %v2332 = vsub.s32 0, %v2203
        %v2333 = vsel %vm2331, %v2332, %v2203
        %v2334 = vshrl.u32 %v2333, 4
        %v2335 = vand.u32 %v2333, 15
        %v2336 = vsub.s32 0, %v2335
        %v2337 = vsel %vm2331, %v2336, %v2335
        %vm2338 = vcmp.lt.s32.totalorder %v2204, 0
        %v2339 = vsub.s32 0, %v2204
        %v2340 = vsel %vm2338, %v2339, %v2204
        %v2341 = vshrl.u32 %v2340, 4
        %v2342 = vand.u32 %v2340, 15
        %v2343 = vsub.s32 0, %v2342
        %v2344 = vsel %vm2338, %v2343, %v2342
        %vm2345 = vcmp.lt.s32.totalorder %v2205, 0
        %v2346 = vsub.s32 0, %v2205
        %v2347 = vsel %vm2345, %v2346, %v2205
        %v2348 = vshrl.u32 %v2347, 4
        %v2349 = vand.u32 %v2347, 15
        %v2350 = vsub.s32 0, %v2349
        %v2351 = vsel %vm2345, %v2350, %v2349
        %vm2352 = vcmp.lt.s32.totalorder %v2206, 0
        %v2353 = vsub.s32 0, %v2206
        %v2354 = vsel %vm2352, %v2353, %v2206
        %v2355 = vshrl.u32 %v2354, 4
        %v2356 = vand.u32 %v2354, 15
        %v2357 = vsub.s32 0, %v2356
        %v2358 = vsel %vm2352, %v2357, %v2356
        %vm2359 = vcmp.lt.s32.totalorder %v2207, 0
        %v2360 = vsub.s32 0, %v2207
        %v2361 = vsel %vm2359, %v2360, %v2207
        %v2362 = vshrl.u32 %v2361, 4
        %v2363 = vand.u32 %v2361, 15
        %v2364 = vsub.s32 0, %v2363
        %v2365 = vsel %vm2359, %v2364, %v2363
        %vm2366 = vcmp.lt.s32.totalorder %v2208, 0
        %v2367 = vsub.s32 0, %v2208
        %v2368 = vsel %vm2366, %v2367, %v2208
        %v2369 = vshrl.u32 %v2368, 4
        %v2370 = vand.u32 %v2368, 15
        %v2371 = vsub.s32 0, %v2370
        %v2372 = vsel %vm2366, %v2371, %v2370
        %vm2373 = vcmp.lt.s32.totalorder %v2209, 0
        %v2374 = vsub.s32 0, %v2209
        %v2375 = vsel %vm2373, %v2374, %v2209
        %v2376 = vshrl.u32 %v2375, 4
        %v2377 = vand.u32 %v2375, 15
        %v2378 = vsub.s32 0, %v2377
        %v2379 = vsel %vm2373, %v2378, %v2377
        %vm2380 = vcmp.lt.s32.totalorder %v2210, 0
        %v2381 = vsub.s32 0, %v2210
        %v2382 = vsel %vm2380, %v2381, %v2210
        %v2383 = vshrl.u32 %v2382, 4
        %v2384 = vand.u32 %v2382, 15
        %v2385 = vsub.s32 0, %v2384
        %v2386 = vsel %vm2380, %v2385, %v2384
        %vm2387 = vcmp.lt.s32.totalorder %v2211, 0
        %v2388 = vsub.s32 0, %v2211
        %v2389 = vsel %vm2387, %v2388, %v2211
        %v2390 = vshrl.u32 %v2389, 4
        %v2391 = vand.u32 %v2389, 15
        %v2392 = vsub.s32 0, %v2391
        %v2393 = vsel %vm2387, %v2392, %v2391
        %vm2394 = vcmp.lt.s32.totalorder %v2212, 0
        %v2395 = vsub.s32 0, %v2212
        %v2396 = vsel %vm2394, %v2395, %v2212
        %v2397 = vshrl.u32 %v2396, 4
        %v2398 = vand.u32 %v2396, 15
        %v2399 = vsub.s32 0, %v2398
        %v2400 = vsel %vm2394, %v2399, %v2398
        %vm2401 = vcmp.lt.s32.totalorder %v2213, 0
        %v2402 = vsub.s32 0, %v2213
        %v2403 = vsel %vm2401, %v2402, %v2213
        %v2404 = vshrl.u32 %v2403, 4
        %v2405 = vand.u32 %v2403, 15
        %v2406 = vsub.s32 0, %v2405
        %v2407 = vsel %vm2401, %v2406, %v2405
        %vm2408 = vcmp.lt.s32.totalorder %v2214, 0
        %v2409 = vsub.s32 0, %v2214
        %v2410 = vsel %vm2408, %v2409, %v2214
        %v2411 = vshrl.u32 %v2410, 4
        %v2412 = vand.u32 %v2410, 15
        %v2413 = vsub.s32 0, %v2412
        %v2414 = vsel %vm2408, %v2413, %v2412
        %vm2415 = vcmp.lt.s32.totalorder %v2215, 0
        %v2416 = vsub.s32 0, %v2215
        %v2417 = vsel %vm2415, %v2416, %v2215
        %v2418 = vshrl.u32 %v2417, 4
        %v2419 = vand.u32 %v2417, 15
        %v2420 = vsub.s32 0, %v2419
        %v2421 = vsel %vm2415, %v2420, %v2419
        %vm2422 = vcmp.lt.s32.totalorder %v2216, 0
        %v2423 = vsub.s32 0, %v2216
        %v2424 = vsel %vm2422, %v2423, %v2216
        %v2425 = vshrl.u32 %v2424, 4
        %v2426 = vand.u32 %v2424, 15
        %v2427 = vsub.s32 0, %v2426
        %v2428 = vsel %vm2422, %v2427, %v2426
        %vm2429 = vcmp.lt.s32.totalorder %v2217, 0
        %v2430 = vsub.s32 0, %v2217
        %v2431 = vsel %vm2429, %v2430, %v2217
        %v2432 = vshrl.u32 %v2431, 4
        %v2433 = vand.u32 %v2431, 15
        %v2434 = vsub.s32 0, %v2433
        %v2435 = vsel %vm2429, %v2434, %v2433
        %vm2436 = vcmp.lt.s32.totalorder %v2218, 0
        %v2437 = vsub.s32 0, %v2218
        %v2438 = vsel %vm2436, %v2437, %v2218
        %v2439 = vshrl.u32 %v2438, 4
        %v2440 = vand.u32 %v2438, 15
        %v2441 = vsub.s32 0, %v2440
        %v2442 = vsel %vm2436, %v2441, %v2440
        %vm2443 = vcmp.ne.s32.totalorder %v2225, 0
        %vm2444 = vcmp.ne.s32.totalorder %v2232, 0
        %vm2445 = vcmp.ne.s32.totalorder %v2239, 0
        %vm2446 = vcmp.ne.s32.totalorder %v2246, 0
        %vm2447 = vcmp.ne.s32.totalorder %v2253, 0
        %vm2448 = vcmp.ne.s32.totalorder %v2260, 0
        %vm2449 = vcmp.ne.s32.totalorder %v2267, 0
        %vm2450 = vcmp.ne.s32.totalorder %v2274, 0
        %vm2451 = vcmp.ne.s32.totalorder %v2281, 0
        %vm2452 = vcmp.ne.s32.totalorder %v2288, 0
        %vm2453 = vcmp.ne.s32.totalorder %v2295, 0
        %vm2454 = vcmp.ne.s32.totalorder %v2302, 0
        %vm2455 = vcmp.ne.s32.totalorder %v2309, 0
        %vm2456 = vcmp.ne.s32.totalorder %v2316, 0
        %vm2457 = vcmp.ne.s32.totalorder %v2323, 0
        %vm2458 = vcmp.ne.s32.totalorder %v2330, 0
        %vm2459 = vcmp.ne.s32.totalorder %v2337, 0
        %vm2460 = vcmp.ne.s32.totalorder %v2344, 0
        %vm2461 = vcmp.ne.s32.totalorder %v2351, 0
        %vm2462 = vcmp.ne.s32.totalorder %v2358, 0
        %vm2463 = vcmp.ne.s32.totalorder %v2365, 0
        %vm2464 = vcmp.ne.s32.totalorder %v2372, 0
        %vm2465 = vcmp.ne.s32.totalorder %v2379, 0
        %vm2466 = vcmp.ne.s32.totalorder %v2386, 0
        %vm2467 = vcmp.ne.s32.totalorder %v2393, 0
        %vm2468 = vcmp.ne.s32.totalorder %v2400, 0
        %vm2469 = vcmp.ne.s32.totalorder %v2407, 0
        %vm2470 = vcmp.ne.s32.totalorder %v2414, 0
        %vm2471 = vcmp.ne.s32.totalorder %v2421, 0
        %vm2472 = vcmp.ne.s32.totalorder %v2428, 0
        %vm2473 = vcmp.ne.s32.totalorder %v2435, 0
        %vm2474 = vcmp.ne.s32.totalorder %v2442, 0
        %vm2475 = vcmp.lt.s32.totalorder %v2225, 0
        %vm2476 = vcmp.lt.s32.totalorder %v2232, 0
        %vm2477 = vcmp.lt.s32.totalorder %v2239, 0
        %vm2478 = vcmp.lt.s32.totalorder %v2246, 0
        %vm2479 = vcmp.lt.s32.totalorder %v2253, 0
        %vm2480 = vcmp.lt.s32.totalorder %v2260, 0
        %vm2481 = vcmp.lt.s32.totalorder %v2267, 0
        %vm2482 = vcmp.lt.s32.totalorder %v2274, 0
        %vm2483 = vcmp.lt.s32.totalorder %v2281, 0
        %vm2484 = vcmp.lt.s32.totalorder %v2288, 0
        %vm2485 = vcmp.lt.s32.totalorder %v2295, 0
        %vm2486 = vcmp.lt.s32.totalorder %v2302, 0
        %vm2487 = vcmp.lt.s32.totalorder %v2309, 0
        %vm2488 = vcmp.lt.s32.totalorder %v2316, 0
        %vm2489 = vcmp.lt.s32.totalorder %v2323, 0
        %vm2490 = vcmp.lt.s32.totalorder %v2330, 0
        %vm2491 = vcmp.lt.s32.totalorder %v2337, 0
        %vm2492 = vcmp.lt.s32.totalorder %v2344, 0
        %vm2493 = vcmp.lt.s32.totalorder %v2351, 0
        %vm2494 = vcmp.lt.s32.totalorder %v2358, 0
        %vm2495 = vcmp.lt.s32.totalorder %v2365, 0
        %vm2496 = vcmp.lt.s32.totalorder %v2372, 0
        %vm2497 = vcmp.lt.s32.totalorder %v2379, 0
        %vm2498 = vcmp.lt.s32.totalorder %v2386, 0
        %vm2499 = vcmp.lt.s32.totalorder %v2393, 0
        %vm2500 = vcmp.lt.s32.totalorder %v2400, 0
        %vm2501 = vcmp.lt.s32.totalorder %v2407, 0
        %vm2502 = vcmp.lt.s32.totalorder %v2414, 0
        %vm2503 = vcmp.lt.s32.totalorder %v2421, 0
        %vm2504 = vcmp.lt.s32.totalorder %v2428, 0
        %vm2505 = vcmp.lt.s32.totalorder %v2435, 0
        %vm2506 = vcmp.lt.s32.totalorder %v2442, 0
        %vm2507 = vmand %vm2475, %vm2443
        %vm2508 = vmand %vm2476, %vm2444
        %vm2509 = vmand %vm2477, %vm2445
        %vm2510 = vmand %vm2478, %vm2446
        %vm2511 = vmand %vm2479, %vm2447
        %vm2512 = vmand %vm2480, %vm2448
        %vm2513 = vmand %vm2481, %vm2449
        %vm2514 = vmand %vm2482, %vm2450
        %vm2515 = vmand %vm2483, %vm2451
        %vm2516 = vmand %vm2484, %vm2452
        %vm2517 = vmand %vm2485, %vm2453
        %vm2518 = vmand %vm2486, %vm2454
        %vm2519 = vmand %vm2487, %vm2455
        %vm2520 = vmand %vm2488, %vm2456
        %vm2521 = vmand %vm2489, %vm2457
        %vm2522 = vmand %vm2490, %vm2458
        %vm2523 = vmand %vm2491, %vm2459
        %vm2524 = vmand %vm2492, %vm2460
        %vm2525 = vmand %vm2493, %vm2461
        %vm2526 = vmand %vm2494, %vm2462
        %vm2527 = vmand %vm2495, %vm2463
        %vm2528 = vmand %vm2496, %vm2464
        %vm2529 = vmand %vm2497, %vm2465
        %vm2530 = vmand %vm2498, %vm2466
        %vm2531 = vmand %vm2499, %vm2467
        %vm2532 = vmand %vm2500, %vm2468
        %vm2533 = vmand %vm2501, %vm2469
        %vm2534 = vmand %vm2502, %vm2470
        %vm2535 = vmand %vm2503, %vm2471
        %vm2536 = vmand %vm2504, %vm2472
        %vm2537 = vmand %vm2505, %vm2473
        %vm2538 = vmand %vm2506, %vm2474
        %v2539 = vadd.s32 %v2225, 16
        %v2540 = vadd.s32 %v2232, 16
        %v2541 = vadd.s32 %v2239, 16
        %v2542 = vadd.s32 %v2246, 16
        %v2543 = vadd.s32 %v2253, 16
        %v2544 = vadd.s32 %v2260, 16
        %v2545 = vadd.s32 %v2267, 16
        %v2546 = vadd.s32 %v2274, 16
        %v2547 = vadd.s32 %v2281, 16
        %v2548 = vadd.s32 %v2288, 16
        %v2549 = vadd.s32 %v2295, 16
        %v2550 = vadd.s32 %v2302, 16
        %v2551 = vadd.s32 %v2309, 16
        %v2552 = vadd.s32 %v2316, 16
        %v2553 = vadd.s32 %v2323, 16
        %v2554 = vadd.s32 %v2330, 16
        %v2555 = vadd.s32 %v2337, 16
        %v2556 = vadd.s32 %v2344, 16
        %v2557 = vadd.s32 %v2351, 16
        %v2558 = vadd.s32 %v2358, 16
        %v2559 = vadd.s32 %v2365, 16
        %v2560 = vadd.s32 %v2372, 16
        %v2561 = vadd.s32 %v2379, 16
        %v2562 = vadd.s32 %v2386, 16
        %v2563 = vadd.s32 %v2393, 16
        %v2564 = vadd.s32 %v2400, 16
        %v2565 = vadd.s32 %v2407, 16
        %v2566 = vadd.s32 %v2414, 16
        %v2567 = vadd.s32 %v2421, 16
        %v2568 = vadd.s32 %v2428, 16
        %v2569 = vadd.s32 %v2435, 16
        %v2570 = vadd.s32 %v2442, 16
        %v2571 = vsel %vm2507, %v2539, %v2225
        %v2572 = vsel %vm2508, %v2540, %v2232
        %v2573 = vsel %vm2509, %v2541, %v2239
        %v2574 = vsel %vm2510, %v2542, %v2246
        %v2575 = vsel %vm2511, %v2543, %v2253
        %v2576 = vsel %vm2512, %v2544, %v2260
        %v2577 = vsel %vm2513, %v2545, %v2267
        %v2578 = vsel %vm2514, %v2546, %v2274
        %v2579 = vsel %vm2515, %v2547, %v2281
        %v2580 = vsel %vm2516, %v2548, %v2288
        %v2581 = vsel %vm2517, %v2549, %v2295
        %v2582 = vsel %vm2518, %v2550, %v2302
        %v2583 = vsel %vm2519, %v2551, %v2309
        %v2584 = vsel %vm2520, %v2552, %v2316
        %v2585 = vsel %vm2521, %v2553, %v2323
        %v2586 = vsel %vm2522, %v2554, %v2330
        %v2587 = vsel %vm2523, %v2555, %v2337
        %v2588 = vsel %vm2524, %v2556, %v2344
        %v2589 = vsel %vm2525, %v2557, %v2351
        %v2590 = vsel %vm2526, %v2558, %v2358
        %v2591 = vsel %vm2527, %v2559, %v2365
        %v2592 = vsel %vm2528, %v2560, %v2372
        %v2593 = vsel %vm2529, %v2561, %v2379
        %v2594 = vsel %vm2530, %v2562, %v2386
        %v2595 = vsel %vm2531, %v2563, %v2393
        %v2596 = vsel %vm2532, %v2564, %v2400
        %v2597 = vsel %vm2533, %v2565, %v2407
        %v2598 = vsel %vm2534, %v2566, %v2414
        %v2599 = vsel %vm2535, %v2567, %v2421
        %v2600 = vsel %vm2536, %v2568, %v2428
        %v2601 = vsel %vm2537, %v2569, %v2435
        %v2602 = vsel %vm2538, %v2570, %v2442
        %vm2635 = vcmask 1040384
        %v2636 = vrot.slane %v2132, 7
        %v2637 = vrot.slane %v2133, 7
        %v2638 = vsel %vm2635, %v2636, %v2637
        %v2639 = vrot.slane %v2134, 7
        %v2640 = vsel %vm2635, %v2637, %v2639
        %v2641 = vrot.slane %v2135, 7
        %v2642 = vsel %vm2635, %v2639, %v2641
        %v2643 = vrot.slane %v2136, 7
        %v2644 = vsel %vm2635, %v2641, %v2643
        %v2645 = vrot.slane %v2137, 7
        %v2646 = vsel %vm2635, %v2643, %v2645
        %v2647 = vrot.slane %v2138, 7
        %v2648 = vsel %vm2635, %v2645, %v2647
        %v2649 = vrot.slane %v2139, 7
        %v2650 = vsel %vm2635, %v2647, %v2649
        %v2651 = vrot.slane %v2140, 7
        %v2652 = vsel %vm2635, %v2649, %v2651
        %v2653 = vrot.slane %v2141, 7
        %v2654 = vsel %vm2635, %v2651, %v2653
        %v2655 = vrot.slane %v2142, 7
        %v2656 = vsel %vm2635, %v2653, %v2655
        %v2657 = vrot.slane %v2143, 7
        %v2658 = vsel %vm2635, %v2655, %v2657
        %v2659 = vrot.slane %v2144, 7
        %v2660 = vsel %vm2635, %v2657, %v2659
        %v2661 = vrot.slane %v2145, 7
        %v2662 = vsel %vm2635, %v2659, %v2661
        %v2663 = vrot.slane %v2146, 7
        %v2664 = vsel %vm2635, %v2661, %v2663
        %v2665 = vrot.slane %v2147, 7
        %v2666 = vsel %vm2635, %v2663, %v2665
        %v2667 = vrot.slane %v2148, 7
        %v2668 = vsel %vm2635, %v2665, %v2667
        %v2669 = vrot.slane %v2149, 7
        %v2670 = vsel %vm2635, %v2667, %v2669
        %v2671 = vrot.slane %v2150, 7
        %v2672 = vsel %vm2635, %v2669, %v2671
        %v2673 = vrot.slane %v2151, 7
        %v2674 = vsel %vm2635, %v2671, %v2673
        %v2675 = vrot.slane %v2152, 7
        %v2676 = vsel %vm2635, %v2673, %v2675
        %v2677 = vrot.slane %v2153, 7
        %v2678 = vsel %vm2635, %v2675, %v2677
        %v2679 = vrot.slane %v2154, 7
        %v2680 = vsel %vm2635, %v2677, %v2679
        %v2681 = vrot.slane %v2155, 7
        %v2682 = vsel %vm2635, %v2679, %v2681
        %v2683 = vrot.slane %v2156, 7
        %v2684 = vsel %vm2635, %v2681, %v2683
        %v2685 = vrot.slane %v2157, 7
        %v2686 = vsel %vm2635, %v2683, %v2685
        %v2687 = vrot.slane %v2158, 7
        %v2688 = vsel %vm2635, %v2685, %v2687
        %v2689 = vrot.slane %v2159, 7
        %v2690 = vsel %vm2635, %v2687, %v2689
        %v2691 = vrot.slane %v2160, 7
        %v2692 = vsel %vm2635, %v2689, %v2691
        %v2693 = vrot.slane %v2161, 7
        %v2694 = vsel %vm2635, %v2691, %v2693
        %v2695 = vrot.slane %v2162, 7
        %v2696 = vsel %vm2635, %v2693, %v2695
        %v2697 = vrot.slane %v2163, 7
        %v2698 = vsel %vm2635, %v2695, %v2697
        %v2731 = vsel %vm2635, 0.0, %v2636
        %vm2732 = vcmask 1046528
        %v2733 = vrot.slane %v2132, 1
        %v2734 = vrot.slane %v2133, 1
        %v2735 = vsel %vm2732, %v2733, %v2734
        %v2736 = vrot.slane %v2134, 1
        %v2737 = vsel %vm2732, %v2734, %v2736
        %v2738 = vrot.slane %v2135, 1
        %v2739 = vsel %vm2732, %v2736, %v2738
        %v2740 = vrot.slane %v2136, 1
        %v2741 = vsel %vm2732, %v2738, %v2740
        %v2742 = vrot.slane %v2137, 1
        %v2743 = vsel %vm2732, %v2740, %v2742
        %v2744 = vrot.slane %v2138, 1
        %v2745 = vsel %vm2732, %v2742, %v2744
        %v2746 = vrot.slane %v2139, 1
        %v2747 = vsel %vm2732, %v2744, %v2746
        %v2748 = vrot.slane %v2140, 1
        %v2749 = vsel %vm2732, %v2746, %v2748
        %v2750 = vrot.slane %v2141, 1
        %v2751 = vsel %vm2732, %v2748, %v2750
        %v2752 = vrot.slane %v2142, 1
        %v2753 = vsel %vm2732, %v2750, %v2752
        %v2754 = vrot.slane %v2143, 1
        %v2755 = vsel %vm2732, %v2752, %v2754
        %v2756 = vrot.slane %v2144, 1
        %v2757 = vsel %vm2732, %v2754, %v2756
        %v2758 = vrot.slane %v2145, 1
        %v2759 = vsel %vm2732, %v2756, %v2758
        %v2760 = vrot.slane %v2146, 1
        %v2761 = vsel %vm2732, %v2758, %v2760
        %v2762 = vrot.slane %v2147, 1
        %v2763 = vsel %vm2732, %v2760, %v2762
        %v2764 = vrot.slane %v2148, 1
        %v2765 = vsel %vm2732, %v2762, %v2764
        %v2766 = vrot.slane %v2149, 1
        %v2767 = vsel %vm2732, %v2764, %v2766
        %v2768 = vrot.slane %v2150, 1
        %v2769 = vsel %vm2732, %v2766, %v2768
        %v2770 = vrot.slane %v2151, 1
        %v2771 = vsel %vm2732, %v2768, %v2770
        %v2772 = vrot.slane %v2152, 1
        %v2773 = vsel %vm2732, %v2770, %v2772
        %v2774 = vrot.slane %v2153, 1
        %v2775 = vsel %vm2732, %v2772, %v2774
        %v2776 = vrot.slane %v2154, 1
        %v2777 = vsel %vm2732, %v2774, %v2776
        %v2778 = vrot.slane %v2155, 1
        %v2779 = vsel %vm2732, %v2776, %v2778
        %v2780 = vrot.slane %v2156, 1
        %v2781 = vsel %vm2732, %v2778, %v2780
        %v2782 = vrot.slane %v2157, 1
        %v2783 = vsel %vm2732, %v2780, %v2782
        %v2784 = vrot.slane %v2158, 1
        %v2785 = vsel %vm2732, %v2782, %v2784
        %v2786 = vrot.slane %v2159, 1
        %v2787 = vsel %vm2732, %v2784, %v2786
        %v2788 = vrot.slane %v2160, 1
        %v2789 = vsel %vm2732, %v2786, %v2788
        %v2790 = vrot.slane %v2161, 1
        %v2791 = vsel %vm2732, %v2788, %v2790
        %v2792 = vrot.slane %v2162, 1
        %v2793 = vsel %vm2732, %v2790, %v2792
        %v2794 = vrot.slane %v2163, 1
        %v2795 = vsel %vm2732, %v2792, %v2794
        %v2828 = vsel %vm2732, %v2794, 0.0
        %2829 = vst [vmem:[#allocation3 + $0x18] sm:$0xff] %v2164
        %2830 = vst [vmem:[#allocation3 + $0x30] sm:$0xff] %v2165
        %2831 = vst [vmem:[#allocation3 + $0x48] sm:$0xff] %v2166
        %2832 = vst [vmem:[#allocation3 + $0x60] sm:$0xff] %v2167
        %2833 = vst [vmem:[#allocation3 + $0x78] sm:$0xff] %v2168
        %2834 = vst [vmem:[#allocation3 + $0x90] sm:$0xff] %v2169
        %2835 = vst [vmem:[#allocation3 + $0xa8] sm:$0xff] %v2170
        %2836 = vst [vmem:[#allocation3 + $0xc0] sm:$0xff] %v2171
        %2837 = vst [vmem:[#allocation3 + $0xd8] sm:$0xff] %v2172
        %2838 = vst [vmem:[#allocation3 + $0xf0] sm:$0xff] %v2173
        %2839 = vst [vmem:[#allocation3 + $0x108] sm:$0xff] %v2174
        %2840 = vst [vmem:[#allocation3 + $0x120] sm:$0xff] %v2175
        %2841 = vst [vmem:[#allocation3 + $0x138] sm:$0xff] %v2176
        %2842 = vst [vmem:[#allocation3 + $0x150] sm:$0xff] %v2177
        %2843 = vst [vmem:[#allocation3 + $0x168] sm:$0xff] %v2178
        %2844 = vst [vmem:[#allocation3 + $0x180] sm:$0xff] %v2179
        %vm2845 = vcmp.eq.s32.totalorder %v2571, 0
        %vm2846 = vcmp.eq.s32.totalorder %v2572, 0
        %vm2847 = vcmp.eq.s32.totalorder %v2573, 0
        %vm2848 = vcmp.eq.s32.totalorder %v2574, 0
        %vm2849 = vcmp.eq.s32.totalorder %v2575, 0
        %vm2850 = vcmp.eq.s32.totalorder %v2576, 0
        %vm2851 = vcmp.eq.s32.totalorder %v2577, 0
        %vm2852 = vcmp.eq.s32.totalorder %v2578, 0
        %vm2853 = vcmp.eq.s32.totalorder %v2579, 0
        %vm2854 = vcmp.eq.s32.totalorder %v2580, 0
        %vm2855 = vcmp.eq.s32.totalorder %v2581, 0
        %vm2856 = vcmp.eq.s32.totalorder %v2582, 0
        %vm2857 = vcmp.eq.s32.totalorder %v2583, 0
        %vm2858 = vcmp.eq.s32.totalorder %v2584, 0
        %vm2859 = vcmp.eq.s32.totalorder %v2585, 0
        %vm2860 = vcmp.eq.s32.totalorder %v2586, 0
        %vm2861 = vcmp.eq.s32.totalorder %v2587, 0
        %vm2862 = vcmp.eq.s32.totalorder %v2588, 0
        %vm2863 = vcmp.eq.s32.totalorder %v2589, 0
        %vm2864 = vcmp.eq.s32.totalorder %v2590, 0
        %vm2865 = vcmp.eq.s32.totalorder %v2591, 0
        %vm2866 = vcmp.eq.s32.totalorder %v2592, 0
        %vm2867 = vcmp.eq.s32.totalorder %v2593, 0
        %vm2868 = vcmp.eq.s32.totalorder %v2594, 0
        %vm2869 = vcmp.eq.s32.totalorder %v2595, 0
        %vm2870 = vcmp.eq.s32.totalorder %v2596, 0
        %vm2871 = vcmp.eq.s32.totalorder %v2597, 0
        %vm2872 = vcmp.eq.s32.totalorder %v2598, 0
        %vm2873 = vcmp.eq.s32.totalorder %v2599, 0
        %vm2874 = vcmp.eq.s32.totalorder %v2600, 0
        %vm2875 = vcmp.eq.s32.totalorder %v2601, 0
        %vm2876 = vcmp.eq.s32.totalorder %v2602, 0
        %v2877 = vsel %vm2845, 1, 0
        %v2878 = vsel %vm2846, 1, 0
        %v2879 = vsel %vm2847, 1, 0
        %v2880 = vsel %vm2848, 1, 0
        %v2881 = vsel %vm2849, 1, 0
        %v2882 = vsel %vm2850, 1, 0
        %v2883 = vsel %vm2851, 1, 0
        %v2884 = vsel %vm2852, 1, 0
        %v2885 = vsel %vm2853, 1, 0
        %v2886 = vsel %vm2854, 1, 0
        %v2887 = vsel %vm2855, 1, 0
        %v2888 = vsel %vm2856, 1, 0
        %v2889 = vsel %vm2857, 1, 0
        %v2890 = vsel %vm2858, 1, 0
        %v2891 = vsel %vm2859, 1, 0
        %v2892 = vsel %vm2860, 1, 0
        %v2893 = vsel %vm2861, 1, 0
        %v2894 = vsel %vm2862, 1, 0
        %v2895 = vsel %vm2863, 1, 0
        %v2896 = vsel %vm2864, 1, 0
        %v2897 = vsel %vm2865, 1, 0
        %v2898 = vsel %vm2866, 1, 0
        %v2899 = vsel %vm2867, 1, 0
        %v2900 = vsel %vm2868, 1, 0
        %v2901 = vsel %vm2869, 1, 0
        %v2902 = vsel %vm2870, 1, 0
        %v2903 = vsel %vm2871, 1, 0
        %v2904 = vsel %vm2872, 1, 0
        %v2905 = vsel %vm2873, 1, 0
        %v2906 = vsel %vm2874, 1, 0
        %v2907 = vsel %vm2875, 1, 0
        %v2908 = vsel %vm2876, 1, 0
        %vm2909 = vcmp.eq.s32.totalorder %v2877, 1
        %vm2910 = vcmp.eq.s32.totalorder %v2878, 1
        %vm2911 = vcmp.eq.s32.totalorder %v2879, 1
        %vm2912 = vcmp.eq.s32.totalorder %v2880, 1
        %vm2913 = vcmp.eq.s32.totalorder %v2881, 1
        %vm2914 = vcmp.eq.s32.totalorder %v2882, 1
        %vm2915 = vcmp.eq.s32.totalorder %v2883, 1
        %vm2916 = vcmp.eq.s32.totalorder %v2884, 1
        %vm2917 = vcmp.eq.s32.totalorder %v2885, 1
        %vm2918 = vcmp.eq.s32.totalorder %v2886, 1
        %vm2919 = vcmp.eq.s32.totalorder %v2887, 1
        %vm2920 = vcmp.eq.s32.totalorder %v2888, 1
        %vm2921 = vcmp.eq.s32.totalorder %v2889, 1
        %vm2922 = vcmp.eq.s32.totalorder %v2890, 1
        %vm2923 = vcmp.eq.s32.totalorder %v2891, 1
        %vm2924 = vcmp.eq.s32.totalorder %v2892, 1
        %vm2925 = vcmp.eq.s32.totalorder %v2893, 1
        %vm2926 = vcmp.eq.s32.totalorder %v2894, 1
        %vm2927 = vcmp.eq.s32.totalorder %v2895, 1
        %vm2928 = vcmp.eq.s32.totalorder %v2896, 1
        %vm2929 = vcmp.eq.s32.totalorder %v2897, 1
        %vm2930 = vcmp.eq.s32.totalorder %v2898, 1
        %vm2931 = vcmp.eq.s32.totalorder %v2899, 1
        %vm2932 = vcmp.eq.s32.totalorder %v2900, 1
        %vm2933 = vcmp.eq.s32.totalorder %v2901, 1
        %vm2934 = vcmp.eq.s32.totalorder %v2902, 1
        %vm2935 = vcmp.eq.s32.totalorder %v2903, 1
        %vm2936 = vcmp.eq.s32.totalorder %v2904, 1
        %vm2937 = vcmp.eq.s32.totalorder %v2905, 1
        %vm2938 = vcmp.eq.s32.totalorder %v2906, 1
        %vm2939 = vcmp.eq.s32.totalorder %v2907, 1
        %vm2940 = vcmp.eq.s32.totalorder %v2908, 1
        %v2941 = vsel %vm2909, 0.0, %v2731
        %v2942 = vsel %vm2910, 0.0, %v2638
        %v2943 = vsel %vm2911, 0.0, %v2640
        %v2944 = vsel %vm2912, 0.0, %v2642
        %v2945 = vsel %vm2913, 0.0, %v2644
        %v2946 = vsel %vm2914, 0.0, %v2646
        %v2947 = vsel %vm2915, 0.0, %v2648
        %v2948 = vsel %vm2916, 0.0, %v2650
        %v2949 = vsel %vm2917, 0.0, %v2652
        %v2950 = vsel %vm2918, 0.0, %v2654
        %v2951 = vsel %vm2919, 0.0, %v2656
        %v2952 = vsel %vm2920, 0.0, %v2658
        %v2953 = vsel %vm2921, 0.0, %v2660
        %v2954 = vsel %vm2922, 0.0, %v2662
        %v2955 = vsel %vm2923, 0.0, %v2664
        %v2956 = vsel %vm2924, 0.0, %v2666
        %v2957 = vsel %vm2925, 0.0, %v2668
        %v2958 = vsel %vm2926, 0.0, %v2670
        %v2959 = vsel %vm2927, 0.0, %v2672
        %v2960 = vsel %vm2928, 0.0, %v2674
        %v2961 = vsel %vm2929, 0.0, %v2676
        %v2962 = vsel %vm2930, 0.0, %v2678
        %v2963 = vsel %vm2931, 0.0, %v2680
        %v2964 = vsel %vm2932, 0.0, %v2682
        %v2965 = vsel %vm2933, 0.0, %v2684
        %v2966 = vsel %vm2934, 0.0, %v2686
        %v2967 = vsel %vm2935, 0.0, %v2688
        %v2968 = vsel %vm2936, 0.0, %v2690
        %v2969 = vsel %vm2937, 0.0, %v2692
        %v2970 = vsel %vm2938, 0.0, %v2694
        %v2971 = vsel %vm2939, 0.0, %v2696
        %v2972 = vsel %vm2940, 0.0, %v2698
        %v2973 = vpack.c.bf16 %v2942, %v2941
        %v2974 = vpack.c.bf16 %v2944, %v2943
        %v2975 = vpack.c.bf16 %v2946, %v2945
        %v2976 = vpack.c.bf16 %v2948, %v2947
        %v2977 = vpack.c.bf16 %v2950, %v2949
        %v2978 = vpack.c.bf16 %v2952, %v2951
        %v2979 = vpack.c.bf16 %v2954, %v2953
        %v2980 = vpack.c.bf16 %v2956, %v2955
        %v2981 = vpack.c.bf16 %v2958, %v2957
        %v2982 = vpack.c.bf16 %v2960, %v2959
        %v2983 = vpack.c.bf16 %v2962, %v2961
        %v2984 = vpack.c.bf16 %v2964, %v2963
        %v2985 = vpack.c.bf16 %v2966, %v2965
        %v2986 = vpack.c.bf16 %v2968, %v2967
        %v2987 = vpack.c.bf16 %v2970, %v2969
        %v2988 = vpack.c.bf16 %v2972, %v2971
        %2989 = vst [vmem:[#allocation3 + $0x20] sm:$0xff] %v2973
        %2990 = vst [vmem:[#allocation3 + $0x38] sm:$0xff] %v2974
        %2991 = vst [vmem:[#allocation3 + $0x50] sm:$0xff] %v2975
        %2992 = vst [vmem:[#allocation3 + $0x68] sm:$0xff] %v2976
        %2993 = vst [vmem:[#allocation3 + $0x80] sm:$0xff] %v2977
        %2994 = vst [vmem:[#allocation3 + $0x98] sm:$0xff] %v2978
        %2995 = vst [vmem:[#allocation3 + $0xb0] sm:$0xff] %v2979
        %2996 = vst [vmem:[#allocation3 + $0xc8] sm:$0xff] %v2980
        %2997 = vst [vmem:[#allocation3 + $0xe0] sm:$0xff] %v2981
        %2998 = vst [vmem:[#allocation3 + $0xf8] sm:$0xff] %v2982
        %2999 = vst [vmem:[#allocation3 + $0x110] sm:$0xff] %v2983
        %3000 = vst [vmem:[#allocation3 + $0x128] sm:$0xff] %v2984
        %3001 = vst [vmem:[#allocation3 + $0x140] sm:$0xff] %v2985
        %3002 = vst [vmem:[#allocation3 + $0x158] sm:$0xff] %v2986
        %3003 = vst [vmem:[#allocation3 + $0x170] sm:$0xff] %v2987
        %3004 = vst [vmem:[#allocation3 + $0x188] sm:$0xff] %v2988
        %vm3005 = vcmp.eq.s32.totalorder %v2571, 15
        %vm3006 = vcmp.eq.s32.totalorder %v2572, 15
        %vm3007 = vcmp.eq.s32.totalorder %v2573, 15
        %vm3008 = vcmp.eq.s32.totalorder %v2574, 15
        %vm3009 = vcmp.eq.s32.totalorder %v2575, 15
        %vm3010 = vcmp.eq.s32.totalorder %v2576, 15
        %vm3011 = vcmp.eq.s32.totalorder %v2577, 15
        %vm3012 = vcmp.eq.s32.totalorder %v2578, 15
        %vm3013 = vcmp.eq.s32.totalorder %v2579, 15
        %vm3014 = vcmp.eq.s32.totalorder %v2580, 15
        %vm3015 = vcmp.eq.s32.totalorder %v2581, 15
        %vm3016 = vcmp.eq.s32.totalorder %v2582, 15
        %vm3017 = vcmp.eq.s32.totalorder %v2583, 15
        %vm3018 = vcmp.eq.s32.totalorder %v2584, 15
        %vm3019 = vcmp.eq.s32.totalorder %v2585, 15
        %vm3020 = vcmp.eq.s32.totalorder %v2586, 15
        %vm3021 = vcmp.eq.s32.totalorder %v2587, 15
        %vm3022 = vcmp.eq.s32.totalorder %v2588, 15
        %vm3023 = vcmp.eq.s32.totalorder %v2589, 15
        %vm3024 = vcmp.eq.s32.totalorder %v2590, 15
        %vm3025 = vcmp.eq.s32.totalorder %v2591, 15
        %vm3026 = vcmp.eq.s32.totalorder %v2592, 15
        %vm3027 = vcmp.eq.s32.totalorder %v2593, 15
        %vm3028 = vcmp.eq.s32.totalorder %v2594, 15
        %vm3029 = vcmp.eq.s32.totalorder %v2595, 15
        %vm3030 = vcmp.eq.s32.totalorder %v2596, 15
        %vm3031 = vcmp.eq.s32.totalorder %v2597, 15
        %vm3032 = vcmp.eq.s32.totalorder %v2598, 15
        %vm3033 = vcmp.eq.s32.totalorder %v2599, 15
        %vm3034 = vcmp.eq.s32.totalorder %v2600, 15
        %vm3035 = vcmp.eq.s32.totalorder %v2601, 15
        %vm3036 = vcmp.eq.s32.totalorder %v2602, 15
        %v3037 = vsel %vm3005, 1, 0
        %v3038 = vsel %vm3006, 1, 0
        %v3039 = vsel %vm3007, 1, 0
        %v3040 = vsel %vm3008, 1, 0
        %v3041 = vsel %vm3009, 1, 0
        %v3042 = vsel %vm3010, 1, 0
        %v3043 = vsel %vm3011, 1, 0
        %v3044 = vsel %vm3012, 1, 0
        %v3045 = vsel %vm3013, 1, 0
        %v3046 = vsel %vm3014, 1, 0
        %v3047 = vsel %vm3015, 1, 0
        %v3048 = vsel %vm3016, 1, 0
        %v3049 = vsel %vm3017, 1, 0
        %v3050 = vsel %vm3018, 1, 0
        %v3051 = vsel %vm3019, 1, 0
        %v3052 = vsel %vm3020, 1, 0
        %v3053 = vsel %vm3021, 1, 0
        %v3054 = vsel %vm3022, 1, 0
        %v3055 = vsel %vm3023, 1, 0
        %v3056 = vsel %vm3024, 1, 0
        %v3057 = vsel %vm3025, 1, 0
        %v3058 = vsel %vm3026, 1, 0
        %v3059 = vsel %vm3027, 1, 0
        %v3060 = vsel %vm3028, 1, 0
        %v3061 = vsel %vm3029, 1, 0
        %v3062 = vsel %vm3030, 1, 0
        %v3063 = vsel %vm3031, 1, 0
        %v3064 = vsel %vm3032, 1, 0
        %v3065 = vsel %vm3033, 1, 0
        %v3066 = vsel %vm3034, 1, 0
        %v3067 = vsel %vm3035, 1, 0
        %v3068 = vsel %vm3036, 1, 0
        %vm3069 = vcmp.eq.s32.totalorder %v3037, 1
        %vm3070 = vcmp.eq.s32.totalorder %v3038, 1
        %vm3071 = vcmp.eq.s32.totalorder %v3039, 1
        %vm3072 = vcmp.eq.s32.totalorder %v3040, 1
        %vm3073 = vcmp.eq.s32.totalorder %v3041, 1
        %vm3074 = vcmp.eq.s32.totalorder %v3042, 1
        %vm3075 = vcmp.eq.s32.totalorder %v3043, 1
        %vm3076 = vcmp.eq.s32.totalorder %v3044, 1
        %vm3077 = vcmp.eq.s32.totalorder %v3045, 1
        %vm3078 = vcmp.eq.s32.totalorder %v3046, 1
        %vm3079 = vcmp.eq.s32.totalorder %v3047, 1
        %vm3080 = vcmp.eq.s32.totalorder %v3048, 1
        %vm3081 = vcmp.eq.s32.totalorder %v3049, 1
        %vm3082 = vcmp.eq.s32.totalorder %v3050, 1
        %vm3083 = vcmp.eq.s32.totalorder %v3051, 1
        %vm3084 = vcmp.eq.s32.totalorder %v3052, 1
        %vm3085 = vcmp.eq.s32.totalorder %v3053, 1
        %vm3086 = vcmp.eq.s32.totalorder %v3054, 1
        %vm3087 = vcmp.eq.s32.totalorder %v3055, 1
        %vm3088 = vcmp.eq.s32.totalorder %v3056, 1
        %vm3089 = vcmp.eq.s32.totalorder %v3057, 1
        %vm3090 = vcmp.eq.s32.totalorder %v3058, 1
        %vm3091 = vcmp.eq.s32.totalorder %v3059, 1
        %vm3092 = vcmp.eq.s32.totalorder %v3060, 1
        %vm3093 = vcmp.eq.s32.totalorder %v3061, 1
        %vm3094 = vcmp.eq.s32.totalorder %v3062, 1
        %vm3095 = vcmp.eq.s32.totalorder %v3063, 1
        %vm3096 = vcmp.eq.s32.totalorder %v3064, 1
        %vm3097 = vcmp.eq.s32.totalorder %v3065, 1
        %vm3098 = vcmp.eq.s32.totalorder %v3066, 1
        %vm3099 = vcmp.eq.s32.totalorder %v3067, 1
        %vm3100 = vcmp.eq.s32.totalorder %v3068, 1
        %v3101 = vsel %vm3069, 0.0, %v2735
        %v3102 = vsel %vm3070, 0.0, %v2737
        %v3103 = vsel %vm3071, 0.0, %v2739
        %v3104 = vsel %vm3072, 0.0, %v2741
        %v3105 = vsel %vm3073, 0.0, %v2743
        %v3106 = vsel %vm3074, 0.0, %v2745
        %v3107 = vsel %vm3075, 0.0, %v2747
        %v3108 = vsel %vm3076, 0.0, %v2749
        %v3109 = vsel %vm3077, 0.0, %v2751
        %v3110 = vsel %vm3078, 0.0, %v2753
        %v3111 = vsel %vm3079, 0.0, %v2755
        %v3112 = vsel %vm3080, 0.0, %v2757
        %v3113 = vsel %vm3081, 0.0, %v2759
        %v3114 = vsel %vm3082, 0.0, %v2761
        %v3115 = vsel %vm3083, 0.0, %v2763
        %v3116 = vsel %vm3084, 0.0, %v2765
        %v3117 = vsel %vm3085, 0.0, %v2767
        %v3118 = vsel %vm3086, 0.0, %v2769
        %v3119 = vsel %vm3087, 0.0, %v2771
        %v3120 = vsel %vm3088, 0.0, %v2773
        %v3121 = vsel %vm3089, 0.0, %v2775
        %v3122 = vsel %vm3090, 0.0, %v2777
        %v3123 = vsel %vm3091, 0.0, %v2779
        %v3124 = vsel %vm3092, 0.0, %v2781
        %v3125 = vsel %vm3093, 0.0, %v2783
        %v3126 = vsel %vm3094, 0.0, %v2785
        %v3127 = vsel %vm3095, 0.0, %v2787
        %v3128 = vsel %vm3096, 0.0, %v2789
        %v3129 = vsel %vm3097, 0.0, %v2791
        %v3130 = vsel %vm3098, 0.0, %v2793
        %v3131 = vsel %vm3099, 0.0, %v2795
        %v3132 = vsel %vm3100, 0.0, %v2828
        %v3133 = vpack.c.bf16 %v3102, %v3101
        %v3134 = vpack.c.bf16 %v3104, %v3103
        %v3135 = vpack.c.bf16 %v3106, %v3105
        %v3136 = vpack.c.bf16 %v3108, %v3107
        %v3137 = vpack.c.bf16 %v3110, %v3109
        %v3138 = vpack.c.bf16 %v3112, %v3111
        %v3139 = vpack.c.bf16 %v3114, %v3113
        %v3140 = vpack.c.bf16 %v3116, %v3115
        %v3141 = vpack.c.bf16 %v3118, %v3117
        %v3142 = vpack.c.bf16 %v3120, %v3119
        %v3143 = vpack.c.bf16 %v3122, %v3121
        %v3144 = vpack.c.bf16 %v3124, %v3123
        %v3145 = vpack.c.bf16 %v3126, %v3125
        %v3146 = vpack.c.bf16 %v3128, %v3127
        %v3147 = vpack.c.bf16 %v3130, %v3129
        %v3148 = vpack.c.bf16 %v3132, %v3131
        %3149 = vst [vmem:[#allocation3 + $0x28] sm:$0xff] %v3133
        %3150 = vst [vmem:[#allocation3 + $0x40] sm:$0xff] %v3134
        %3151 = vst [vmem:[#allocation3 + $0x58] sm:$0xff] %v3135
        %3152 = vst [vmem:[#allocation3 + $0x70] sm:$0xff] %v3136
        %3153 = vst [vmem:[#allocation3 + $0x88] sm:$0xff] %v3137
        %3154 = vst [vmem:[#allocation3 + $0xa0] sm:$0xff] %v3138
        %3155 = vst [vmem:[#allocation3 + $0xb8] sm:$0xff] %v3139
        %3156 = vst [vmem:[#allocation3 + $0xd0] sm:$0xff] %v3140
        %3157 = vst [vmem:[#allocation3 + $0xe8] sm:$0xff] %v3141
        %3158 = vst [vmem:[#allocation3 + $0x100] sm:$0xff] %v3142
        %3159 = vst [vmem:[#allocation3 + $0x118] sm:$0xff] %v3143
        %3160 = vst [vmem:[#allocation3 + $0x130] sm:$0xff] %v3144
        %3161 = vst [vmem:[#allocation3 + $0x148] sm:$0xff] %v3145
        %3162 = vst [vmem:[#allocation3 + $0x160] sm:$0xff] %v3146
        %3163 = vst [vmem:[#allocation3 + $0x178] sm:$0xff] %v3147
        %3164 = vst [vmem:[#allocation3 + $0x190] sm:$0xff] %v3148
        %v3165 = vld [vmem:[%s357 + $0x10] sm:$0xff]
        %v3166 = vld [vmem:[%s357 + $0x18] sm:$0xff]
        %v3167 = vld [vmem:[%s357 + $0x20] sm:$0xff]
        %v3168 = vld [vmem:[%s357 + $0x28] sm:$0xff]
        %v3169 = vld [vmem:[%s357 + $0x30] sm:$0xff]
        %v3170 = vld [vmem:[%s357 + $0x38] sm:$0xff]
        %v3171 = vld [vmem:[%s357 + $0x40] sm:$0xff]
        %v3172 = vld [vmem:[%s357 + $0x48] sm:$0xff]
        %v3173 = vld [vmem:[%s357 + $0x50] sm:$0xff]
        %v3174 = vld [vmem:[%s357 + $0x58] sm:$0xff]
        %v3175 = vld [vmem:[%s357 + $0x60] sm:$0xff]
        %v3176 = vld [vmem:[%s357 + $0x68] sm:$0xff]
        %v3177 = vld [vmem:[%s357 + $0x70] sm:$0xff]
        %v3178 = vld [vmem:[%s357 + $0x78] sm:$0xff]
        %v3179 = vld [vmem:[%s357 + $0x80] sm:$0xff]
        %v3180 = vld [vmem:[%s357 + $0x88] sm:$0xff]
        %v3181 = vld [vmem:[%s357 + $0x90] sm:$0xff]
        %v3182 = vld [vmem:[%s357 + $0x98] sm:$0xff]
        %v3183 = vld [vmem:[%s357 + $0xa0] sm:$0xff]
        %v3184 = vld [vmem:[%s357 + $0xa8] sm:$0xff]
        %v3185 = vld [vmem:[%s357 + $0xb0] sm:$0xff]
        %v3186 = vld [vmem:[%s357 + $0xb8] sm:$0xff]
        %v3187 = vld [vmem:[%s357 + $0xc0] sm:$0xff]
        %v3188 = vld [vmem:[%s357 + $0xc8] sm:$0xff]
        %v3189 = vld [vmem:[%s357 + $0xd0] sm:$0xff]
        %v3190 = vld [vmem:[%s357 + $0xd8] sm:$0xff]
        %v3191 = vld [vmem:[%s357 + $0xe0] sm:$0xff]
        %v3192 = vld [vmem:[%s357 + $0xe8] sm:$0xff]
        %v3193 = vld [vmem:[%s357 + $0xf0] sm:$0xff]
        %v3194 = vld [vmem:[%s357 + $0xf8] sm:$0xff]
        %v3195 = vld [vmem:[%s357 + $0x100] sm:$0xff]
        %v3196 = vld [vmem:[%s357 + $0x108] sm:$0xff]
        %v3197 = vld [vmem:[%s5] sm:$0xf]
        %v3198 = vld [vmem:[%s5 + $0x4] sm:$0xf]
        %v3199 = vld [vmem:[%s5 + $0x8] sm:$0xf]
        %v3200 = vld [vmem:[%s5 + $0xc] sm:$0xf]
        %v3201 = vld [vmem:[%s5 + $0x10] sm:$0xf]
        %v3202 = vld [vmem:[%s5 + $0x14] sm:$0xf]
        %v3203 = vld [vmem:[%s5 + $0x18] sm:$0xf]
        %v3204 = vld [vmem:[%s5 + $0x1c] sm:$0xf]
        %v3205 = vld [vmem:[%s5 + $0x20] sm:$0xf]
        %v3206 = vld [vmem:[%s5 + $0x24] sm:$0xf]
        %v3207 = vld [vmem:[%s5 + $0x28] sm:$0xf]
        %v3208 = vld [vmem:[%s5 + $0x2c] sm:$0xf]
        %v3209 = vld [vmem:[%s5 + $0x30] sm:$0xf]
        %v3210 = vld [vmem:[%s5 + $0x34] sm:$0xf]
        %v3211 = vld [vmem:[%s5 + $0x38] sm:$0xf]
        %v3212 = vld [vmem:[%s5 + $0x3c] sm:$0xf]
        %v3213 = vld [vmem:[%s5 + $0x40] sm:$0xf]
        %v3214 = vld [vmem:[%s5 + $0x44] sm:$0xf]
        %v3215 = vld [vmem:[%s5 + $0x48] sm:$0xf]
        %v3216 = vld [vmem:[%s5 + $0x4c] sm:$0xf]
        %v3217 = vld [vmem:[%s5 + $0x50] sm:$0xf]
        %v3218 = vld [vmem:[%s5 + $0x54] sm:$0xf]
        %v3219 = vld [vmem:[%s5 + $0x58] sm:$0xf]
        %v3220 = vld [vmem:[%s5 + $0x5c] sm:$0xf]
        %v3253 = vunpack.c.l.b16 %v3165
        %v3254 = vunpack.c.h.b16 %v3165
        %v3255 = vunpack.c.l.b16 %v3166
        %v3256 = vunpack.c.h.b16 %v3166
        %v3257 = vunpack.c.l.b16 %v3167
        %v3258 = vunpack.c.h.b16 %v3167
        %v3259 = vunpack.c.l.b16 %v3168
        %v3260 = vunpack.c.h.b16 %v3168
        %v3261 = vunpack.c.l.b16 %v3169
        %v3262 = vunpack.c.h.b16 %v3169
        %v3263 = vunpack.c.l.b16 %v3170
        %v3264 = vunpack.c.h.b16 %v3170
        %v3265 = vunpack.c.l.b16 %v3171
        %v3266 = vunpack.c.h.b16 %v3171
        %v3267 = vunpack.c.l.b16 %v3172
        %v3268 = vunpack.c.h.b16 %v3172
        %v3269 = vunpack.c.l.b16 %v3173
        %v3270 = vunpack.c.h.b16 %v3173
        %v3271 = vunpack.c.l.b16 %v3174
        %v3272 = vunpack.c.h.b16 %v3174
        %v3273 = vunpack.c.l.b16 %v3175
        %v3274 = vunpack.c.h.b16 %v3175
        %v3275 = vunpack.c.l.b16 %v3176
        %v3276 = vunpack.c.h.b16 %v3176
        %v3277 = vunpack.c.l.b16 %v3177
        %v3278 = vunpack.c.h.b16 %v3177
        %v3279 = vunpack.c.l.b16 %v3178
        %v3280 = vunpack.c.h.b16 %v3178
        %v3281 = vunpack.c.l.b16 %v3179
        %v3282 = vunpack.c.h.b16 %v3179
        %v3283 = vunpack.c.l.b16 %v3180
        %v3284 = vunpack.c.h.b16 %v3180
        %v3285 = vunpack.c.l.b16 %v3181
        %v3286 = vunpack.c.h.b16 %v3181
        %v3287 = vunpack.c.l.b16 %v3182
        %v3288 = vunpack.c.h.b16 %v3182
        %v3289 = vunpack.c.l.b16 %v3183
        %v3290 = vunpack.c.h.b16 %v3183
        %v3291 = vunpack.c.l.b16 %v3184
        %v3292 = vunpack.c.h.b16 %v3184
        %v3293 = vunpack.c.l.b16 %v3185
        %v3294 = vunpack.c.h.b16 %v3185
        %v3295 = vunpack.c.l.b16 %v3186
        %v3296 = vunpack.c.h.b16 %v3186
        %v3297 = vunpack.c.l.b16 %v3187
        %v3298 = vunpack.c.h.b16 %v3187
        %v3299 = vunpack.c.l.b16 %v3188
        %v3300 = vunpack.c.h.b16 %v3188
        %v3301 = vunpack.c.l.b16 %v3189
        %v3302 = vunpack.c.h.b16 %v3189
        %v3303 = vunpack.c.l.b16 %v3190
        %v3304 = vunpack.c.h.b16 %v3190
        %v3305 = vunpack.c.l.b16 %v3191
        %v3306 = vunpack.c.h.b16 %v3191
        %v3307 = vunpack.c.l.b16 %v3192
        %v3308 = vunpack.c.h.b16 %v3192
        %v3309 = vunpack.c.l.b16 %v3193
        %v3310 = vunpack.c.h.b16 %v3193
        %v3311 = vunpack.c.l.b16 %v3194
        %v3312 = vunpack.c.h.b16 %v3194
        %v3313 = vunpack.c.l.b16 %v3195
        %v3314 = vunpack.c.h.b16 %v3195
        %v3315 = vunpack.c.l.b16 %v3196
        %v3316 = vunpack.c.h.b16 %v3196
        %v3317 = vpack.c.b16 %v3255, %v3253
        %v3318 = vpack.c.b16 %v3256, %v3254
        %v3319 = vpack.c.b16 %v3259, %v3257
        %v3320 = vpack.c.b16 %v3260, %v3258
        %v3321 = vpack.c.b16 %v3263, %v3261
        %v3322 = vpack.c.b16 %v3264, %v3262
        %v3323 = vpack.c.b16 %v3267, %v3265
        %v3324 = vpack.c.b16 %v3268, %v3266
        %v3325 = vpack.c.b16 %v3271, %v3269
        %v3326 = vpack.c.b16 %v3272, %v3270
        %v3327 = vpack.c.b16 %v3275, %v3273
        %v3328 = vpack.c.b16 %v3276, %v3274
        %v3329 = vpack.c.b16 %v3279, %v3277
        %v3330 = vpack.c.b16 %v3280, %v3278
        %v3331 = vpack.c.b16 %v3283, %v3281
        %v3332 = vpack.c.b16 %v3284, %v3282
        %v3333 = vpack.c.b16 %v3287, %v3285
        %v3334 = vpack.c.b16 %v3288, %v3286
        %v3335 = vpack.c.b16 %v3291, %v3289
        %v3336 = vpack.c.b16 %v3292, %v3290
        %v3337 = vpack.c.b16 %v3295, %v3293
        %v3338 = vpack.c.b16 %v3296, %v3294
        %v3339 = vpack.c.b16 %v3299, %v3297
        %v3340 = vpack.c.b16 %v3300, %v3298
        %v3341 = vpack.c.b16 %v3303, %v3301
        %v3342 = vpack.c.b16 %v3304, %v3302
        %v3343 = vpack.c.b16 %v3307, %v3305
        %v3344 = vpack.c.b16 %v3308, %v3306
        %v3345 = vpack.c.b16 %v3311, %v3309
        %v3346 = vpack.c.b16 %v3312, %v3310
        %v3347 = vpack.c.b16 %v3315, %v3313
        %v3348 = vpack.c.b16 %v3316, %v3314
        %v3389 = vunpack.c.l.b16 %v3197
        %v3390 = vunpack.c.l.b16 %v3198
        %v3391 = vunpack.c.l.b16 %v3199
        %v3392 = vunpack.c.l.b16 %v3200
        %v3393 = vunpack.c.l.b16 %v3201
        %v3394 = vunpack.c.l.b16 %v3202
        %v3395 = vunpack.c.l.b16 %v3203
        %v3396 = vunpack.c.l.b16 %v3204
        %v3397 = vunpack.c.l.b16 %v3205
        %v3398 = vunpack.c.l.b16 %v3206
        %v3399 = vunpack.c.l.b16 %v3207
        %v3400 = vunpack.c.l.b16 %v3208
        %v3401 = vunpack.c.l.b16 %v3209
        %v3402 = vunpack.c.l.b16 %v3210
        %v3403 = vunpack.c.l.b16 %v3211
        %v3404 = vunpack.c.l.b16 %v3212
        %v3405 = vunpack.c.l.b16 %v3213
        %v3406 = vunpack.c.l.b16 %v3214
        %v3407 = vunpack.c.l.b16 %v3215
        %v3408 = vunpack.c.l.b16 %v3216
        %v3409 = vunpack.c.l.b16 %v3217
        %v3410 = vunpack.c.l.b16 %v3218
        %v3411 = vunpack.c.l.b16 %v3219
        %v3412 = vunpack.c.l.b16 %v3220
        %v3413 = vpack.c.b16 %v3390, %v3389
        %v3414 = vpack.c.b16 %v3392, %v3391
        %v3415 = vpack.c.b16 %v3394, %v3393
        %v3416 = vpack.c.b16 %v3396, %v3395
        %v3417 = vpack.c.b16 %v3398, %v3397
        %v3418 = vpack.c.b16 %v3400, %v3399
        %v3419 = vpack.c.b16 %v3402, %v3401
        %v3420 = vpack.c.b16 %v3404, %v3403
        %v3421 = vpack.c.b16 %v3406, %v3405
        %v3422 = vpack.c.b16 %v3408, %v3407
        %v3423 = vpack.c.b16 %v3410, %v3409
        %v3424 = vpack.c.b16 %v3412, %v3411
        %v3438 = vsel %vm631, %v3318, 0
        %v3441 = vsel %vm631, %v3320, 0
        %v3444 = vsel %vm631, %v3322, 0
        %v3447 = vsel %vm631, %v3324, 0
        %v3450 = vsel %vm631, %v3326, 0
        %v3453 = vsel %vm631, %v3328, 0
        %v3456 = vsel %vm631, %v3330, 0
        %v3459 = vsel %vm631, %v3332, 0
        %v3462 = vsel %vm631, %v3334, 0
        %v3465 = vsel %vm631, %v3336, 0
        %v3468 = vsel %vm631, %v3338, 0
        %v3471 = vsel %vm631, %v3340, 0
        %v3474 = vsel %vm631, %v3342, 0
        %v3477 = vsel %vm631, %v3344, 0
        %v3480 = vsel %vm631, %v3346, 0
        %v3483 = vsel %vm631, %v3348, 0
        %3485 = vmatprep.subr.bf16.mxu0 0
        %3486 = vmatpush1.bf16.msra.mxu0 %v3413
        %3487 = vmatprep.subr.bf16.mxu0 0
        %3488 = vmatpush1.bf16.msra.mxu0 %v3414
        %3489 = vmatprep.subr.bf16.mxu0 0
        %3490 = vmatpush1.bf16.msra.mxu0 %v3415
        %3491 = vmatprep.subr.bf16.mxu0 0
        %3492 = vmatpush1.bf16.msra.mxu0 %v3416
        %3493 = vmatprep.subr.bf16.mxu0 0
        %3494 = vmatpush1.bf16.msra.mxu0 %v3417
        %3495 = vmatprep.subr.bf16.mxu0 0
        %3496 = vmatpush1.bf16.msra.mxu0 %v3418
        %3497 = vmatprep.subr.bf16.mxu0 0
        %3498 = vmatpush1.bf16.msra.mxu0 %v3419
        %3499 = vmatprep.subr.bf16.mxu0 0
        %3500 = vmatpush1.bf16.msra.mxu0 %v3420
        %3501 = vmatprep.subr.bf16.mxu0 0
        %3502 = vmatpush1.bf16.msra.mxu0 %v3421
        %3503 = vmatprep.subr.bf16.mxu0 0
        %3504 = vmatpush1.bf16.msra.mxu0 %v3422
        %3505 = vmatprep.subr.bf16.mxu0 0
        %3506 = vmatpush1.bf16.msra.mxu0 %v3423
        %3507 = vmatprep.subr.bf16.mxu0 0
        %3508 = vmatpush1.bf16.msra.mxu0 %v3424
        %3509 = vmatprep.subr.bf16.mxu0 0
        %3510 = vmatpush1.bf16.msra.mxu0 0
        %3511 = vmatprep.subr.bf16.mxu0 0
        %3512 = vmatpush1.bf16.msra.mxu0 0
        %3513 = vmatprep.subr.bf16.mxu0 0
        %3514 = vmatpush1.bf16.msra.mxu0 0
        %3515 = vmatprep.subr.bf16.mxu0 0
        %3516 = vmatpush1.bf16.msra.mxu0 0
        %3517 = vmatprep.mubr.bf16.mxu0 %v3438
        %3518 = vmatmul.mubr.bf16.gmra.mrb[0].mxu0 %v3317
        %v3519 = vpop.f32.mrb[0].mxu0
        %v3520 = vadd.f32 0.0, %v3519
        %v3521 = vpop.f32.mrb[0].mxu0
        %v3522 = vpop.f32.mrb[0].mxu0
        %v3523 = vadd.f32 0.0, %v3522
        %v3524 = vpop.f32.mrb[0].mxu0
        %3525 = vmatprep.mubr.bf16.mxu0 %v3441
        %3526 = vmatmul.mubr.bf16.gmra.mrb[0].mxu0 %v3319
        %v3527 = vpop.f32.mrb[0].mxu0
        %v3528 = vadd.f32 0.0, %v3527
        %v3529 = vpop.f32.mrb[0].mxu0
        %v3530 = vpop.f32.mrb[0].mxu0
        %v3531 = vadd.f32 0.0, %v3530
        %v3532 = vpop.f32.mrb[0].mxu0
        %3533 = vmatprep.mubr.bf16.mxu0 %v3444
        %3534 = vmatmul.mubr.bf16.gmra.mrb[0].mxu0 %v3321
        %v3535 = vpop.f32.mrb[0].mxu0
        %v3536 = vadd.f32 0.0, %v3535
        %v3537 = vpop.f32.mrb[0].mxu0
        %v3538 = vpop.f32.mrb[0].mxu0
        %v3539 = vadd.f32 0.0, %v3538
        %v3540 = vpop.f32.mrb[0].mxu0
        %3541 = vmatprep.mubr.bf16.mxu0 %v3447
        %3542 = vmatmul.mubr.bf16.gmra.mrb[0].mxu0 %v3323
        %v3543 = vpop.f32.mrb[0].mxu0
        %v3544 = vadd.f32 0.0, %v3543
        %v3545 = vpop.f32.mrb[0].mxu0
        %v3546 = vpop.f32.mrb[0].mxu0
        %v3547 = vadd.f32 0.0, %v3546
        %v3548 = vpop.f32.mrb[0].mxu0
        %3549 = vmatprep.mubr.bf16.mxu0 %v3450
        %3550 = vmatmul.mubr.bf16.gmra.mrb[0].mxu0 %v3325
        %v3551 = vpop.f32.mrb[0].mxu0
        %v3552 = vadd.f32 0.0, %v3551
        %v3553 = vpop.f32.mrb[0].mxu0
        %v3554 = vpop.f32.mrb[0].mxu0
        %v3555 = vadd.f32 0.0, %v3554
        %v3556 = vpop.f32.mrb[0].mxu0
        %3557 = vmatprep.mubr.bf16.mxu0 %v3453
        %3558 = vmatmul.mubr.bf16.gmra.mrb[0].mxu0 %v3327
        %v3559 = vpop.f32.mrb[0].mxu0
        %v3560 = vadd.f32 0.0, %v3559
        %v3561 = vpop.f32.mrb[0].mxu0
        %v3562 = vpop.f32.mrb[0].mxu0
        %v3563 = vadd.f32 0.0, %v3562
        %v3564 = vpop.f32.mrb[0].mxu0
        %3565 = vmatprep.mubr.bf16.mxu0 %v3456
        %3566 = vmatmul.mubr.bf16.gmra.mrb[0].mxu0 %v3329
        %v3567 = vpop.f32.mrb[0].mxu0
        %v3568 = vadd.f32 0.0, %v3567
        %v3569 = vpop.f32.mrb[0].mxu0
        %v3570 = vpop.f32.mrb[0].mxu0
        %v3571 = vadd.f32 0.0, %v3570
        %v3572 = vpop.f32.mrb[0].mxu0
        %3573 = vmatprep.mubr.bf16.mxu0 %v3459
        %3574 = vmatmul.mubr.bf16.gmra.mrb[0].mxu0 %v3331
        %v3575 = vpop.f32.mrb[0].mxu0
        %v3576 = vadd.f32 0.0, %v3575
        %v3577 = vpop.f32.mrb[0].mxu0
        %v3578 = vpop.f32.mrb[0].mxu0
        %v3579 = vadd.f32 0.0, %v3578
        %v3580 = vpop.f32.mrb[0].mxu0
        %3581 = vmatprep.mubr.bf16.mxu0 %v3462
        %3582 = vmatmul.mubr.bf16.gmra.mrb[0].mxu0 %v3333
        %v3583 = vpop.f32.mrb[0].mxu0
        %v3584 = vadd.f32 0.0, %v3583
        %v3585 = vpop.f32.mrb[0].mxu0
        %v3586 = vpop.f32.mrb[0].mxu0
        %v3587 = vadd.f32 0.0, %v3586
        %v3588 = vpop.f32.mrb[0].mxu0
        %3589 = vmatprep.mubr.bf16.mxu0 %v3465
        %3590 = vmatmul.mubr.bf16.gmra.mrb[0].mxu0 %v3335
        %v3591 = vpop.f32.mrb[0].mxu0
        %v3592 = vadd.f32 0.0, %v3591
        %v3593 = vpop.f32.mrb[0].mxu0
        %v3594 = vpop.f32.mrb[0].mxu0
        %v3595 = vadd.f32 0.0, %v3594
        %v3596 = vpop.f32.mrb[0].mxu0
        %3597 = vmatprep.mubr.bf16.mxu0 %v3468
        %3598 = vmatmul.mubr.bf16.gmra.mrb[0].mxu0 %v3337
        %v3599 = vpop.f32.mrb[0].mxu0
        %v3600 = vadd.f32 0.0, %v3599
        %v3601 = vpop.f32.mrb[0].mxu0
        %v3602 = vpop.f32.mrb[0].mxu0
        %v3603 = vadd.f32 0.0, %v3602
        %v3604 = vpop.f32.mrb[0].mxu0
        %3605 = vmatprep.mubr.bf16.mxu0 %v3471
        %3606 = vmatmul.mubr.bf16.gmra.mrb[0].mxu0 %v3339
        %v3607 = vpop.f32.mrb[0].mxu0
        %v3608 = vadd.f32 0.0, %v3607
        %v3609 = vpop.f32.mrb[0].mxu0
        %v3610 = vpop.f32.mrb[0].mxu0
        %v3611 = vadd.f32 0.0, %v3610
        %v3612 = vpop.f32.mrb[0].mxu0
        %3613 = vmatprep.mubr.bf16.mxu0 %v3474
        %3614 = vmatmul.mubr.bf16.gmra.mrb[0].mxu0 %v3341
        %v3615 = vpop.f32.mrb[0].mxu0
        %v3616 = vadd.f32 0.0, %v3615
        %v3617 = vpop.f32.mrb[0].mxu0
        %v3618 = vpop.f32.mrb[0].mxu0
        %v3619 = vadd.f32 0.0, %v3618
        %v3620 = vpop.f32.mrb[0].mxu0
        %3621 = vmatprep.mubr.bf16.mxu0 %v3477
        %3622 = vmatmul.mubr.bf16.gmra.mrb[0].mxu0 %v3343
        %v3623 = vpop.f32.mrb[0].mxu0
        %v3624 = vadd.f32 0.0, %v3623
        %v3625 = vpop.f32.mrb[0].mxu0
        %v3626 = vpop.f32.mrb[0].mxu0
        %v3627 = vadd.f32 0.0, %v3626
        %v3628 = vpop.f32.mrb[0].mxu0
        %3629 = vmatprep.mubr.bf16.mxu0 %v3480
        %3630 = vmatmul.mubr.bf16.gmra.mrb[0].mxu0 %v3345
        %v3631 = vpop.f32.mrb[0].mxu0
        %v3632 = vadd.f32 0.0, %v3631
        %v3633 = vpop.f32.mrb[0].mxu0
        %v3634 = vpop.f32.mrb[0].mxu0
        %v3635 = vadd.f32 0.0, %v3634
        %v3636 = vpop.f32.mrb[0].mxu0
        %3637 = vmatprep.mubr.bf16.mxu0 %v3483
        %3638 = vmatmul.mubr.bf16.gmra.mrb[0].mxu0 %v3347
        %v3639 = vpop.f32.mrb[0].mxu0
        %v3640 = vadd.f32 0.0, %v3639
        %v3641 = vpop.f32.mrb[0].mxu0
        %v3642 = vpop.f32.mrb[0].mxu0
        %v3643 = vadd.f32 0.0, %v3642
        %v3644 = vpop.f32.mrb[0].mxu0
        %3645 = vdwg.mxu0
        %3646 = vst [vmem:[#allocation2] sm:$0xff] %v3520
        %3647 = vst [vmem:[#allocation2 + $0x8] sm:$0xff] %v3523
        %3648 = vst [vmem:[#allocation2 + $0x10] sm:$0xff] %v3528
        %3649 = vst [vmem:[#allocation2 + $0x18] sm:$0xff] %v3531
        %3650 = vst [vmem:[#allocation2 + $0x20] sm:$0xff] %v3536
        %3651 = vst [vmem:[#allocation2 + $0x28] sm:$0xff] %v3539
        %3652 = vst [vmem:[#allocation2 + $0x30] sm:$0xff] %v3544
        %3653 = vst [vmem:[#allocation2 + $0x38] sm:$0xff] %v3547
        %3654 = vst [vmem:[#allocation2 + $0x40] sm:$0xff] %v3552
        %3655 = vst [vmem:[#allocation2 + $0x48] sm:$0xff] %v3555
        %3656 = vst [vmem:[#allocation2 + $0x50] sm:$0xff] %v3560
        %3657 = vst [vmem:[#allocation2 + $0x58] sm:$0xff] %v3563
        %3658 = vst [vmem:[#allocation2 + $0x60] sm:$0xff] %v3568
        %3659 = vst [vmem:[#allocation2 + $0x68] sm:$0xff] %v3571
        %3660 = vst [vmem:[#allocation2 + $0x70] sm:$0xff] %v3576
        %3661 = vst [vmem:[#allocation2 + $0x78] sm:$0xff] %v3579
        %3662 = vst [vmem:[#allocation2 + $0x80] sm:$0xff] %v3584
        %3663 = vst [vmem:[#allocation2 + $0x88] sm:$0xff] %v3587
        %3664 = vst [vmem:[#allocation2 + $0x90] sm:$0xff] %v3592
        %3665 = vst [vmem:[#allocation2 + $0x98] sm:$0xff] %v3595
        %3666 = vst [vmem:[#allocation2 + $0xa0] sm:$0xff] %v3600
        %3667 = vst [vmem:[#allocation2 + $0xa8] sm:$0xff] %v3603
        %3668 = vst [vmem:[#allocation2 + $0xb0] sm:$0xff] %v3608
        %3669 = vst [vmem:[#allocation2 + $0xb8] sm:$0xff] %v3611
        %3670 = vst [vmem:[#allocation2 + $0xc0] sm:$0xff] %v3616
        %3671 = vst [vmem:[#allocation2 + $0xc8] sm:$0xff] %v3619
        %3672 = vst [vmem:[#allocation2 + $0xd0] sm:$0xff] %v3624
        %3673 = vst [vmem:[#allocation2 + $0xd8] sm:$0xff] %v3627
        %3674 = vst [vmem:[#allocation2 + $0xe0] sm:$0xff] %v3632
        %3675 = vst [vmem:[#allocation2 + $0xe8] sm:$0xff] %v3635
        %3676 = vst [vmem:[#allocation2 + $0xf0] sm:$0xff] %v3640
        %3677 = vst [vmem:[#allocation2 + $0xf8] sm:$0xff] %v3643
        %v3678 = vld [vmem:[#allocation2] sm:$0xff]
        %v3679 = vld [vmem:[#allocation2 + $0x8] sm:$0xff]
        %v3680 = vld [vmem:[#allocation2 + $0x10] sm:$0xff]
        %v3681 = vld [vmem:[#allocation2 + $0x18] sm:$0xff]
        %v3682 = vld [vmem:[#allocation2 + $0x20] sm:$0xff]
        %v3683 = vld [vmem:[#allocation2 + $0x28] sm:$0xff]
        %v3684 = vld [vmem:[#allocation2 + $0x30] sm:$0xff]
        %v3685 = vld [vmem:[#allocation2 + $0x38] sm:$0xff]
        %v3686 = vld [vmem:[#allocation2 + $0x40] sm:$0xff]
        %v3687 = vld [vmem:[#allocation2 + $0x48] sm:$0xff]
        %v3688 = vld [vmem:[#allocation2 + $0x50] sm:$0xff]
        %v3689 = vld [vmem:[#allocation2 + $0x58] sm:$0xff]
        %v3690 = vld [vmem:[#allocation2 + $0x60] sm:$0xff]
        %v3691 = vld [vmem:[#allocation2 + $0x68] sm:$0xff]
        %v3692 = vld [vmem:[#allocation2 + $0x70] sm:$0xff]
        %v3693 = vld [vmem:[#allocation2 + $0x78] sm:$0xff]
        %v3694 = vld [vmem:[#allocation2 + $0x80] sm:$0xff]
        %v3695 = vld [vmem:[#allocation2 + $0x88] sm:$0xff]
        %v3696 = vld [vmem:[#allocation2 + $0x90] sm:$0xff]
        %v3697 = vld [vmem:[#allocation2 + $0x98] sm:$0xff]
        %v3698 = vld [vmem:[#allocation2 + $0xa0] sm:$0xff]
        %v3699 = vld [vmem:[#allocation2 + $0xa8] sm:$0xff]
        %v3700 = vld [vmem:[#allocation2 + $0xb0] sm:$0xff]
        %v3701 = vld [vmem:[#allocation2 + $0xb8] sm:$0xff]
        %v3702 = vld [vmem:[#allocation2 + $0xc0] sm:$0xff]
        %v3703 = vld [vmem:[#allocation2 + $0xc8] sm:$0xff]
        %v3704 = vld [vmem:[#allocation2 + $0xd0] sm:$0xff]
        %v3705 = vld [vmem:[#allocation2 + $0xd8] sm:$0xff]
        %v3706 = vld [vmem:[#allocation2 + $0xe0] sm:$0xff]
        %v3707 = vld [vmem:[#allocation2 + $0xe8] sm:$0xff]
        %v3708 = vld [vmem:[#allocation2 + $0xf0] sm:$0xff]
        %v3709 = vld [vmem:[#allocation2 + $0xf8] sm:$0xff]
        %v3710 = vld [vmem:[#allocation3] sm:$0xff]
        %v3711 = vld [vmem:[#allocation3 + $0x8] sm:$0xff]
        %v3712 = vld [vmem:[#allocation3 + $0x10] sm:$0xff]
        %v3713 = vld [vmem:[#allocation3 + $0x18] sm:$0xff]
        %v3714 = vld [vmem:[#allocation3 + $0x20] sm:$0xff]
        %v3715 = vld [vmem:[#allocation3 + $0x28] sm:$0xff]
        %v3716 = vld [vmem:[#allocation3 + $0x30] sm:$0xff]
        %v3717 = vld [vmem:[#allocation3 + $0x38] sm:$0xff]
        %v3718 = vld [vmem:[#allocation3 + $0x40] sm:$0xff]
        %v3719 = vld [vmem:[#allocation3 + $0x48] sm:$0xff]
        %v3720 = vld [vmem:[#allocation3 + $0x50] sm:$0xff]
        %v3721 = vld [vmem:[#allocation3 + $0x58] sm:$0xff]
        %v3722 = vld [vmem:[#allocation3 + $0x60] sm:$0xff]
        %v3723 = vld [vmem:[#allocation3 + $0x68] sm:$0xff]
        %v3724 = vld [vmem:[#allocation3 + $0x70] sm:$0xff]
        %v3725 = vld [vmem:[#allocation3 + $0x78] sm:$0xff]
        %v3726 = vld [vmem:[#allocation3 + $0x80] sm:$0xff]
        %v3727 = vld [vmem:[#allocation3 + $0x88] sm:$0xff]
        %v3728 = vld [vmem:[#allocation3 + $0x90] sm:$0xff]
        %v3729 = vld [vmem:[#allocation3 + $0x98] sm:$0xff]
        %v3730 = vld [vmem:[#allocation3 + $0xa0] sm:$0xff]
        %v3731 = vld [vmem:[#allocation3 + $0xa8] sm:$0xff]
        %v3732 = vld [vmem:[#allocation3 + $0xb0] sm:$0xff]
        %v3733 = vld [vmem:[#allocation3 + $0xb8] sm:$0xff]
        %v3734 = vld [vmem:[#allocation3 + $0xc0] sm:$0xff]
        %v3735 = vld [vmem:[#allocation3 + $0xc8] sm:$0xff]
        %v3736 = vld [vmem:[#allocation3 + $0xd0] sm:$0xff]
        %v3737 = vld [vmem:[#allocation3 + $0xd8] sm:$0xff]
        %v3738 = vld [vmem:[#allocation3 + $0xe0] sm:$0xff]
        %v3739 = vld [vmem:[#allocation3 + $0xe8] sm:$0xff]
        %v3740 = vld [vmem:[#allocation3 + $0xf0] sm:$0xff]
        %v3741 = vld [vmem:[#allocation3 + $0xf8] sm:$0xff]
        %v3742 = vld [vmem:[#allocation3 + $0x100] sm:$0xff]
        %v3743 = vld [vmem:[#allocation3 + $0x108] sm:$0xff]
        %v3744 = vld [vmem:[#allocation3 + $0x110] sm:$0xff]
        %v3745 = vld [vmem:[#allocation3 + $0x118] sm:$0xff]
        %v3746 = vld [vmem:[#allocation3 + $0x120] sm:$0xff]
        %v3747 = vld [vmem:[#allocation3 + $0x128] sm:$0xff]
        %v3748 = vld [vmem:[#allocation3 + $0x130] sm:$0xff]
        %v3749 = vld [vmem:[#allocation3 + $0x138] sm:$0xff]
        %v3750 = vld [vmem:[#allocation3 + $0x140] sm:$0xff]
        %v3751 = vld [vmem:[#allocation3 + $0x148] sm:$0xff]
        %v3752 = vld [vmem:[#allocation3 + $0x150] sm:$0xff]
        %v3753 = vld [vmem:[#allocation3 + $0x158] sm:$0xff]
        %v3754 = vld [vmem:[#allocation3 + $0x160] sm:$0xff]
        %v3755 = vld [vmem:[#allocation3 + $0x168] sm:$0xff]
        %v3756 = vld [vmem:[#allocation3 + $0x170] sm:$0xff]
        %v3757 = vld [vmem:[#allocation3 + $0x178] sm:$0xff]
        %v3758 = vld [vmem:[%s3] sm:$0xf]
        %v3759 = vld [vmem:[%s3 + $0x4] sm:$0xf]
        %v3760 = vld [vmem:[%s3 + $0x8] sm:$0xf]
        %v3761 = vld [vmem:[%s3 + $0xc] sm:$0xf]
        %v3762 = vld [vmem:[%s3 + $0x10] sm:$0xf]
        %v3763 = vld [vmem:[%s3 + $0x14] sm:$0xf]
        %v3764 = vld [vmem:[%s3 + $0x18] sm:$0xf]
        %v3765 = vld [vmem:[%s3 + $0x1c] sm:$0xf]
        %v3766 = vld [vmem:[%s3 + $0x20] sm:$0xf]
        %v3767 = vld [vmem:[%s3 + $0x24] sm:$0xf]
        %v3768 = vld [vmem:[%s3 + $0x28] sm:$0xf]
        %v3769 = vld [vmem:[%s3 + $0x2c] sm:$0xf]
        %v3770 = vld [vmem:[%s3 + $0x30] sm:$0xf]
        %v3771 = vld [vmem:[%s3 + $0x34] sm:$0xf]
        %v3772 = vld [vmem:[%s3 + $0x38] sm:$0xf]
        %v3773 = vld [vmem:[%s3 + $0x3c] sm:$0xf]
        %v3774 = vld [vmem:[%s3 + $0x40] sm:$0xf]
        %v3775 = vld [vmem:[%s3 + $0x44] sm:$0xf]
        %v3776 = vld [vmem:[%s3 + $0x48] sm:$0xf]
        %v3777 = vld [vmem:[%s3 + $0x4c] sm:$0xf]
        %v3778 = vld [vmem:[%s3 + $0x50] sm:$0xf]
        %v3779 = vld [vmem:[%s3 + $0x54] sm:$0xf]
        %v3780 = vld [vmem:[%s3 + $0x58] sm:$0xf]
        %v3781 = vld [vmem:[%s3 + $0x5c] sm:$0xf]
        %v3782 = vld [vmem:[%s3 + $0x60] sm:$0xf]
        %v3783 = vld [vmem:[%s3 + $0x64] sm:$0xf]
        %v3784 = vld [vmem:[%s3 + $0x68] sm:$0xf]
        %v3785 = vld [vmem:[%s3 + $0x6c] sm:$0xf]
        %v3786 = vld [vmem:[%s3 + $0x70] sm:$0xf]
        %v3787 = vld [vmem:[%s3 + $0x74] sm:$0xf]
        %v3788 = vld [vmem:[%s3 + $0x78] sm:$0xf]
        %v3789 = vld [vmem:[%s3 + $0x7c] sm:$0xf]
        %v3790 = vld [vmem:[%s3 + $0x80] sm:$0xf]
        %v3791 = vld [vmem:[%s3 + $0x84] sm:$0xf]
        %v3792 = vld [vmem:[%s3 + $0x88] sm:$0xf]
        %v3793 = vld [vmem:[%s3 + $0x8c] sm:$0xf]
        %v3794 = vld [vmem:[%s3 + $0x90] sm:$0xf]
        %v3795 = vld [vmem:[%s3 + $0x94] sm:$0xf]
        %v3796 = vld [vmem:[%s3 + $0x98] sm:$0xf]
        %v3797 = vld [vmem:[%s3 + $0x9c] sm:$0xf]
        %v3798 = vld [vmem:[%s3 + $0xa0] sm:$0xf]
        %v3799 = vld [vmem:[%s3 + $0xa4] sm:$0xf]
        %v3800 = vld [vmem:[%s3 + $0xa8] sm:$0xf]
        %v3801 = vld [vmem:[%s3 + $0xac] sm:$0xf]
        %v3802 = vld [vmem:[%s3 + $0xb0] sm:$0xf]
        %v3803 = vld [vmem:[%s3 + $0xb4] sm:$0xf]
        %v3804 = vld [vmem:[%s3 + $0xb8] sm:$0xf]
        %v3805 = vld [vmem:[%s3 + $0xbc] sm:$0xf]
        %v3854 = vunpack.c.l.b16 %v3758
        %v3855 = vunpack.c.l.b16 %v3759
        %v3856 = vunpack.c.l.b16 %v3760
        %v3857 = vunpack.c.l.b16 %v3761
        %v3858 = vunpack.c.l.b16 %v3762
        %v3859 = vunpack.c.l.b16 %v3763
        %v3860 = vunpack.c.l.b16 %v3764
        %v3861 = vunpack.c.l.b16 %v3765
        %v3862 = vunpack.c.l.b16 %v3766
        %v3863 = vunpack.c.l.b16 %v3767
        %v3864 = vunpack.c.l.b16 %v3768
        %v3865 = vunpack.c.l.b16 %v3769
        %v3866 = vunpack.c.l.b16 %v3770
        %v3867 = vunpack.c.l.b16 %v3771
        %v3868 = vunpack.c.l.b16 %v3772
        %v3869 = vunpack.c.l.b16 %v3773
        %v3870 = vunpack.c.l.b16 %v3774
        %v3871 = vunpack.c.l.b16 %v3775
        %v3872 = vunpack.c.l.b16 %v3776
        %v3873 = vunpack.c.l.b16 %v3777
        %v3874 = vunpack.c.l.b16 %v3778
        %v3875 = vunpack.c.l.b16 %v3779
        %v3876 = vunpack.c.l.b16 %v3780
        %v3877 = vunpack.c.l.b16 %v3781
        %v3878 = vunpack.c.l.b16 %v3782
        %v3879 = vunpack.c.l.b16 %v3783
        %v3880 = vunpack.c.l.b16 %v3784
        %v3881 = vunpack.c.l.b16 %v3785
        %v3882 = vunpack.c.l.b16 %v3786
        %v3883 = vunpack.c.l.b16 %v3787
        %v3884 = vunpack.c.l.b16 %v3788
        %v3885 = vunpack.c.l.b16 %v3789
        %v3886 = vunpack.c.l.b16 %v3790
        %v3887 = vunpack.c.l.b16 %v3791
        %v3888 = vunpack.c.l.b16 %v3792
        %v3889 = vunpack.c.l.b16 %v3793
        %v3890 = vunpack.c.l.b16 %v3794
        %v3891 = vunpack.c.l.b16 %v3795
        %v3892 = vunpack.c.l.b16 %v3796
        %v3893 = vunpack.c.l.b16 %v3797
        %v3894 = vunpack.c.l.b16 %v3798
        %v3895 = vunpack.c.l.b16 %v3799
        %v3896 = vunpack.c.l.b16 %v3800
        %v3897 = vunpack.c.l.b16 %v3801
        %v3898 = vunpack.c.l.b16 %v3802
        %v3899 = vunpack.c.l.b16 %v3803
        %v3900 = vunpack.c.l.b16 %v3804
        %v3901 = vunpack.c.l.b16 %v3805
        %v3902 = vpack.c.b16 %v3855, %v3854
        %v3903 = vpack.c.b16 %v3857, %v3856
        %v3904 = vpack.c.b16 %v3859, %v3858
        %v3905 = vpack.c.b16 %v3861, %v3860
        %v3906 = vpack.c.b16 %v3863, %v3862
        %v3907 = vpack.c.b16 %v3865, %v3864
        %v3908 = vpack.c.b16 %v3867, %v3866
        %v3909 = vpack.c.b16 %v3869, %v3868
        %v3910 = vpack.c.b16 %v3871, %v3870
        %v3911 = vpack.c.b16 %v3873, %v3872
        %v3912 = vpack.c.b16 %v3875, %v3874
        %v3913 = vpack.c.b16 %v3877, %v3876
        %v3914 = vpack.c.b16 %v3879, %v3878
        %v3915 = vpack.c.b16 %v3881, %v3880
        %v3916 = vpack.c.b16 %v3883, %v3882
        %v3917 = vpack.c.b16 %v3885, %v3884
        %v3918 = vpack.c.b16 %v3887, %v3886
        %v3919 = vpack.c.b16 %v3889, %v3888
        %v3920 = vpack.c.b16 %v3891, %v3890
        %v3921 = vpack.c.b16 %v3893, %v3892
        %v3922 = vpack.c.b16 %v3895, %v3894
        %v3923 = vpack.c.b16 %v3897, %v3896
        %v3924 = vpack.c.b16 %v3899, %v3898
        %v3925 = vpack.c.b16 %v3901, %v3900
        %3950 = vmatprep.subr.bf16.mxu0 0
        %3951 = vmatpush1.bf16.msra.mxu0 %v3902
        %3952 = vmatprep.subr.bf16.mxu0 0
        %3953 = vmatpush1.bf16.msra.mxu0 %v3903
        %3954 = vmatprep.subr.bf16.mxu0 0
        %3955 = vmatpush1.bf16.msra.mxu0 %v3904
        %3956 = vmatprep.subr.bf16.mxu0 0
        %3957 = vmatpush1.bf16.msra.mxu0 %v3905
        %3958 = vmatprep.subr.bf16.mxu0 0
        %3959 = vmatpush1.bf16.msra.mxu0 %v3906
        %3960 = vmatprep.subr.bf16.mxu0 0
        %3961 = vmatpush1.bf16.msra.mxu0 %v3907
        %3962 = vmatprep.subr.bf16.mxu0 0
        %3963 = vmatpush1.bf16.msra.mxu0 %v3908
        %3964 = vmatprep.subr.bf16.mxu0 0
        %3965 = vmatpush1.bf16.msra.mxu0 %v3909
        %3966 = vmatprep.subr.bf16.mxu0 0
        %3967 = vmatpush1.bf16.msra.mxu0 %v3910
        %3968 = vmatprep.subr.bf16.mxu0 0
        %3969 = vmatpush1.bf16.msra.mxu0 %v3911
        %3970 = vmatprep.subr.bf16.mxu0 0
        %3971 = vmatpush1.bf16.msra.mxu0 %v3912
        %3972 = vmatprep.subr.bf16.mxu0 0
        %3973 = vmatpush1.bf16.msra.mxu0 %v3913
        %3974 = vmatprep.subr.bf16.mxu0 0
        %3975 = vmatpush1.bf16.msra.mxu0 %v3914
        %3976 = vmatprep.subr.bf16.mxu0 0
        %3977 = vmatpush1.bf16.msra.mxu0 %v3915
        %3978 = vmatprep.subr.bf16.mxu0 0
        %3979 = vmatpush1.bf16.msra.mxu0 %v3916
        %3980 = vmatprep.subr.bf16.mxu0 0
        %3981 = vmatpush1.bf16.msra.mxu0 %v3917
        %3982 = vmatprep.mubr.bf16.mxu0 %v3711
        %3983 = vmatmul.mubr.bf16.gmra.mrb[0].mxu0 %v3710
        %v3984 = vpop.f32.mrb[0].mxu0
        %v3985 = vadd.f32 0.0, %v3984
        %v3986 = vpop.f32.mrb[0].mxu0
        %v3987 = vpop.f32.mrb[0].mxu0
        %v3988 = vadd.f32 0.0, %v3987
        %v3989 = vpop.f32.mrb[0].mxu0
        %3990 = vmatprep.mubr.bf16.mxu0 %v3714
        %3991 = vmatmul.mubr.bf16.gmra.mrb[0].mxu0 %v3713
        %v3992 = vpop.f32.mrb[0].mxu0
        %v3993 = vadd.f32 0.0, %v3992
        %v3994 = vpop.f32.mrb[0].mxu0
        %v3995 = vpop.f32.mrb[0].mxu0
        %v3996 = vadd.f32 0.0, %v3995
        %v3997 = vpop.f32.mrb[0].mxu0
        %3998 = vmatprep.mubr.bf16.mxu0 %v3717
        %3999 = vmatmul.mubr.bf16.gmra.mrb[0].mxu0 %v3716
        %v4000 = vpop.f32.mrb[0].mxu0
        %v4001 = vadd.f32 0.0, %v4000
        %v4002 = vpop.f32.mrb[0].mxu0
        %v4003 = vpop.f32.mrb[0].mxu0
        %v4004 = vadd.f32 0.0, %v4003
        %v4005 = vpop.f32.mrb[0].mxu0
        %4006 = vmatprep.mubr.bf16.mxu0 %v3720
        %4007 = vmatmul.mubr.bf16.gmra.mrb[0].mxu0 %v3719
        %v4008 = vpop.f32.mrb[0].mxu0
        %v4009 = vadd.f32 0.0, %v4008
        %v4010 = vpop.f32.mrb[0].mxu0
        %v4011 = vpop.f32.mrb[0].mxu0
        %v4012 = vadd.f32 0.0, %v4011
        %v4013 = vpop.f32.mrb[0].mxu0
        %4014 = vmatprep.mubr.bf16.mxu0 %v3723
        %4015 = vmatmul.mubr.bf16.gmra.mrb[0].mxu0 %v3722
        %v4016 = vpop.f32.mrb[0].mxu0
        %v4017 = vadd.f32 0.0, %v4016
        %v4018 = vpop.f32.mrb[0].mxu0
        %v4019 = vpop.f32.mrb[0].mxu0
        %v4020 = vadd.f32 0.0, %v4019
        %v4021 = vpop.f32.mrb[0].mxu0
        %4022 = vmatprep.mubr.bf16.mxu0 %v3726
        %4023 = vmatmul.mubr.bf16.gmra.mrb[0].mxu0 %v3725
        %v4024 = vpop.f32.mrb[0].mxu0
        %v4025 = vadd.f32 0.0, %v4024
        %v4026 = vpop.f32.mrb[0].mxu0
        %v4027 = vpop.f32.mrb[0].mxu0
        %v4028 = vadd.f32 0.0, %v4027
        %v4029 = vpop.f32.mrb[0].mxu0
        %4030 = vmatprep.mubr.bf16.mxu0 %v3729
        %4031 = vmatmul.mubr.bf16.gmra.mrb[0].mxu0 %v3728
        %v4032 = vpop.f32.mrb[0].mxu0
        %v4033 = vadd.f32 0.0, %v4032
        %v4034 = vpop.f32.mrb[0].mxu0
        %v4035 = vpop.f32.mrb[0].mxu0
        %v4036 = vadd.f32 0.0, %v4035
        %v4037 = vpop.f32.mrb[0].mxu0
        %4038 = vmatprep.mubr.bf16.mxu0 %v3732
        %4039 = vmatmul.mubr.bf16.gmra.mrb[0].mxu0 %v3731
        %v4040 = vpop.f32.mrb[0].mxu0
        %v4041 = vadd.f32 0.0, %v4040
        %v4042 = vpop.f32.mrb[0].mxu0
        %v4043 = vpop.f32.mrb[0].mxu0
        %v4044 = vadd.f32 0.0, %v4043
        %v4045 = vpop.f32.mrb[0].mxu0
        %4046 = vmatprep.mubr.bf16.mxu0 %v3735
        %4047 = vmatmul.mubr.bf16.gmra.mrb[0].mxu0 %v3734
        %v4048 = vpop.f32.mrb[0].mxu0
        %v4049 = vadd.f32 0.0, %v4048
        %v4050 = vpop.f32.mrb[0].mxu0
        %v4051 = vpop.f32.mrb[0].mxu0
        %v4052 = vadd.f32 0.0, %v4051
        %v4053 = vpop.f32.mrb[0].mxu0
        %4054 = vmatprep.mubr.bf16.mxu0 %v3738
        %4055 = vmatmul.mubr.bf16.gmra.mrb[0].mxu0 %v3737
        %v4056 = vpop.f32.mrb[0].mxu0
        %v4057 = vadd.f32 0.0, %v4056
        %v4058 = vpop.f32.mrb[0].mxu0
        %v4059 = vpop.f32.mrb[0].mxu0
        %v4060 = vadd.f32 0.0, %v4059
        %v4061 = vpop.f32.mrb[0].mxu0
        %4062 = vmatprep.mubr.bf16.mxu0 %v3741
        %4063 = vmatmul.mubr.bf16.gmra.mrb[0].mxu0 %v3740
        %v4064 = vpop.f32.mrb[0].mxu0
        %v4065 = vadd.f32 0.0, %v4064
        %v4066 = vpop.f32.mrb[0].mxu0
        %v4067 = vpop.f32.mrb[0].mxu0
        %v4068 = vadd.f32 0.0, %v4067
        %v4069 = vpop.f32.mrb[0].mxu0
        %4070 = vmatprep.mubr.bf16.mxu0 %v3744
        %4071 = vmatmul.mubr.bf16.gmra.mrb[0].mxu0 %v3743
        %v4072 = vpop.f32.mrb[0].mxu0
        %v4073 = vadd.f32 0.0, %v4072
        %v4074 = vpop.f32.mrb[0].mxu0
        %v4075 = vpop.f32.mrb[0].mxu0
        %v4076 = vadd.f32 0.0, %v4075
        %v4077 = vpop.f32.mrb[0].mxu0
        %4078 = vmatprep.mubr.bf16.mxu0 %v3747
        %4079 = vmatmul.mubr.bf16.gmra.mrb[0].mxu0 %v3746
        %v4080 = vpop.f32.mrb[0].mxu0
        %v4081 = vadd.f32 0.0, %v4080
        %v4082 = vpop.f32.mrb[0].mxu0
        %v4083 = vpop.f32.mrb[0].mxu0
        %v4084 = vadd.f32 0.0, %v4083
        %v4085 = vpop.f32.mrb[0].mxu0
        %4086 = vmatprep.mubr.bf16.mxu0 %v3750
        %4087 = vmatmul.mubr.bf16.gmra.mrb[0].mxu0 %v3749
        %v4088 = vpop.f32.mrb[0].mxu0
        %v4089 = vadd.f32 0.0, %v4088
        %v4090 = vpop.f32.mrb[0].mxu0
        %v4091 = vpop.f32.mrb[0].mxu0
        %v4092 = vadd.f32 0.0, %v4091
        %v4093 = vpop.f32.mrb[0].mxu0
        %4094 = vmatprep.mubr.bf16.mxu0 %v3753
        %4095 = vmatmul.mubr.bf16.gmra.mrb[0].mxu0 %v3752
        %v4096 = vpop.f32.mrb[0].mxu0
        %v4097 = vadd.f32 0.0, %v4096
        %v4098 = vpop.f32.mrb[0].mxu0
        %v4099 = vpop.f32.mrb[0].mxu0
        %v4100 = vadd.f32 0.0, %v4099
        %v4101 = vpop.f32.mrb[0].mxu0
        %4102 = vmatprep.mubr.bf16.mxu0 %v3756
        %4103 = vmatmul.mubr.bf16.gmra.mrb[0].mxu0 %v3755
        %v4104 = vpop.f32.mrb[0].mxu0
        %v4105 = vadd.f32 0.0, %v4104
        %v4106 = vpop.f32.mrb[0].mxu0
        %v4107 = vpop.f32.mrb[0].mxu0
        %v4108 = vadd.f32 0.0, %v4107
        %v4109 = vpop.f32.mrb[0].mxu0
        %4110 = vdwg.mxu0
        %4111 = vmatprep.subr.bf16.mxu0 0
        %4112 = vmatpush1.bf16.msra.mxu0 %v3918
        %4113 = vmatprep.subr.bf16.mxu0 0
        %4114 = vmatpush1.bf16.msra.mxu0 %v3919
        %4115 = vmatprep.subr.bf16.mxu0 0
        %4116 = vmatpush1.bf16.msra.mxu0 %v3920
        %4117 = vmatprep.subr.bf16.mxu0 0
        %4118 = vmatpush1.bf16.msra.mxu0 %v3921
        %4119 = vmatprep.subr.bf16.mxu0 0
        %4120 = vmatpush1.bf16.msra.mxu0 %v3922
        %4121 = vmatprep.subr.bf16.mxu0 0
        %4122 = vmatpush1.bf16.msra.mxu0 %v3923
        %4123 = vmatprep.subr.bf16.mxu0 0
        %4124 = vmatpush1.bf16.msra.mxu0 %v3924
        %4125 = vmatprep.subr.bf16.mxu0 0
        %4126 = vmatpush1.bf16.msra.mxu0 %v3925
        %4127 = vmatprep.subr.bf16.mxu0 0
        %4128 = vmatpush1.bf16.msra.mxu0 0
        %4129 = vmatprep.subr.bf16.mxu0 0
        %4130 = vmatpush1.bf16.msra.mxu0 0
        %4131 = vmatprep.subr.bf16.mxu0 0
        %4132 = vmatpush1.bf16.msra.mxu0 0
        %4133 = vmatprep.subr.bf16.mxu0 0
        %4134 = vmatpush1.bf16.msra.mxu0 0
        %4135 = vmatprep.subr.bf16.mxu0 0
        %4136 = vmatpush1.bf16.msra.mxu0 0
        %4137 = vmatprep.subr.bf16.mxu0 0
        %4138 = vmatpush1.bf16.msra.mxu0 0
        %4139 = vmatprep.subr.bf16.mxu0 0
        %4140 = vmatpush1.bf16.msra.mxu0 0
        %4141 = vmatprep.subr.bf16.mxu0 0
        %4142 = vmatpush1.bf16.msra.mxu0 0
        %4143 = vmatprep.mubr.bf16.mxu0 0
        %4144 = vmatmul.mubr.bf16.gmra.mrb[0].mxu0 %v3712
        %v4145 = vpop.f32.mrb[0].mxu0
        %v4146 = vadd.f32 %v3985, %v4145
        %v4147 = vpop.f32.mrb[0].mxu0
        %v4148 = vpop.f32.mrb[0].mxu0
        %v4149 = vadd.f32 %v3988, %v4148
        %v4150 = vpop.f32.mrb[0].mxu0
        %4151 = vmatprep.mubr.bf16.mxu0 0
        %4152 = vmatmul.mubr.bf16.gmra.mrb[0].mxu0 %v3715
        %v4153 = vpop.f32.mrb[0].mxu0
        %v4154 = vadd.f32 %v3993, %v4153
        %v4155 = vpop.f32.mrb[0].mxu0
        %v4156 = vpop.f32.mrb[0].mxu0
        %v4157 = vadd.f32 %v3996, %v4156
        %v4158 = vpop.f32.mrb[0].mxu0
        %4159 = vmatprep.mubr.bf16.mxu0 0
        %4160 = vmatmul.mubr.bf16.gmra.mrb[0].mxu0 %v3718
        %v4161 = vpop.f32.mrb[0].mxu0
        %v4162 = vadd.f32 %v4001, %v4161
        %v4163 = vpop.f32.mrb[0].mxu0
        %v4164 = vpop.f32.mrb[0].mxu0
        %v4165 = vadd.f32 %v4004, %v4164
        %v4166 = vpop.f32.mrb[0].mxu0
        %4167 = vmatprep.mubr.bf16.mxu0 0
        %4168 = vmatmul.mubr.bf16.gmra.mrb[0].mxu0 %v3721
        %v4169 = vpop.f32.mrb[0].mxu0
        %v4170 = vadd.f32 %v4009, %v4169
        %v4171 = vpop.f32.mrb[0].mxu0
        %v4172 = vpop.f32.mrb[0].mxu0
        %v4173 = vadd.f32 %v4012, %v4172
        %v4174 = vpop.f32.mrb[0].mxu0
        %4175 = vmatprep.mubr.bf16.mxu0 0
        %4176 = vmatmul.mubr.bf16.gmra.mrb[0].mxu0 %v3724
        %v4177 = vpop.f32.mrb[0].mxu0
        %v4178 = vadd.f32 %v4017, %v4177
        %v4179 = vpop.f32.mrb[0].mxu0
        %v4180 = vpop.f32.mrb[0].mxu0
        %v4181 = vadd.f32 %v4020, %v4180
        %v4182 = vpop.f32.mrb[0].mxu0
        %4183 = vmatprep.mubr.bf16.mxu0 0
        %4184 = vmatmul.mubr.bf16.gmra.mrb[0].mxu0 %v3727
        %v4185 = vpop.f32.mrb[0].mxu0
        %v4186 = vadd.f32 %v4025, %v4185
        %v4187 = vpop.f32.mrb[0].mxu0
        %v4188 = vpop.f32.mrb[0].mxu0
        %v4189 = vadd.f32 %v4028, %v4188
        %v4190 = vpop.f32.mrb[0].mxu0
        %4191 = vmatprep.mubr.bf16.mxu0 0
        %4192 = vmatmul.mubr.bf16.gmra.mrb[0].mxu0 %v3730
        %v4193 = vpop.f32.mrb[0].mxu0
        %v4194 = vadd.f32 %v4033, %v4193
        %v4195 = vpop.f32.mrb[0].mxu0
        %v4196 = vpop.f32.mrb[0].mxu0
        %v4197 = vadd.f32 %v4036, %v4196
        %v4198 = vpop.f32.mrb[0].mxu0
        %4199 = vmatprep.mubr.bf16.mxu0 0
        %4200 = vmatmul.mubr.bf16.gmra.mrb[0].mxu0 %v3733
        %v4201 = vpop.f32.mrb[0].mxu0
        %v4202 = vadd.f32 %v4041, %v4201
        %v4203 = vpop.f32.mrb[0].mxu0
        %v4204 = vpop.f32.mrb[0].mxu0
        %v4205 = vadd.f32 %v4044, %v4204
        %v4206 = vpop.f32.mrb[0].mxu0
        %4207 = vmatprep.mubr.bf16.mxu0 0
        %4208 = vmatmul.mubr.bf16.gmra.mrb[0].mxu0 %v3736
        %v4209 = vpop.f32.mrb[0].mxu0
        %v4210 = vadd.f32 %v4049, %v4209
        %v4211 = vpop.f32.mrb[0].mxu0
        %v4212 = vpop.f32.mrb[0].mxu0
        %v4213 = vadd.f32 %v4052, %v4212
        %v4214 = vpop.f32.mrb[0].mxu0
        %4215 = vmatprep.mubr.bf16.mxu0 0
        %4216 = vmatmul.mubr.bf16.gmra.mrb[0].mxu0 %v3739
        %v4217 = vpop.f32.mrb[0].mxu0
        %v4218 = vadd.f32 %v4057, %v4217
        %v4219 = vpop.f32.mrb[0].mxu0
        %v4220 = vpop.f32.mrb[0].mxu0
        %v4221 = vadd.f32 %v4060, %v4220
        %v4222 = vpop.f32.mrb[0].mxu0
        %4223 = vmatprep.mubr.bf16.mxu0 0
        %4224 = vmatmul.mubr.bf16.gmra.mrb[0].mxu0 %v3742
        %v4225 = vpop.f32.mrb[0].mxu0
        %v4226 = vadd.f32 %v4065, %v4225
        %v4227 = vpop.f32.mrb[0].mxu0
        %v4228 = vpop.f32.mrb[0].mxu0
        %v4229 = vadd.f32 %v4068, %v4228
        %v4230 = vpop.f32.mrb[0].mxu0
        %4231 = vmatprep.mubr.bf16.mxu0 0
        %4232 = vmatmul.mubr.bf16.gmra.mrb[0].mxu0 %v3745
        %v4233 = vpop.f32.mrb[0].mxu0
        %v4234 = vadd.f32 %v4073, %v4233
        %v4235 = vpop.f32.mrb[0].mxu0
        %v4236 = vpop.f32.mrb[0].mxu0
        %v4237 = vadd.f32 %v4076, %v4236
        %v4238 = vpop.f32.mrb[0].mxu0
        %4239 = vmatprep.mubr.bf16.mxu0 0
        %4240 = vmatmul.mubr.bf16.gmra.mrb[0].mxu0 %v3748
        %v4241 = vpop.f32.mrb[0].mxu0
        %v4242 = vadd.f32 %v4081, %v4241
        %v4243 = vpop.f32.mrb[0].mxu0
        %v4244 = vpop.f32.mrb[0].mxu0
        %v4245 = vadd.f32 %v4084, %v4244
        %v4246 = vpop.f32.mrb[0].mxu0
        %4247 = vmatprep.mubr.bf16.mxu0 0
        %4248 = vmatmul.mubr.bf16.gmra.mrb[0].mxu0 %v3751
        %v4249 = vpop.f32.mrb[0].mxu0
        %v4250 = vadd.f32 %v4089, %v4249
        %v4251 = vpop.f32.mrb[0].mxu0
        %v4252 = vpop.f32.mrb[0].mxu0
        %v4253 = vadd.f32 %v4092, %v4252
        %v4254 = vpop.f32.mrb[0].mxu0
        %4255 = vmatprep.mubr.bf16.mxu0 0
        %4256 = vmatmul.mubr.bf16.gmra.mrb[0].mxu0 %v3754
        %v4257 = vpop.f32.mrb[0].mxu0
        %v4258 = vadd.f32 %v4097, %v4257
        %v4259 = vpop.f32.mrb[0].mxu0
        %v4260 = vpop.f32.mrb[0].mxu0
        %v4261 = vadd.f32 %v4100, %v4260
        %v4262 = vpop.f32.mrb[0].mxu0
        %4263 = vmatprep.mubr.bf16.mxu0 0
        %4264 = vmatmul.mubr.bf16.gmra.mrb[0].mxu0 %v3757
        %v4265 = vpop.f32.mrb[0].mxu0
        %v4266 = vadd.f32 %v4105, %v4265
        %v4267 = vpop.f32.mrb[0].mxu0
        %v4268 = vpop.f32.mrb[0].mxu0
        %v4269 = vadd.f32 %v4108, %v4268
        %v4270 = vpop.f32.mrb[0].mxu0
        %4271 = vdwg.mxu0
        %v4272 = vadd.f32 %v3678, %v4146
        %v4273 = vadd.f32 %v3679, %v4149
        %v4274 = vadd.f32 %v3680, %v4154
        %v4275 = vadd.f32 %v3681, %v4157
        %v4276 = vadd.f32 %v3682, %v4162
        %v4277 = vadd.f32 %v3683, %v4165
        %v4278 = vadd.f32 %v3684, %v4170
        %v4279 = vadd.f32 %v3685, %v4173
        %v4280 = vadd.f32 %v3686, %v4178
        %v4281 = vadd.f32 %v3687, %v4181
        %v4282 = vadd.f32 %v3688, %v4186
        %v4283 = vadd.f32 %v3689, %v4189
        %v4284 = vadd.f32 %v3690, %v4194
        %v4285 = vadd.f32 %v3691, %v4197
        %v4286 = vadd.f32 %v3692, %v4202
        %v4287 = vadd.f32 %v3693, %v4205
        %v4288 = vadd.f32 %v3694, %v4210
        %v4289 = vadd.f32 %v3695, %v4213
        %v4290 = vadd.f32 %v3696, %v4218
        %v4291 = vadd.f32 %v3697, %v4221
        %v4292 = vadd.f32 %v3698, %v4226
        %v4293 = vadd.f32 %v3699, %v4229
        %v4294 = vadd.f32 %v3700, %v4234
        %v4295 = vadd.f32 %v3701, %v4237
        %v4296 = vadd.f32 %v3702, %v4242
        %v4297 = vadd.f32 %v3703, %v4245
        %v4298 = vadd.f32 %v3704, %v4250
        %v4299 = vadd.f32 %v3705, %v4253
        %v4300 = vadd.f32 %v3706, %v4258
        %v4301 = vadd.f32 %v3707, %v4261
        %v4302 = vadd.f32 %v3708, %v4266
        %v4303 = vadd.f32 %v3709, %v4269
        %4304 = vst [vmem:[#allocation2] sm:$0xff] %v4272
        %4305 = vst [vmem:[#allocation2 + $0x8] sm:$0xff] %v4273
        %4306 = vst [vmem:[#allocation2 + $0x10] sm:$0xff] %v4274
        %4307 = vst [vmem:[#allocation2 + $0x18] sm:$0xff] %v4275
        %4308 = vst [vmem:[#allocation2 + $0x20] sm:$0xff] %v4276
        %4309 = vst [vmem:[#allocation2 + $0x28] sm:$0xff] %v4277
        %4310 = vst [vmem:[#allocation2 + $0x30] sm:$0xff] %v4278
        %4311 = vst [vmem:[#allocation2 + $0x38] sm:$0xff] %v4279
        %4312 = vst [vmem:[#allocation2 + $0x40] sm:$0xff] %v4280
        %4313 = vst [vmem:[#allocation2 + $0x48] sm:$0xff] %v4281
        %4314 = vst [vmem:[#allocation2 + $0x50] sm:$0xff] %v4282
        %4315 = vst [vmem:[#allocation2 + $0x58] sm:$0xff] %v4283
        %4316 = vst [vmem:[#allocation2 + $0x60] sm:$0xff] %v4284
        %4317 = vst [vmem:[#allocation2 + $0x68] sm:$0xff] %v4285
        %4318 = vst [vmem:[#allocation2 + $0x70] sm:$0xff] %v4286
        %4319 = vst [vmem:[#allocation2 + $0x78] sm:$0xff] %v4287
        %4320 = vst [vmem:[#allocation2 + $0x80] sm:$0xff] %v4288
        %4321 = vst [vmem:[#allocation2 + $0x88] sm:$0xff] %v4289
        %4322 = vst [vmem:[#allocation2 + $0x90] sm:$0xff] %v4290
        %4323 = vst [vmem:[#allocation2 + $0x98] sm:$0xff] %v4291
        %4324 = vst [vmem:[#allocation2 + $0xa0] sm:$0xff] %v4292
        %4325 = vst [vmem:[#allocation2 + $0xa8] sm:$0xff] %v4293
        %4326 = vst [vmem:[#allocation2 + $0xb0] sm:$0xff] %v4294
        %4327 = vst [vmem:[#allocation2 + $0xb8] sm:$0xff] %v4295
        %4328 = vst [vmem:[#allocation2 + $0xc0] sm:$0xff] %v4296
        %4329 = vst [vmem:[#allocation2 + $0xc8] sm:$0xff] %v4297
        %4330 = vst [vmem:[#allocation2 + $0xd0] sm:$0xff] %v4298
        %4331 = vst [vmem:[#allocation2 + $0xd8] sm:$0xff] %v4299
        %4332 = vst [vmem:[#allocation2 + $0xe0] sm:$0xff] %v4300
        %4333 = vst [vmem:[#allocation2 + $0xe8] sm:$0xff] %v4301
        %4334 = vst [vmem:[#allocation2 + $0xf0] sm:$0xff] %v4302
        %4335 = vst [vmem:[#allocation2 + $0xf8] sm:$0xff] %v4303
        %v4336 = vld [vmem:[#allocation2] sm:$0xff]
        %v4337 = vld [vmem:[#allocation2 + $0x8] sm:$0xff]
        %v4338 = vld [vmem:[#allocation2 + $0x10] sm:$0xff]
        %v4339 = vld [vmem:[#allocation2 + $0x18] sm:$0xff]
        %v4340 = vld [vmem:[#allocation2 + $0x20] sm:$0xff]
        %v4341 = vld [vmem:[#allocation2 + $0x28] sm:$0xff]
        %v4342 = vld [vmem:[#allocation2 + $0x30] sm:$0xff]
        %v4343 = vld [vmem:[#allocation2 + $0x38] sm:$0xff]
        %v4344 = vld [vmem:[#allocation2 + $0x40] sm:$0xff]
        %v4345 = vld [vmem:[#allocation2 + $0x48] sm:$0xff]
        %v4346 = vld [vmem:[#allocation2 + $0x50] sm:$0xff]
        %v4347 = vld [vmem:[#allocation2 + $0x58] sm:$0xff]
        %v4348 = vld [vmem:[#allocation2 + $0x60] sm:$0xff]
        %v4349 = vld [vmem:[#allocation2 + $0x68] sm:$0xff]
        %v4350 = vld [vmem:[#allocation2 + $0x70] sm:$0xff]
        %v4351 = vld [vmem:[#allocation2 + $0x78] sm:$0xff]
        %v4352 = vld [vmem:[#allocation2 + $0x80] sm:$0xff]
        %v4353 = vld [vmem:[#allocation2 + $0x88] sm:$0xff]
        %v4354 = vld [vmem:[#allocation2 + $0x90] sm:$0xff]
        %v4355 = vld [vmem:[#allocation2 + $0x98] sm:$0xff]
        %v4356 = vld [vmem:[#allocation2 + $0xa0] sm:$0xff]
        %v4357 = vld [vmem:[#allocation2 + $0xa8] sm:$0xff]
        %v4358 = vld [vmem:[#allocation2 + $0xb0] sm:$0xff]
        %v4359 = vld [vmem:[#allocation2 + $0xb8] sm:$0xff]
        %v4360 = vld [vmem:[#allocation2 + $0xc0] sm:$0xff]
        %v4361 = vld [vmem:[#allocation2 + $0xc8] sm:$0xff]
        %v4362 = vld [vmem:[#allocation2 + $0xd0] sm:$0xff]
        %v4363 = vld [vmem:[#allocation2 + $0xd8] sm:$0xff]
        %v4364 = vld [vmem:[#allocation2 + $0xe0] sm:$0xff]
        %v4365 = vld [vmem:[#allocation2 + $0xe8] sm:$0xff]
        %v4366 = vld [vmem:[#allocation2 + $0xf0] sm:$0xff]
        %v4367 = vld [vmem:[#allocation2 + $0xf8] sm:$0xff]
        %v4368 = vld [vmem:[#allocation3 + $0x18] sm:$0xff]
        %v4369 = vld [vmem:[#allocation3 + $0x20] sm:$0xff]
        %v4370 = vld [vmem:[#allocation3 + $0x28] sm:$0xff]
        %v4371 = vld [vmem:[#allocation3 + $0x30] sm:$0xff]
        %v4372 = vld [vmem:[#allocation3 + $0x38] sm:$0xff]
        %v4373 = vld [vmem:[#allocation3 + $0x40] sm:$0xff]
        %v4374 = vld [vmem:[#allocation3 + $0x48] sm:$0xff]
        %v4375 = vld [vmem:[#allocation3 + $0x50] sm:$0xff]
        %v4376 = vld [vmem:[#allocation3 + $0x58] sm:$0xff]
        %v4377 = vld [vmem:[#allocation3 + $0x60] sm:$0xff]
        %v4378 = vld [vmem:[#allocation3 + $0x68] sm:$0xff]
        %v4379 = vld [vmem:[#allocation3 + $0x70] sm:$0xff]
        %v4380 = vld [vmem:[#allocation3 + $0x78] sm:$0xff]
        %v4381 = vld [vmem:[#allocation3 + $0x80] sm:$0xff]
        %v4382 = vld [vmem:[#allocation3 + $0x88] sm:$0xff]
        %v4383 = vld [vmem:[#allocation3 + $0x90] sm:$0xff]
        %v4384 = vld [vmem:[#allocation3 + $0x98] sm:$0xff]
        %v4385 = vld [vmem:[#allocation3 + $0xa0] sm:$0xff]
        %v4386 = vld [vmem:[#allocation3 + $0xa8] sm:$0xff]
        %v4387 = vld [vmem:[#allocation3 + $0xb0] sm:$0xff]
        %v4388 = vld [vmem:[#allocation3 + $0xb8] sm:$0xff]
        %v4389 = vld [vmem:[#allocation3 + $0xc0] sm:$0xff]
        %v4390 = vld [vmem:[#allocation3 + $0xc8] sm:$0xff]
        %v4391 = vld [vmem:[#allocation3 + $0xd0] sm:$0xff]
        %v4392 = vld [vmem:[#allocation3 + $0xd8] sm:$0xff]
        %v4393 = vld [vmem:[#allocation3 + $0xe0] sm:$0xff]
        %v4394 = vld [vmem:[#allocation3 + $0xe8] sm:$0xff]
        %v4395 = vld [vmem:[#allocation3 + $0xf0] sm:$0xff]
        %v4396 = vld [vmem:[#allocation3 + $0xf8] sm:$0xff]
        %v4397 = vld [vmem:[#allocation3 + $0x100] sm:$0xff]
        %v4398 = vld [vmem:[#allocation3 + $0x108] sm:$0xff]
        %v4399 = vld [vmem:[#allocation3 + $0x110] sm:$0xff]
        %v4400 = vld [vmem:[#allocation3 + $0x118] sm:$0xff]
        %v4401 = vld [vmem:[#allocation3 + $0x120] sm:$0xff]
        %v4402 = vld [vmem:[#allocation3 + $0x128] sm:$0xff]
        %v4403 = vld [vmem:[#allocation3 + $0x130] sm:$0xff]
        %v4404 = vld [vmem:[#allocation3 + $0x138] sm:$0xff]
        %v4405 = vld [vmem:[#allocation3 + $0x140] sm:$0xff]
        %v4406 = vld [vmem:[#allocation3 + $0x148] sm:$0xff]
        %v4407 = vld [vmem:[#allocation3 + $0x150] sm:$0xff]
        %v4408 = vld [vmem:[#allocation3 + $0x158] sm:$0xff]
        %v4409 = vld [vmem:[#allocation3 + $0x160] sm:$0xff]
        %v4410 = vld [vmem:[#allocation3 + $0x168] sm:$0xff]
        %v4411 = vld [vmem:[#allocation3 + $0x170] sm:$0xff]
        %v4412 = vld [vmem:[#allocation3 + $0x178] sm:$0xff]
        %v4413 = vld [vmem:[#allocation3 + $0x180] sm:$0xff]
        %v4414 = vld [vmem:[#allocation3 + $0x188] sm:$0xff]
        %v4415 = vld [vmem:[#allocation3 + $0x190] sm:$0xff]
        %s4416 = scalar_lea.vmem %s3, 192
        %v4417 = vld [vmem:[%s4416] sm:$0xf]
        %v4418 = vld [vmem:[%s4416 + $0x4] sm:$0xf]
        %v4419 = vld [vmem:[%s4416 + $0x8] sm:$0xf]
        %v4420 = vld [vmem:[%s4416 + $0xc] sm:$0xf]
        %v4421 = vld [vmem:[%s4416 + $0x10] sm:$0xf]
        %v4422 = vld [vmem:[%s4416 + $0x14] sm:$0xf]
        %v4423 = vld [vmem:[%s4416 + $0x18] sm:$0xf]
        %v4424 = vld [vmem:[%s4416 + $0x1c] sm:$0xf]
        %v4425 = vld [vmem:[%s4416 + $0x20] sm:$0xf]
        %v4426 = vld [vmem:[%s4416 + $0x24] sm:$0xf]
        %v4427 = vld [vmem:[%s4416 + $0x28] sm:$0xf]
        %v4428 = vld [vmem:[%s4416 + $0x2c] sm:$0xf]
        %v4429 = vld [vmem:[%s4416 + $0x30] sm:$0xf]
        %v4430 = vld [vmem:[%s4416 + $0x34] sm:$0xf]
        %v4431 = vld [vmem:[%s4416 + $0x38] sm:$0xf]
        %v4432 = vld [vmem:[%s4416 + $0x3c] sm:$0xf]
        %v4433 = vld [vmem:[%s4416 + $0x40] sm:$0xf]
        %v4434 = vld [vmem:[%s4416 + $0x44] sm:$0xf]
        %v4435 = vld [vmem:[%s4416 + $0x48] sm:$0xf]
        %v4436 = vld [vmem:[%s4416 + $0x4c] sm:$0xf]
        %v4437 = vld [vmem:[%s4416 + $0x50] sm:$0xf]
        %v4438 = vld [vmem:[%s4416 + $0x54] sm:$0xf]
        %v4439 = vld [vmem:[%s4416 + $0x58] sm:$0xf]
        %v4440 = vld [vmem:[%s4416 + $0x5c] sm:$0xf]
        %v4441 = vld [vmem:[%s4416 + $0x60] sm:$0xf]
        %v4442 = vld [vmem:[%s4416 + $0x64] sm:$0xf]
        %v4443 = vld [vmem:[%s4416 + $0x68] sm:$0xf]
        %v4444 = vld [vmem:[%s4416 + $0x6c] sm:$0xf]
        %v4445 = vld [vmem:[%s4416 + $0x70] sm:$0xf]
        %v4446 = vld [vmem:[%s4416 + $0x74] sm:$0xf]
        %v4447 = vld [vmem:[%s4416 + $0x78] sm:$0xf]
        %v4448 = vld [vmem:[%s4416 + $0x7c] sm:$0xf]
        %v4449 = vld [vmem:[%s4416 + $0x80] sm:$0xf]
        %v4450 = vld [vmem:[%s4416 + $0x84] sm:$0xf]
        %v4451 = vld [vmem:[%s4416 + $0x88] sm:$0xf]
        %v4452 = vld [vmem:[%s4416 + $0x8c] sm:$0xf]
        %v4453 = vld [vmem:[%s4416 + $0x90] sm:$0xf]
        %v4454 = vld [vmem:[%s4416 + $0x94] sm:$0xf]
        %v4455 = vld [vmem:[%s4416 + $0x98] sm:$0xf]
        %v4456 = vld [vmem:[%s4416 + $0x9c] sm:$0xf]
        %v4457 = vld [vmem:[%s4416 + $0xa0] sm:$0xf]
        %v4458 = vld [vmem:[%s4416 + $0xa4] sm:$0xf]
        %v4459 = vld [vmem:[%s4416 + $0xa8] sm:$0xf]
        %v4460 = vld [vmem:[%s4416 + $0xac] sm:$0xf]
        %v4461 = vld [vmem:[%s4416 + $0xb0] sm:$0xf]
        %v4462 = vld [vmem:[%s4416 + $0xb4] sm:$0xf]
        %v4463 = vld [vmem:[%s4416 + $0xb8] sm:$0xf]
        %v4464 = vld [vmem:[%s4416 + $0xbc] sm:$0xf]
        %v4513 = vunpack.c.l.b16 %v4417
        %v4514 = vunpack.c.l.b16 %v4418
        %v4515 = vunpack.c.l.b16 %v4419
        %v4516 = vunpack.c.l.b16 %v4420
        %v4517 = vunpack.c.l.b16 %v4421
        %v4518 = vunpack.c.l.b16 %v4422
        %v4519 = vunpack.c.l.b16 %v4423
        %v4520 = vunpack.c.l.b16 %v4424
        %v4521 = vunpack.c.l.b16 %v4425
        %v4522 = vunpack.c.l.b16 %v4426
        %v4523 = vunpack.c.l.b16 %v4427
        %v4524 = vunpack.c.l.b16 %v4428
        %v4525 = vunpack.c.l.b16 %v4429
        %v4526 = vunpack.c.l.b16 %v4430
        %v4527 = vunpack.c.l.b16 %v4431
        %v4528 = vunpack.c.l.b16 %v4432
        %v4529 = vunpack.c.l.b16 %v4433
        %v4530 = vunpack.c.l.b16 %v4434
        %v4531 = vunpack.c.l.b16 %v4435
        %v4532 = vunpack.c.l.b16 %v4436
        %v4533 = vunpack.c.l.b16 %v4437
        %v4534 = vunpack.c.l.b16 %v4438
        %v4535 = vunpack.c.l.b16 %v4439
        %v4536 = vunpack.c.l.b16 %v4440
        %v4537 = vunpack.c.l.b16 %v4441
        %v4538 = vunpack.c.l.b16 %v4442
        %v4539 = vunpack.c.l.b16 %v4443
        %v4540 = vunpack.c.l.b16 %v4444
        %v4541 = vunpack.c.l.b16 %v4445
        %v4542 = vunpack.c.l.b16 %v4446
        %v4543 = vunpack.c.l.b16 %v4447
        %v4544 = vunpack.c.l.b16 %v4448
        %v4545 = vunpack.c.l.b16 %v4449
        %v4546 = vunpack.c.l.b16 %v4450
        %v4547 = vunpack.c.l.b16 %v4451
        %v4548 = vunpack.c.l.b16 %v4452
        %v4549 = vunpack.c.l.b16 %v4453
        %v4550 = vunpack.c.l.b16 %v4454
        %v4551 = vunpack.c.l.b16 %v4455
        %v4552 = vunpack.c.l.b16 %v4456
        %v4553 = vunpack.c.l.b16 %v4457
        %v4554 = vunpack.c.l.b16 %v4458
        %v4555 = vunpack.c.l.b16 %v4459
        %v4556 = vunpack.c.l.b16 %v4460
        %v4557 = vunpack.c.l.b16 %v4461
        %v4558 = vunpack.c.l.b16 %v4462
        %v4559 = vunpack.c.l.b16 %v4463
        %v4560 = vunpack.c.l.b16 %v4464
        %v4561 = vpack.c.b16 %v4514, %v4513
        %v4562 = vpack.c.b16 %v4516, %v4515
        %v4563 = vpack.c.b16 %v4518, %v4517
        %v4564 = vpack.c.b16 %v4520, %v4519
        %v4565 = vpack.c.b16 %v4522, %v4521
        %v4566 = vpack.c.b16 %v4524, %v4523
        %v4567 = vpack.c.b16 %v4526, %v4525
        %v4568 = vpack.c.b16 %v4528, %v4527
        %v4569 = vpack.c.b16 %v4530, %v4529
        %v4570 = vpack.c.b16 %v4532, %v4531
        %v4571 = vpack.c.b16 %v4534, %v4533
        %v4572 = vpack.c.b16 %v4536, %v4535
        %v4573 = vpack.c.b16 %v4538, %v4537
        %v4574 = vpack.c.b16 %v4540, %v4539
        %v4575 = vpack.c.b16 %v4542, %v4541
        %v4576 = vpack.c.b16 %v4544, %v4543
        %v4577 = vpack.c.b16 %v4546, %v4545
        %v4578 = vpack.c.b16 %v4548, %v4547
        %v4579 = vpack.c.b16 %v4550, %v4549
        %v4580 = vpack.c.b16 %v4552, %v4551
        %v4581 = vpack.c.b16 %v4554, %v4553
        %v4582 = vpack.c.b16 %v4556, %v4555
        %v4583 = vpack.c.b16 %v4558, %v4557
        %v4584 = vpack.c.b16 %v4560, %v4559
        %4609 = vmatprep.subr.bf16.mxu0 0
        %4610 = vmatpush1.bf16.msra.mxu0 %v4561
        %4611 = vmatprep.subr.bf16.mxu0 0
        %4612 = vmatpush1.bf16.msra.mxu0 %v4562
        %4613 = vmatprep.subr.bf16.mxu0 0
        %4614 = vmatpush1.bf16.msra.mxu0 %v4563
        %4615 = vmatprep.subr.bf16.mxu0 0
        %4616 = vmatpush1.bf16.msra.mxu0 %v4564
        %4617 = vmatprep.subr.bf16.mxu0 0
        %4618 = vmatpush1.bf16.msra.mxu0 %v4565
        %4619 = vmatprep.subr.bf16.mxu0 0
        %4620 = vmatpush1.bf16.msra.mxu0 %v4566
        %4621 = vmatprep.subr.bf16.mxu0 0
        %4622 = vmatpush1.bf16.msra.mxu0 %v4567
        %4623 = vmatprep.subr.bf16.mxu0 0
        %4624 = vmatpush1.bf16.msra.mxu0 %v4568
        %4625 = vmatprep.subr.bf16.mxu0 0
        %4626 = vmatpush1.bf16.msra.mxu0 %v4569
        %4627 = vmatprep.subr.bf16.mxu0 0
        %4628 = vmatpush1.bf16.msra.mxu0 %v4570
        %4629 = vmatprep.subr.bf16.mxu0 0
        %4630 = vmatpush1.bf16.msra.mxu0 %v4571
        %4631 = vmatprep.subr.bf16.mxu0 0
        %4632 = vmatpush1.bf16.msra.mxu0 %v4572
        %4633 = vmatprep.subr.bf16.mxu0 0
        %4634 = vmatpush1.bf16.msra.mxu0 %v4573
        %4635 = vmatprep.subr.bf16.mxu0 0
        %4636 = vmatpush1.bf16.msra.mxu0 %v4574
        %4637 = vmatprep.subr.bf16.mxu0 0
        %4638 = vmatpush1.bf16.msra.mxu0 %v4575
        %4639 = vmatprep.subr.bf16.mxu0 0
        %4640 = vmatpush1.bf16.msra.mxu0 %v4576
        %4641 = vmatprep.mubr.bf16.mxu0 %v4369
        %4642 = vmatmul.mubr.bf16.gmra.mrb[0].mxu0 %v4368
        %v4643 = vpop.f32.mrb[0].mxu0
        %v4644 = vadd.f32 0.0, %v4643
        %v4645 = vpop.f32.mrb[0].mxu0
        %v4646 = vpop.f32.mrb[0].mxu0
        %v4647 = vadd.f32 0.0, %v4646
        %v4648 = vpop.f32.mrb[0].mxu0
        %4649 = vmatprep.mubr.bf16.mxu0 %v4372
        %4650 = vmatmul.mubr.bf16.gmra.mrb[0].mxu0 %v4371
        %v4651 = vpop.f32.mrb[0].mxu0
        %v4652 = vadd.f32 0.0, %v4651
        %v4653 = vpop.f32.mrb[0].mxu0
        %v4654 = vpop.f32.mrb[0].mxu0
        %v4655 = vadd.f32 0.0, %v4654
        %v4656 = vpop.f32.mrb[0].mxu0
        %4657 = vmatprep.mubr.bf16.mxu0 %v4375
        %4658 = vmatmul.mubr.bf16.gmra.mrb[0].mxu0 %v4374
        %v4659 = vpop.f32.mrb[0].mxu0
        %v4660 = vadd.f32 0.0, %v4659
        %v4661 = vpop.f32.mrb[0].mxu0
        %v4662 = vpop.f32.mrb[0].mxu0
        %v4663 = vadd.f32 0.0, %v4662
        %v4664 = vpop.f32.mrb[0].mxu0
        %4665 = vmatprep.mubr.bf16.mxu0 %v4378
        %4666 = vmatmul.mubr.bf16.gmra.mrb[0].mxu0 %v4377
        %v4667 = vpop.f32.mrb[0].mxu0
        %v4668 = vadd.f32 0.0, %v4667
        %v4669 = vpop.f32.mrb[0].mxu0
        %v4670 = vpop.f32.mrb[0].mxu0
        %v4671 = vadd.f32 0.0, %v4670
        %v4672 = vpop.f32.mrb[0].mxu0
        %4673 = vmatprep.mubr.bf16.mxu0 %v4381
        %4674 = vmatmul.mubr.bf16.gmra.mrb[0].mxu0 %v4380
        %v4675 = vpop.f32.mrb[0].mxu0
        %v4676 = vadd.f32 0.0, %v4675
        %v4677 = vpop.f32.mrb[0].mxu0
        %v4678 = vpop.f32.mrb[0].mxu0
        %v4679 = vadd.f32 0.0, %v4678
        %v4680 = vpop.f32.mrb[0].mxu0
        %4681 = vmatprep.mubr.bf16.mxu0 %v4384
        %4682 = vmatmul.mubr.bf16.gmra.mrb[0].mxu0 %v4383
        %v4683 = vpop.f32.mrb[0].mxu0
        %v4684 = vadd.f32 0.0, %v4683
        %v4685 = vpop.f32.mrb[0].mxu0
        %v4686 = vpop.f32.mrb[0].mxu0
        %v4687 = vadd.f32 0.0, %v4686
        %v4688 = vpop.f32.mrb[0].mxu0
        %4689 = vmatprep.mubr.bf16.mxu0 %v4387
        %4690 = vmatmul.mubr.bf16.gmra.mrb[0].mxu0 %v4386
        %v4691 = vpop.f32.mrb[0].mxu0
        %v4692 = vadd.f32 0.0, %v4691
        %v4693 = vpop.f32.mrb[0].mxu0
        %v4694 = vpop.f32.mrb[0].mxu0
        %v4695 = vadd.f32 0.0, %v4694
        %v4696 = vpop.f32.mrb[0].mxu0
        %4697 = vmatprep.mubr.bf16.mxu0 %v4390
        %4698 = vmatmul.mubr.bf16.gmra.mrb[0].mxu0 %v4389
        %v4699 = vpop.f32.mrb[0].mxu0
        %v4700 = vadd.f32 0.0, %v4699
        %v4701 = vpop.f32.mrb[0].mxu0
        %v4702 = vpop.f32.mrb[0].mxu0
        %v4703 = vadd.f32 0.0, %v4702
        %v4704 = vpop.f32.mrb[0].mxu0
        %4705 = vmatprep.mubr.bf16.mxu0 %v4393
        %4706 = vmatmul.mubr.bf16.gmra.mrb[0].mxu0 %v4392
        %v4707 = vpop.f32.mrb[0].mxu0
        %v4708 = vadd.f32 0.0, %v4707
        %v4709 = vpop.f32.mrb[0].mxu0
        %v4710 = vpop.f32.mrb[0].mxu0
        %v4711 = vadd.f32 0.0, %v4710
        %v4712 = vpop.f32.mrb[0].mxu0
        %4713 = vmatprep.mubr.bf16.mxu0 %v4396
        %4714 = vmatmul.mubr.bf16.gmra.mrb[0].mxu0 %v4395
        %v4715 = vpop.f32.mrb[0].mxu0
        %v4716 = vadd.f32 0.0, %v4715
        %v4717 = vpop.f32.mrb[0].mxu0
        %v4718 = vpop.f32.mrb[0].mxu0
        %v4719 = vadd.f32 0.0, %v4718
        %v4720 = vpop.f32.mrb[0].mxu0
        %4721 = vmatprep.mubr.bf16.mxu0 %v4399
        %4722 = vmatmul.mubr.bf16.gmra.mrb[0].mxu0 %v4398
        %v4723 = vpop.f32.mrb[0].mxu0
        %v4724 = vadd.f32 0.0, %v4723
        %v4725 = vpop.f32.mrb[0].mxu0
        %v4726 = vpop.f32.mrb[0].mxu0
        %v4727 = vadd.f32 0.0, %v4726
        %v4728 = vpop.f32.mrb[0].mxu0
        %4729 = vmatprep.mubr.bf16.mxu0 %v4402
        %4730 = vmatmul.mubr.bf16.gmra.mrb[0].mxu0 %v4401
        %v4731 = vpop.f32.mrb[0].mxu0
        %v4732 = vadd.f32 0.0, %v4731
        %v4733 = vpop.f32.mrb[0].mxu0
        %v4734 = vpop.f32.mrb[0].mxu0
        %v4735 = vadd.f32 0.0, %v4734
        %v4736 = vpop.f32.mrb[0].mxu0
        %4737 = vmatprep.mubr.bf16.mxu0 %v4405
        %4738 = vmatmul.mubr.bf16.gmra.mrb[0].mxu0 %v4404
        %v4739 = vpop.f32.mrb[0].mxu0
        %v4740 = vadd.f32 0.0, %v4739
        %v4741 = vpop.f32.mrb[0].mxu0
        %v4742 = vpop.f32.mrb[0].mxu0
        %v4743 = vadd.f32 0.0, %v4742
        %v4744 = vpop.f32.mrb[0].mxu0
        %4745 = vmatprep.mubr.bf16.mxu0 %v4408
        %4746 = vmatmul.mubr.bf16.gmra.mrb[0].mxu0 %v4407
        %v4747 = vpop.f32.mrb[0].mxu0
        %v4748 = vadd.f32 0.0, %v4747
        %v4749 = vpop.f32.mrb[0].mxu0
        %v4750 = vpop.f32.mrb[0].mxu0
        %v4751 = vadd.f32 0.0, %v4750
        %v4752 = vpop.f32.mrb[0].mxu0
        %4753 = vmatprep.mubr.bf16.mxu0 %v4411
        %4754 = vmatmul.mubr.bf16.gmra.mrb[0].mxu0 %v4410
        %v4755 = vpop.f32.mrb[0].mxu0
        %v4756 = vadd.f32 0.0, %v4755
        %v4757 = vpop.f32.mrb[0].mxu0
        %v4758 = vpop.f32.mrb[0].mxu0
        %v4759 = vadd.f32 0.0, %v4758
        %v4760 = vpop.f32.mrb[0].mxu0
        %4761 = vmatprep.mubr.bf16.mxu0 %v4414
        %4762 = vmatmul.mubr.bf16.gmra.mrb[0].mxu0 %v4413
        %v4763 = vpop.f32.mrb[0].mxu0
        %v4764 = vadd.f32 0.0, %v4763
        %v4765 = vpop.f32.mrb[0].mxu0
        %v4766 = vpop.f32.mrb[0].mxu0
        %v4767 = vadd.f32 0.0, %v4766
        %v4768 = vpop.f32.mrb[0].mxu0
        %4769 = vdwg.mxu0
        %4770 = vmatprep.subr.bf16.mxu0 0
        %4771 = vmatpush1.bf16.msra.mxu0 %v4577
        %4772 = vmatprep.subr.bf16.mxu0 0
        %4773 = vmatpush1.bf16.msra.mxu0 %v4578
        %4774 = vmatprep.subr.bf16.mxu0 0
        %4775 = vmatpush1.bf16.msra.mxu0 %v4579
        %4776 = vmatprep.subr.bf16.mxu0 0
        %4777 = vmatpush1.bf16.msra.mxu0 %v4580
        %4778 = vmatprep.subr.bf16.mxu0 0
        %4779 = vmatpush1.bf16.msra.mxu0 %v4581
        %4780 = vmatprep.subr.bf16.mxu0 0
        %4781 = vmatpush1.bf16.msra.mxu0 %v4582
        %4782 = vmatprep.subr.bf16.mxu0 0
        %4783 = vmatpush1.bf16.msra.mxu0 %v4583
        %4784 = vmatprep.subr.bf16.mxu0 0
        %4785 = vmatpush1.bf16.msra.mxu0 %v4584
        %4786 = vmatprep.subr.bf16.mxu0 0
        %4787 = vmatpush1.bf16.msra.mxu0 0
        %4788 = vmatprep.subr.bf16.mxu0 0
        %4789 = vmatpush1.bf16.msra.mxu0 0
        %4790 = vmatprep.subr.bf16.mxu0 0
        %4791 = vmatpush1.bf16.msra.mxu0 0
        %4792 = vmatprep.subr.bf16.mxu0 0
        %4793 = vmatpush1.bf16.msra.mxu0 0
        %4794 = vmatprep.subr.bf16.mxu0 0
        %4795 = vmatpush1.bf16.msra.mxu0 0
        %4796 = vmatprep.subr.bf16.mxu0 0
        %4797 = vmatpush1.bf16.msra.mxu0 0
        %4798 = vmatprep.subr.bf16.mxu0 0
        %4799 = vmatpush1.bf16.msra.mxu0 0
        %4800 = vmatprep.subr.bf16.mxu0 0
        %4801 = vmatpush1.bf16.msra.mxu0 0
        %4802 = vmatprep.mubr.bf16.mxu0 0
        %4803 = vmatmul.mubr.bf16.gmra.mrb[0].mxu0 %v4370
        %v4804 = vpop.f32.mrb[0].mxu0
        %v4805 = vadd.f32 %v4644, %v4804
        %v4806 = vpop.f32.mrb[0].mxu0
        %v4807 = vpop.f32.mrb[0].mxu0
        %v4808 = vadd.f32 %v4647, %v4807
        %v4809 = vpop.f32.mrb[0].mxu0
        %4810 = vmatprep.mubr.bf16.mxu0 0
        %4811 = vmatmul.mubr.bf16.gmra.mrb[0].mxu0 %v4373
        %v4812 = vpop.f32.mrb[0].mxu0
        %v4813 = vadd.f32 %v4652, %v4812
        %v4814 = vpop.f32.mrb[0].mxu0
        %v4815 = vpop.f32.mrb[0].mxu0
        %v4816 = vadd.f32 %v4655, %v4815
        %v4817 = vpop.f32.mrb[0].mxu0
        %4818 = vmatprep.mubr.bf16.mxu0 0
        %4819 = vmatmul.mubr.bf16.gmra.mrb[0].mxu0 %v4376
        %v4820 = vpop.f32.mrb[0].mxu0
        %v4821 = vadd.f32 %v4660, %v4820
        %v4822 = vpop.f32.mrb[0].mxu0
        %v4823 = vpop.f32.mrb[0].mxu0
        %v4824 = vadd.f32 %v4663, %v4823
        %v4825 = vpop.f32.mrb[0].mxu0
        %4826 = vmatprep.mubr.bf16.mxu0 0
        %4827 = vmatmul.mubr.bf16.gmra.mrb[0].mxu0 %v4379
        %v4828 = vpop.f32.mrb[0].mxu0
        %v4829 = vadd.f32 %v4668, %v4828
        %v4830 = vpop.f32.mrb[0].mxu0
        %v4831 = vpop.f32.mrb[0].mxu0
        %v4832 = vadd.f32 %v4671, %v4831
        %v4833 = vpop.f32.mrb[0].mxu0
        %4834 = vmatprep.mubr.bf16.mxu0 0
        %4835 = vmatmul.mubr.bf16.gmra.mrb[0].mxu0 %v4382
        %v4836 = vpop.f32.mrb[0].mxu0
        %v4837 = vadd.f32 %v4676, %v4836
        %v4838 = vpop.f32.mrb[0].mxu0
        %v4839 = vpop.f32.mrb[0].mxu0
        %v4840 = vadd.f32 %v4679, %v4839
        %v4841 = vpop.f32.mrb[0].mxu0
        %4842 = vmatprep.mubr.bf16.mxu0 0
        %4843 = vmatmul.mubr.bf16.gmra.mrb[0].mxu0 %v4385
        %v4844 = vpop.f32.mrb[0].mxu0
        %v4845 = vadd.f32 %v4684, %v4844
        %v4846 = vpop.f32.mrb[0].mxu0
        %v4847 = vpop.f32.mrb[0].mxu0
        %v4848 = vadd.f32 %v4687, %v4847
        %v4849 = vpop.f32.mrb[0].mxu0
        %4850 = vmatprep.mubr.bf16.mxu0 0
        %4851 = vmatmul.mubr.bf16.gmra.mrb[0].mxu0 %v4388
        %v4852 = vpop.f32.mrb[0].mxu0
        %v4853 = vadd.f32 %v4692, %v4852
        %v4854 = vpop.f32.mrb[0].mxu0
        %v4855 = vpop.f32.mrb[0].mxu0
        %v4856 = vadd.f32 %v4695, %v4855
        %v4857 = vpop.f32.mrb[0].mxu0
        %4858 = vmatprep.mubr.bf16.mxu0 0
        %4859 = vmatmul.mubr.bf16.gmra.mrb[0].mxu0 %v4391
        %v4860 = vpop.f32.mrb[0].mxu0
        %v4861 = vadd.f32 %v4700, %v4860
        %v4862 = vpop.f32.mrb[0].mxu0
        %v4863 = vpop.f32.mrb[0].mxu0
        %v4864 = vadd.f32 %v4703, %v4863
        %v4865 = vpop.f32.mrb[0].mxu0
        %4866 = vmatprep.mubr.bf16.mxu0 0
        %4867 = vmatmul.mubr.bf16.gmra.mrb[0].mxu0 %v4394
        %v4868 = vpop.f32.mrb[0].mxu0
        %v4869 = vadd.f32 %v4708, %v4868
        %v4870 = vpop.f32.mrb[0].mxu0
        %v4871 = vpop.f32.mrb[0].mxu0
        %v4872 = vadd.f32 %v4711, %v4871
        %v4873 = vpop.f32.mrb[0].mxu0
        %4874 = vmatprep.mubr.bf16.mxu0 0
        %4875 = vmatmul.mubr.bf16.gmra.mrb[0].mxu0 %v4397
        %v4876 = vpop.f32.mrb[0].mxu0
        %v4877 = vadd.f32 %v4716, %v4876
        %v4878 = vpop.f32.mrb[0].mxu0
        %v4879 = vpop.f32.mrb[0].mxu0
        %v4880 = vadd.f32 %v4719, %v4879
        %v4881 = vpop.f32.mrb[0].mxu0
        %4882 = vmatprep.mubr.bf16.mxu0 0
        %4883 = vmatmul.mubr.bf16.gmra.mrb[0].mxu0 %v4400
        %v4884 = vpop.f32.mrb[0].mxu0
        %v4885 = vadd.f32 %v4724, %v4884
        %v4886 = vpop.f32.mrb[0].mxu0
        %v4887 = vpop.f32.mrb[0].mxu0
        %v4888 = vadd.f32 %v4727, %v4887
        %v4889 = vpop.f32.mrb[0].mxu0
        %4890 = vmatprep.mubr.bf16.mxu0 0
        %4891 = vmatmul.mubr.bf16.gmra.mrb[0].mxu0 %v4403
        %v4892 = vpop.f32.mrb[0].mxu0
        %v4893 = vadd.f32 %v4732, %v4892
        %v4894 = vpop.f32.mrb[0].mxu0
        %v4895 = vpop.f32.mrb[0].mxu0
        %v4896 = vadd.f32 %v4735, %v4895
        %v4897 = vpop.f32.mrb[0].mxu0
        %4898 = vmatprep.mubr.bf16.mxu0 0
        %4899 = vmatmul.mubr.bf16.gmra.mrb[0].mxu0 %v4406
        %v4900 = vpop.f32.mrb[0].mxu0
        %v4901 = vadd.f32 %v4740, %v4900
        %v4902 = vpop.f32.mrb[0].mxu0
        %v4903 = vpop.f32.mrb[0].mxu0
        %v4904 = vadd.f32 %v4743, %v4903
        %v4905 = vpop.f32.mrb[0].mxu0
        %4906 = vmatprep.mubr.bf16.mxu0 0
        %4907 = vmatmul.mubr.bf16.gmra.mrb[0].mxu0 %v4409
        %v4908 = vpop.f32.mrb[0].mxu0
        %v4909 = vadd.f32 %v4748, %v4908
        %v4910 = vpop.f32.mrb[0].mxu0
        %v4911 = vpop.f32.mrb[0].mxu0
        %v4912 = vadd.f32 %v4751, %v4911
        %v4913 = vpop.f32.mrb[0].mxu0
        %4914 = vmatprep.mubr.bf16.mxu0 0
        %4915 = vmatmul.mubr.bf16.gmra.mrb[0].mxu0 %v4412
        %v4916 = vpop.f32.mrb[0].mxu0
        %v4917 = vadd.f32 %v4756, %v4916
        %v4918 = vpop.f32.mrb[0].mxu0
        %v4919 = vpop.f32.mrb[0].mxu0
        %v4920 = vadd.f32 %v4759, %v4919
        %v4921 = vpop.f32.mrb[0].mxu0
        %4922 = vmatprep.mubr.bf16.mxu0 0
        %4923 = vmatmul.mubr.bf16.gmra.mrb[0].mxu0 %v4415
        %v4924 = vpop.f32.mrb[0].mxu0
        %v4925 = vadd.f32 %v4764, %v4924
        %v4926 = vpop.f32.mrb[0].mxu0
        %v4927 = vpop.f32.mrb[0].mxu0
        %v4928 = vadd.f32 %v4767, %v4927
        %v4929 = vpop.f32.mrb[0].mxu0
        %4930 = vdwg.mxu0
        %v4931 = vadd.f32 %v4336, %v4805
        %v4932 = vadd.f32 %v4337, %v4808
        %v4933 = vadd.f32 %v4338, %v4813
        %v4934 = vadd.f32 %v4339, %v4816
        %v4935 = vadd.f32 %v4340, %v4821
        %v4936 = vadd.f32 %v4341, %v4824
        %v4937 = vadd.f32 %v4342, %v4829
        %v4938 = vadd.f32 %v4343, %v4832
        %v4939 = vadd.f32 %v4344, %v4837
        %v4940 = vadd.f32 %v4345, %v4840
        %v4941 = vadd.f32 %v4346, %v4845
        %v4942 = vadd.f32 %v4347, %v4848
        %v4943 = vadd.f32 %v4348, %v4853
        %v4944 = vadd.f32 %v4349, %v4856
        %v4945 = vadd.f32 %v4350, %v4861
        %v4946 = vadd.f32 %v4351, %v4864
        %v4947 = vadd.f32 %v4352, %v4869
        %v4948 = vadd.f32 %v4353, %v4872
        %v4949 = vadd.f32 %v4354, %v4877
        %v4950 = vadd.f32 %v4355, %v4880
        %v4951 = vadd.f32 %v4356, %v4885
        %v4952 = vadd.f32 %v4357, %v4888
        %v4953 = vadd.f32 %v4358, %v4893
        %v4954 = vadd.f32 %v4359, %v4896
        %v4955 = vadd.f32 %v4360, %v4901
        %v4956 = vadd.f32 %v4361, %v4904
        %v4957 = vadd.f32 %v4362, %v4909
        %v4958 = vadd.f32 %v4363, %v4912
        %v4959 = vadd.f32 %v4364, %v4917
        %v4960 = vadd.f32 %v4365, %v4920
        %v4961 = vadd.f32 %v4366, %v4925
        %v4962 = vadd.f32 %v4367, %v4928
        %4963 = vst [vmem:[#allocation2] sm:$0xff] %v4931
        %4964 = vst [vmem:[#allocation2 + $0x8] sm:$0xff] %v4932
        %4965 = vst [vmem:[#allocation2 + $0x10] sm:$0xff] %v4933
        %4966 = vst [vmem:[#allocation2 + $0x18] sm:$0xff] %v4934
        %4967 = vst [vmem:[#allocation2 + $0x20] sm:$0xff] %v4935
        %4968 = vst [vmem:[#allocation2 + $0x28] sm:$0xff] %v4936
        %4969 = vst [vmem:[#allocation2 + $0x30] sm:$0xff] %v4937
        %4970 = vst [vmem:[#allocation2 + $0x38] sm:$0xff] %v4938
        %4971 = vst [vmem:[#allocation2 + $0x40] sm:$0xff] %v4939
        %4972 = vst [vmem:[#allocation2 + $0x48] sm:$0xff] %v4940
        %4973 = vst [vmem:[#allocation2 + $0x50] sm:$0xff] %v4941
        %4974 = vst [vmem:[#allocation2 + $0x58] sm:$0xff] %v4942
        %4975 = vst [vmem:[#allocation2 + $0x60] sm:$0xff] %v4943
        %4976 = vst [vmem:[#allocation2 + $0x68] sm:$0xff] %v4944
        %4977 = vst [vmem:[#allocation2 + $0x70] sm:$0xff] %v4945
        %4978 = vst [vmem:[#allocation2 + $0x78] sm:$0xff] %v4946
        %4979 = vst [vmem:[#allocation2 + $0x80] sm:$0xff] %v4947
        %4980 = vst [vmem:[#allocation2 + $0x88] sm:$0xff] %v4948
        %4981 = vst [vmem:[#allocation2 + $0x90] sm:$0xff] %v4949
        %4982 = vst [vmem:[#allocation2 + $0x98] sm:$0xff] %v4950
        %4983 = vst [vmem:[#allocation2 + $0xa0] sm:$0xff] %v4951
        %4984 = vst [vmem:[#allocation2 + $0xa8] sm:$0xff] %v4952
        %4985 = vst [vmem:[#allocation2 + $0xb0] sm:$0xff] %v4953
        %4986 = vst [vmem:[#allocation2 + $0xb8] sm:$0xff] %v4954
        %4987 = vst [vmem:[#allocation2 + $0xc0] sm:$0xff] %v4955
        %4988 = vst [vmem:[#allocation2 + $0xc8] sm:$0xff] %v4956
        %4989 = vst [vmem:[#allocation2 + $0xd0] sm:$0xff] %v4957
        %4990 = vst [vmem:[#allocation2 + $0xd8] sm:$0xff] %v4958
        %4991 = vst [vmem:[#allocation2 + $0xe0] sm:$0xff] %v4959
        %4992 = vst [vmem:[#allocation2 + $0xe8] sm:$0xff] %v4960
        %4993 = vst [vmem:[#allocation2 + $0xf0] sm:$0xff] %v4961
        %4994 = vst [vmem:[#allocation2 + $0xf8] sm:$0xff] %v4962
        %v4995 = vld [vmem:[#allocation2] sm:$0xff]
        %v4996 = vld [vmem:[#allocation2 + $0x8] sm:$0xff]
        %v4997 = vld [vmem:[#allocation2 + $0x10] sm:$0xff]
        %v4998 = vld [vmem:[#allocation2 + $0x18] sm:$0xff]
        %v4999 = vld [vmem:[#allocation2 + $0x20] sm:$0xff]
        %v5000 = vld [vmem:[#allocation2 + $0x28] sm:$0xff]
        %v5001 = vld [vmem:[#allocation2 + $0x30] sm:$0xff]
        %v5002 = vld [vmem:[#allocation2 + $0x38] sm:$0xff]
        %v5003 = vld [vmem:[#allocation2 + $0x40] sm:$0xff]
        %v5004 = vld [vmem:[#allocation2 + $0x48] sm:$0xff]
        %v5005 = vld [vmem:[#allocation2 + $0x50] sm:$0xff]
        %v5006 = vld [vmem:[#allocation2 + $0x58] sm:$0xff]
        %v5007 = vld [vmem:[#allocation2 + $0x60] sm:$0xff]
        %v5008 = vld [vmem:[#allocation2 + $0x68] sm:$0xff]
        %v5009 = vld [vmem:[#allocation2 + $0x70] sm:$0xff]
        %v5010 = vld [vmem:[#allocation2 + $0x78] sm:$0xff]
        %v5011 = vld [vmem:[#allocation2 + $0x80] sm:$0xff]
        %v5012 = vld [vmem:[#allocation2 + $0x88] sm:$0xff]
        %v5013 = vld [vmem:[#allocation2 + $0x90] sm:$0xff]
        %v5014 = vld [vmem:[#allocation2 + $0x98] sm:$0xff]
        %v5015 = vld [vmem:[#allocation2 + $0xa0] sm:$0xff]
        %v5016 = vld [vmem:[#allocation2 + $0xa8] sm:$0xff]
        %v5017 = vld [vmem:[#allocation2 + $0xb0] sm:$0xff]
        %v5018 = vld [vmem:[#allocation2 + $0xb8] sm:$0xff]
        %v5019 = vld [vmem:[#allocation2 + $0xc0] sm:$0xff]
        %v5020 = vld [vmem:[#allocation2 + $0xc8] sm:$0xff]
        %v5021 = vld [vmem:[#allocation2 + $0xd0] sm:$0xff]
        %v5022 = vld [vmem:[#allocation2 + $0xd8] sm:$0xff]
        %v5023 = vld [vmem:[#allocation2 + $0xe0] sm:$0xff]
        %v5024 = vld [vmem:[#allocation2 + $0xe8] sm:$0xff]
        %v5025 = vld [vmem:[#allocation2 + $0xf0] sm:$0xff]
        %v5026 = vld [vmem:[#allocation2 + $0xf8] sm:$0xff]
        %v5027 = vld [vmem:[#allocation3 + $0x30] sm:$0xff]
        %v5028 = vld [vmem:[#allocation3 + $0x38] sm:$0xff]
        %v5029 = vld [vmem:[#allocation3 + $0x40] sm:$0xff]
        %v5030 = vld [vmem:[#allocation3 + $0x48] sm:$0xff]
        %v5031 = vld [vmem:[#allocation3 + $0x50] sm:$0xff]
        %v5032 = vld [vmem:[#allocation3 + $0x58] sm:$0xff]
        %v5033 = vld [vmem:[#allocation3 + $0x60] sm:$0xff]
        %v5034 = vld [vmem:[#allocation3 + $0x68] sm:$0xff]
        %v5035 = vld [vmem:[#allocation3 + $0x70] sm:$0xff]
        %v5036 = vld [vmem:[#allocation3 + $0x78] sm:$0xff]
        %v5037 = vld [vmem:[#allocation3 + $0x80] sm:$0xff]
        %v5038 = vld [vmem:[#allocation3 + $0x88] sm:$0xff]
        %v5039 = vld [vmem:[#allocation3 + $0x90] sm:$0xff]
        %v5040 = vld [vmem:[#allocation3 + $0x98] sm:$0xff]
        %v5041 = vld [vmem:[#allocation3 + $0xa0] sm:$0xff]
        %v5042 = vld [vmem:[#allocation3 + $0xa8] sm:$0xff]
        %v5043 = vld [vmem:[#allocation3 + $0xb0] sm:$0xff]
        %v5044 = vld [vmem:[#allocation3 + $0xb8] sm:$0xff]
        %v5045 = vld [vmem:[#allocation3 + $0xc0] sm:$0xff]
        %v5046 = vld [vmem:[#allocation3 + $0xc8] sm:$0xff]
        %v5047 = vld [vmem:[#allocation3 + $0xd0] sm:$0xff]
        %v5048 = vld [vmem:[#allocation3 + $0xd8] sm:$0xff]
        %v5049 = vld [vmem:[#allocation3 + $0xe0] sm:$0xff]
        %v5050 = vld [vmem:[#allocation3 + $0xe8] sm:$0xff]
        %v5051 = vld [vmem:[#allocation3 + $0xf0] sm:$0xff]
        %v5052 = vld [vmem:[#allocation3 + $0xf8] sm:$0xff]
        %v5053 = vld [vmem:[#allocation3 + $0x100] sm:$0xff]
        %v5054 = vld [vmem:[#allocation3 + $0x108] sm:$0xff]
        %v5055 = vld [vmem:[#allocation3 + $0x110] sm:$0xff]
        %v5056 = vld [vmem:[#allocation3 + $0x118] sm:$0xff]
        %v5057 = vld [vmem:[#allocation3 + $0x120] sm:$0xff]
        %v5058 = vld [vmem:[#allocation3 + $0x128] sm:$0xff]
        %v5059 = vld [vmem:[#allocation3 + $0x130] sm:$0xff]
        %v5060 = vld [vmem:[#allocation3 + $0x138] sm:$0xff]
        %v5061 = vld [vmem:[#allocation3 + $0x140] sm:$0xff]
        %v5062 = vld [vmem:[#allocation3 + $0x148] sm:$0xff]
        %v5063 = vld [vmem:[#allocation3 + $0x150] sm:$0xff]
        %v5064 = vld [vmem:[#allocation3 + $0x158] sm:$0xff]
        %v5065 = vld [vmem:[#allocation3 + $0x160] sm:$0xff]
        %v5066 = vld [vmem:[#allocation3 + $0x168] sm:$0xff]
        %v5067 = vld [vmem:[#allocation3 + $0x170] sm:$0xff]
        %v5068 = vld [vmem:[#allocation3 + $0x178] sm:$0xff]
        %v5069 = vld [vmem:[#allocation3 + $0x180] sm:$0xff]
        %v5070 = vld [vmem:[#allocation3 + $0x188] sm:$0xff]
        %v5071 = vld [vmem:[#allocation3 + $0x190] sm:$0xff]
        %v5072 = vld [vmem:[#allocation3 + $0x198] sm:$0xff]
        %v5073 = vld [vmem:[#allocation3 + $0x1a0] sm:$0xff]
        %v5074 = vld [vmem:[#allocation3 + $0x1a8] sm:$0xff]
        %s5075 = scalar_lea.vmem %s3, 384
        %v5076 = vld [vmem:[%s5075] sm:$0xf]
        %v5077 = vld [vmem:[%s5075 + $0x4] sm:$0xf]
        %v5078 = vld [vmem:[%s5075 + $0x8] sm:$0xf]
        %v5079 = vld [vmem:[%s5075 + $0xc] sm:$0xf]
        %v5080 = vld [vmem:[%s5075 + $0x10] sm:$0xf]
        %v5081 = vld [vmem:[%s5075 + $0x14] sm:$0xf]
        %v5082 = vld [vmem:[%s5075 + $0x18] sm:$0xf]
        %v5083 = vld [vmem:[%s5075 + $0x1c] sm:$0xf]
        %v5084 = vld [vmem:[%s5075 + $0x20] sm:$0xf]
        %v5085 = vld [vmem:[%s5075 + $0x24] sm:$0xf]
        %v5086 = vld [vmem:[%s5075 + $0x28] sm:$0xf]
        %v5087 = vld [vmem:[%s5075 + $0x2c] sm:$0xf]
        %v5088 = vld [vmem:[%s5075 + $0x30] sm:$0xf]
        %v5089 = vld [vmem:[%s5075 + $0x34] sm:$0xf]
        %v5090 = vld [vmem:[%s5075 + $0x38] sm:$0xf]
        %v5091 = vld [vmem:[%s5075 + $0x3c] sm:$0xf]
        %v5092 = vld [vmem:[%s5075 + $0x40] sm:$0xf]
        %v5093 = vld [vmem:[%s5075 + $0x44] sm:$0xf]
        %v5094 = vld [vmem:[%s5075 + $0x48] sm:$0xf]
        %v5095 = vld [vmem:[%s5075 + $0x4c] sm:$0xf]
        %v5096 = vld [vmem:[%s5075 + $0x50] sm:$0xf]
        %v5097 = vld [vmem:[%s5075 + $0x54] sm:$0xf]
        %v5098 = vld [vmem:[%s5075 + $0x58] sm:$0xf]
        %v5099 = vld [vmem:[%s5075 + $0x5c] sm:$0xf]
        %v5100 = vld [vmem:[%s5075 + $0x60] sm:$0xf]
        %v5101 = vld [vmem:[%s5075 + $0x64] sm:$0xf]
        %v5102 = vld [vmem:[%s5075 + $0x68] sm:$0xf]
        %v5103 = vld [vmem:[%s5075 + $0x6c] sm:$0xf]
        %v5104 = vld [vmem:[%s5075 + $0x70] sm:$0xf]
        %v5105 = vld [vmem:[%s5075 + $0x74] sm:$0xf]
        %v5106 = vld [vmem:[%s5075 + $0x78] sm:$0xf]
        %v5107 = vld [vmem:[%s5075 + $0x7c] sm:$0xf]
        %v5108 = vld [vmem:[%s5075 + $0x80] sm:$0xf]
        %v5109 = vld [vmem:[%s5075 + $0x84] sm:$0xf]
        %v5110 = vld [vmem:[%s5075 + $0x88] sm:$0xf]
        %v5111 = vld [vmem:[%s5075 + $0x8c] sm:$0xf]
        %v5112 = vld [vmem:[%s5075 + $0x90] sm:$0xf]
        %v5113 = vld [vmem:[%s5075 + $0x94] sm:$0xf]
        %v5114 = vld [vmem:[%s5075 + $0x98] sm:$0xf]
        %v5115 = vld [vmem:[%s5075 + $0x9c] sm:$0xf]
        %v5116 = vld [vmem:[%s5075 + $0xa0] sm:$0xf]
        %v5117 = vld [vmem:[%s5075 + $0xa4] sm:$0xf]
        %v5118 = vld [vmem:[%s5075 + $0xa8] sm:$0xf]
        %v5119 = vld [vmem:[%s5075 + $0xac] sm:$0xf]
        %v5120 = vld [vmem:[%s5075 + $0xb0] sm:$0xf]
        %v5121 = vld [vmem:[%s5075 + $0xb4] sm:$0xf]
        %v5122 = vld [vmem:[%s5075 + $0xb8] sm:$0xf]
        %v5123 = vld [vmem:[%s5075 + $0xbc] sm:$0xf]
        %v5172 = vunpack.c.l.b16 %v5076
        %v5173 = vunpack.c.l.b16 %v5077
        %v5174 = vunpack.c.l.b16 %v5078
        %v5175 = vunpack.c.l.b16 %v5079
        %v5176 = vunpack.c.l.b16 %v5080
        %v5177 = vunpack.c.l.b16 %v5081
        %v5178 = vunpack.c.l.b16 %v5082
        %v5179 = vunpack.c.l.b16 %v5083
        %v5180 = vunpack.c.l.b16 %v5084
        %v5181 = vunpack.c.l.b16 %v5085
        %v5182 = vunpack.c.l.b16 %v5086
        %v5183 = vunpack.c.l.b16 %v5087
        %v5184 = vunpack.c.l.b16 %v5088
        %v5185 = vunpack.c.l.b16 %v5089
        %v5186 = vunpack.c.l.b16 %v5090
        %v5187 = vunpack.c.l.b16 %v5091
        %v5188 = vunpack.c.l.b16 %v5092
        %v5189 = vunpack.c.l.b16 %v5093
        %v5190 = vunpack.c.l.b16 %v5094
        %v5191 = vunpack.c.l.b16 %v5095
        %v5192 = vunpack.c.l.b16 %v5096
        %v5193 = vunpack.c.l.b16 %v5097
        %v5194 = vunpack.c.l.b16 %v5098
        %v5195 = vunpack.c.l.b16 %v5099
        %v5196 = vunpack.c.l.b16 %v5100
        %v5197 = vunpack.c.l.b16 %v5101
        %v5198 = vunpack.c.l.b16 %v5102
        %v5199 = vunpack.c.l.b16 %v5103
        %v5200 = vunpack.c.l.b16 %v5104
        %v5201 = vunpack.c.l.b16 %v5105
        %v5202 = vunpack.c.l.b16 %v5106
        %v5203 = vunpack.c.l.b16 %v5107
        %v5204 = vunpack.c.l.b16 %v5108
        %v5205 = vunpack.c.l.b16 %v5109
        %v5206 = vunpack.c.l.b16 %v5110
        %v5207 = vunpack.c.l.b16 %v5111
        %v5208 = vunpack.c.l.b16 %v5112
        %v5209 = vunpack.c.l.b16 %v5113
        %v5210 = vunpack.c.l.b16 %v5114
        %v5211 = vunpack.c.l.b16 %v5115
        %v5212 = vunpack.c.l.b16 %v5116
        %v5213 = vunpack.c.l.b16 %v5117
        %v5214 = vunpack.c.l.b16 %v5118
        %v5215 = vunpack.c.l.b16 %v5119
        %v5216 = vunpack.c.l.b16 %v5120
        %v5217 = vunpack.c.l.b16 %v5121
        %v5218 = vunpack.c.l.b16 %v5122
        %v5219 = vunpack.c.l.b16 %v5123
        %v5220 = vpack.c.b16 %v5173, %v5172
        %v5221 = vpack.c.b16 %v5175, %v5174
        %v5222 = vpack.c.b16 %v5177, %v5176
        %v5223 = vpack.c.b16 %v5179, %v5178
        %v5224 = vpack.c.b16 %v5181, %v5180
        %v5225 = vpack.c.b16 %v5183, %v5182
        %v5226 = vpack.c.b16 %v5185, %v5184
        %v5227 = vpack.c.b16 %v5187, %v5186
        %v5228 = vpack.c.b16 %v5189, %v5188
        %v5229 = vpack.c.b16 %v5191, %v5190
        %v5230 = vpack.c.b16 %v5193, %v5192
        %v5231 = vpack.c.b16 %v5195, %v5194
        %v5232 = vpack.c.b16 %v5197, %v5196
        %v5233 = vpack.c.b16 %v5199, %v5198
        %v5234 = vpack.c.b16 %v5201, %v5200
        %v5235 = vpack.c.b16 %v5203, %v5202
        %v5236 = vpack.c.b16 %v5205, %v5204
        %v5237 = vpack.c.b16 %v5207, %v5206
        %v5238 = vpack.c.b16 %v5209, %v5208
        %v5239 = vpack.c.b16 %v5211, %v5210
        %v5240 = vpack.c.b16 %v5213, %v5212
        %v5241 = vpack.c.b16 %v5215, %v5214
        %v5242 = vpack.c.b16 %v5217, %v5216
        %v5243 = vpack.c.b16 %v5219, %v5218
        %5268 = vmatprep.subr.bf16.mxu0 0
        %5269 = vmatpush1.bf16.msra.mxu0 %v5220
        %5270 = vmatprep.subr.bf16.mxu0 0
        %5271 = vmatpush1.bf16.msra.mxu0 %v5221
        %5272 = vmatprep.subr.bf16.mxu0 0
        %5273 = vmatpush1.bf16.msra.mxu0 %v5222
        %5274 = vmatprep.subr.bf16.mxu0 0
        %5275 = vmatpush1.bf16.msra.mxu0 %v5223
        %5276 = vmatprep.subr.bf16.mxu0 0
        %5277 = vmatpush1.bf16.msra.mxu0 %v5224
        %5278 = vmatprep.subr.bf16.mxu0 0
        %5279 = vmatpush1.bf16.msra.mxu0 %v5225
        %5280 = vmatprep.subr.bf16.mxu0 0
        %5281 = vmatpush1.bf16.msra.mxu0 %v5226
        %5282 = vmatprep.subr.bf16.mxu0 0
        %5283 = vmatpush1.bf16.msra.mxu0 %v5227
        %5284 = vmatprep.subr.bf16.mxu0 0
        %5285 = vmatpush1.bf16.msra.mxu0 %v5228
        %5286 = vmatprep.subr.bf16.mxu0 0
        %5287 = vmatpush1.bf16.msra.mxu0 %v5229
        %5288 = vmatprep.subr.bf16.mxu0 0
        %5289 = vmatpush1.bf16.msra.mxu0 %v5230
        %5290 = vmatprep.subr.bf16.mxu0 0
        %5291 = vmatpush1.bf16.msra.mxu0 %v5231
        %5292 = vmatprep.subr.bf16.mxu0 0
        %5293 = vmatpush1.bf16.msra.mxu0 %v5232
        %5294 = vmatprep.subr.bf16.mxu0 0
        %5295 = vmatpush1.bf16.msra.mxu0 %v5233
        %5296 = vmatprep.subr.bf16.mxu0 0
        %5297 = vmatpush1.bf16.msra.mxu0 %v5234
        %5298 = vmatprep.subr.bf16.mxu0 0
        %5299 = vmatpush1.bf16.msra.mxu0 %v5235
        %5300 = vmatprep.mubr.bf16.mxu0 %v5028
        %5301 = vmatmul.mubr.bf16.gmra.mrb[0].mxu0 %v5027
        %v5302 = vpop.f32.mrb[0].mxu0
        %v5303 = vadd.f32 0.0, %v5302
        %v5304 = vpop.f32.mrb[0].mxu0
        %v5305 = vpop.f32.mrb[0].mxu0
        %v5306 = vadd.f32 0.0, %v5305
        %v5307 = vpop.f32.mrb[0].mxu0
        %5308 = vmatprep.mubr.bf16.mxu0 %v5031
        %5309 = vmatmul.mubr.bf16.gmra.mrb[0].mxu0 %v5030
        %v5310 = vpop.f32.mrb[0].mxu0
        %v5311 = vadd.f32 0.0, %v5310
        %v5312 = vpop.f32.mrb[0].mxu0
        %v5313 = vpop.f32.mrb[0].mxu0
        %v5314 = vadd.f32 0.0, %v5313
        %v5315 = vpop.f32.mrb[0].mxu0
        %5316 = vmatprep.mubr.bf16.mxu0 %v5034
        %5317 = vmatmul.mubr.bf16.gmra.mrb[0].mxu0 %v5033
        %v5318 = vpop.f32.mrb[0].mxu0
        %v5319 = vadd.f32 0.0, %v5318
        %v5320 = vpop.f32.mrb[0].mxu0
        %v5321 = vpop.f32.mrb[0].mxu0
        %v5322 = vadd.f32 0.0, %v5321
        %v5323 = vpop.f32.mrb[0].mxu0
        %5324 = vmatprep.mubr.bf16.mxu0 %v5037
        %5325 = vmatmul.mubr.bf16.gmra.mrb[0].mxu0 %v5036
        %v5326 = vpop.f32.mrb[0].mxu0
        %v5327 = vadd.f32 0.0, %v5326
        %v5328 = vpop.f32.mrb[0].mxu0
        %v5329 = vpop.f32.mrb[0].mxu0
        %v5330 = vadd.f32 0.0, %v5329
        %v5331 = vpop.f32.mrb[0].mxu0
        %5332 = vmatprep.mubr.bf16.mxu0 %v5040
        %5333 = vmatmul.mubr.bf16.gmra.mrb[0].mxu0 %v5039
        %v5334 = vpop.f32.mrb[0].mxu0
        %v5335 = vadd.f32 0.0, %v5334
        %v5336 = vpop.f32.mrb[0].mxu0
        %v5337 = vpop.f32.mrb[0].mxu0
        %v5338 = vadd.f32 0.0, %v5337
        %v5339 = vpop.f32.mrb[0].mxu0
        %5340 = vmatprep.mubr.bf16.mxu0 %v5043
        %5341 = vmatmul.mubr.bf16.gmra.mrb[0].mxu0 %v5042
        %v5342 = vpop.f32.mrb[0].mxu0
        %v5343 = vadd.f32 0.0, %v5342
        %v5344 = vpop.f32.mrb[0].mxu0
        %v5345 = vpop.f32.mrb[0].mxu0
        %v5346 = vadd.f32 0.0, %v5345
        %v5347 = vpop.f32.mrb[0].mxu0
        %5348 = vmatprep.mubr.bf16.mxu0 %v5046
        %5349 = vmatmul.mubr.bf16.gmra.mrb[0].mxu0 %v5045
        %v5350 = vpop.f32.mrb[0].mxu0
        %v5351 = vadd.f32 0.0, %v5350
        %v5352 = vpop.f32.mrb[0].mxu0
        %v5353 = vpop.f32.mrb[0].mxu0
        %v5354 = vadd.f32 0.0, %v5353
        %v5355 = vpop.f32.mrb[0].mxu0
        %5356 = vmatprep.mubr.bf16.mxu0 %v5049
        %5357 = vmatmul.mubr.bf16.gmra.mrb[0].mxu0 %v5048
        %v5358 = vpop.f32.mrb[0].mxu0
        %v5359 = vadd.f32 0.0, %v5358
        %v5360 = vpop.f32.mrb[0].mxu0
        %v5361 = vpop.f32.mrb[0].mxu0
        %v5362 = vadd.f32 0.0, %v5361
        %v5363 = vpop.f32.mrb[0].mxu0
        %5364 = vmatprep.mubr.bf16.mxu0 %v5052
        %5365 = vmatmul.mubr.bf16.gmra.mrb[0].mxu0 %v5051
        %v5366 = vpop.f32.mrb[0].mxu0
        %v5367 = vadd.f32 0.0, %v5366
        %v5368 = vpop.f32.mrb[0].mxu0
        %v5369 = vpop.f32.mrb[0].mxu0
        %v5370 = vadd.f32 0.0, %v5369
        %v5371 = vpop.f32.mrb[0].mxu0
        %5372 = vmatprep.mubr.bf16.mxu0 %v5055
        %5373 = vmatmul.mubr.bf16.gmra.mrb[0].mxu0 %v5054
        %v5374 = vpop.f32.mrb[0].mxu0
        %v5375 = vadd.f32 0.0, %v5374
        %v5376 = vpop.f32.mrb[0].mxu0
        %v5377 = vpop.f32.mrb[0].mxu0
        %v5378 = vadd.f32 0.0, %v5377
        %v5379 = vpop.f32.mrb[0].mxu0
        %5380 = vmatprep.mubr.bf16.mxu0 %v5058
        %5381 = vmatmul.mubr.bf16.gmra.mrb[0].mxu0 %v5057
        %v5382 = vpop.f32.mrb[0].mxu0
        %v5383 = vadd.f32 0.0, %v5382
        %v5384 = vpop.f32.mrb[0].mxu0
        %v5385 = vpop.f32.mrb[0].mxu0
        %v5386 = vadd.f32 0.0, %v5385
        %v5387 = vpop.f32.mrb[0].mxu0
        %5388 = vmatprep.mubr.bf16.mxu0 %v5061
        %5389 = vmatmul.mubr.bf16.gmra.mrb[0].mxu0 %v5060
        %v5390 = vpop.f32.mrb[0].mxu0
        %v5391 = vadd.f32 0.0, %v5390
        %v5392 = vpop.f32.mrb[0].mxu0
        %v5393 = vpop.f32.mrb[0].mxu0
        %v5394 = vadd.f32 0.0, %v5393
        %v5395 = vpop.f32.mrb[0].mxu0
        %5396 = vmatprep.mubr.bf16.mxu0 %v5064
        %5397 = vmatmul.mubr.bf16.gmra.mrb[0].mxu0 %v5063
        %v5398 = vpop.f32.mrb[0].mxu0
        %v5399 = vadd.f32 0.0, %v5398
        %v5400 = vpop.f32.mrb[0].mxu0
        %v5401 = vpop.f32.mrb[0].mxu0
        %v5402 = vadd.f32 0.0, %v5401
        %v5403 = vpop.f32.mrb[0].mxu0
        %5404 = vmatprep.mubr.bf16.mxu0 %v5067
        %5405 = vmatmul.mubr.bf16.gmra.mrb[0].mxu0 %v5066
        %v5406 = vpop.f32.mrb[0].mxu0
        %v5407 = vadd.f32 0.0, %v5406
        %v5408 = vpop.f32.mrb[0].mxu0
        %v5409 = vpop.f32.mrb[0].mxu0
        %v5410 = vadd.f32 0.0, %v5409
        %v5411 = vpop.f32.mrb[0].mxu0
        %5412 = vmatprep.mubr.bf16.mxu0 %v5070
        %5413 = vmatmul.mubr.bf16.gmra.mrb[0].mxu0 %v5069
        %v5414 = vpop.f32.mrb[0].mxu0
        %v5415 = vadd.f32 0.0, %v5414
        %v5416 = vpop.f32.mrb[0].mxu0
        %v5417 = vpop.f32.mrb[0].mxu0
        %v5418 = vadd.f32 0.0, %v5417
        %v5419 = vpop.f32.mrb[0].mxu0
        %5420 = vmatprep.mubr.bf16.mxu0 %v5073
        %5421 = vmatmul.mubr.bf16.gmra.mrb[0].mxu0 %v5072
        %v5422 = vpop.f32.mrb[0].mxu0
        %v5423 = vadd.f32 0.0, %v5422
        %v5424 = vpop.f32.mrb[0].mxu0
        %v5425 = vpop.f32.mrb[0].mxu0
        %v5426 = vadd.f32 0.0, %v5425
        %v5427 = vpop.f32.mrb[0].mxu0
        %5428 = vdwg.mxu0
        %5429 = vmatprep.subr.bf16.mxu0 0
        %5430 = vmatpush1.bf16.msra.mxu0 %v5236
        %5431 = vmatprep.subr.bf16.mxu0 0
        %5432 = vmatpush1.bf16.msra.mxu0 %v5237
        %5433 = vmatprep.subr.bf16.mxu0 0
        %5434 = vmatpush1.bf16.msra.mxu0 %v5238
        %5435 = vmatprep.subr.bf16.mxu0 0
        %5436 = vmatpush1.bf16.msra.mxu0 %v5239
        %5437 = vmatprep.subr.bf16.mxu0 0
        %5438 = vmatpush1.bf16.msra.mxu0 %v5240
        %5439 = vmatprep.subr.bf16.mxu0 0
        %5440 = vmatpush1.bf16.msra.mxu0 %v5241
        %5441 = vmatprep.subr.bf16.mxu0 0
        %5442 = vmatpush1.bf16.msra.mxu0 %v5242
        %5443 = vmatprep.subr.bf16.mxu0 0
        %5444 = vmatpush1.bf16.msra.mxu0 %v5243
        %5445 = vmatprep.subr.bf16.mxu0 0
        %5446 = vmatpush1.bf16.msra.mxu0 0
        %5447 = vmatprep.subr.bf16.mxu0 0
        %5448 = vmatpush1.bf16.msra.mxu0 0
        %5449 = vmatprep.subr.bf16.mxu0 0
        %5450 = vmatpush1.bf16.msra.mxu0 0
        %5451 = vmatprep.subr.bf16.mxu0 0
        %5452 = vmatpush1.bf16.msra.mxu0 0
        %5453 = vmatprep.subr.bf16.mxu0 0
        %5454 = vmatpush1.bf16.msra.mxu0 0
        %5455 = vmatprep.subr.bf16.mxu0 0
        %5456 = vmatpush1.bf16.msra.mxu0 0
        %5457 = vmatprep.subr.bf16.mxu0 0
        %5458 = vmatpush1.bf16.msra.mxu0 0
        %5459 = vmatprep.subr.bf16.mxu0 0
        %5460 = vmatpush1.bf16.msra.mxu0 0
        %5461 = vmatprep.mubr.bf16.mxu0 0
        %5462 = vmatmul.mubr.bf16.gmra.mrb[0].mxu0 %v5029
        %v5463 = vpop.f32.mrb[0].mxu0
        %v5464 = vadd.f32 %v5303, %v5463
        %v5465 = vpop.f32.mrb[0].mxu0
        %v5466 = vpop.f32.mrb[0].mxu0
        %v5467 = vadd.f32 %v5306, %v5466
        %v5468 = vpop.f32.mrb[0].mxu0
        %5469 = vmatprep.mubr.bf16.mxu0 0
        %5470 = vmatmul.mubr.bf16.gmra.mrb[0].mxu0 %v5032
        %v5471 = vpop.f32.mrb[0].mxu0
        %v5472 = vadd.f32 %v5311, %v5471
        %v5473 = vpop.f32.mrb[0].mxu0
        %v5474 = vpop.f32.mrb[0].mxu0
        %v5475 = vadd.f32 %v5314, %v5474
        %v5476 = vpop.f32.mrb[0].mxu0
        %5477 = vmatprep.mubr.bf16.mxu0 0
        %5478 = vmatmul.mubr.bf16.gmra.mrb[0].mxu0 %v5035
        %v5479 = vpop.f32.mrb[0].mxu0
        %v5480 = vadd.f32 %v5319, %v5479
        %v5481 = vpop.f32.mrb[0].mxu0
        %v5482 = vpop.f32.mrb[0].mxu0
        %v5483 = vadd.f32 %v5322, %v5482
        %v5484 = vpop.f32.mrb[0].mxu0
        %5485 = vmatprep.mubr.bf16.mxu0 0
        %5486 = vmatmul.mubr.bf16.gmra.mrb[0].mxu0 %v5038
        %v5487 = vpop.f32.mrb[0].mxu0
        %v5488 = vadd.f32 %v5327, %v5487
        %v5489 = vpop.f32.mrb[0].mxu0
        %v5490 = vpop.f32.mrb[0].mxu0
        %v5491 = vadd.f32 %v5330, %v5490
        %v5492 = vpop.f32.mrb[0].mxu0
        %5493 = vmatprep.mubr.bf16.mxu0 0
        %5494 = vmatmul.mubr.bf16.gmra.mrb[0].mxu0 %v5041
        %v5495 = vpop.f32.mrb[0].mxu0
        %v5496 = vadd.f32 %v5335, %v5495
        %v5497 = vpop.f32.mrb[0].mxu0
        %v5498 = vpop.f32.mrb[0].mxu0
        %v5499 = vadd.f32 %v5338, %v5498
        %v5500 = vpop.f32.mrb[0].mxu0
        %5501 = vmatprep.mubr.bf16.mxu0 0
        %5502 = vmatmul.mubr.bf16.gmra.mrb[0].mxu0 %v5044
        %v5503 = vpop.f32.mrb[0].mxu0
        %v5504 = vadd.f32 %v5343, %v5503
        %v5505 = vpop.f32.mrb[0].mxu0
        %v5506 = vpop.f32.mrb[0].mxu0
        %v5507 = vadd.f32 %v5346, %v5506
        %v5508 = vpop.f32.mrb[0].mxu0
        %5509 = vmatprep.mubr.bf16.mxu0 0
        %5510 = vmatmul.mubr.bf16.gmra.mrb[0].mxu0 %v5047
        %v5511 = vpop.f32.mrb[0].mxu0
        %v5512 = vadd.f32 %v5351, %v5511
        %v5513 = vpop.f32.mrb[0].mxu0
        %v5514 = vpop.f32.mrb[0].mxu0
        %v5515 = vadd.f32 %v5354, %v5514
        %v5516 = vpop.f32.mrb[0].mxu0
        %5517 = vmatprep.mubr.bf16.mxu0 0
        %5518 = vmatmul.mubr.bf16.gmra.mrb[0].mxu0 %v5050
        %v5519 = vpop.f32.mrb[0].mxu0
        %v5520 = vadd.f32 %v5359, %v5519
        %v5521 = vpop.f32.mrb[0].mxu0
        %v5522 = vpop.f32.mrb[0].mxu0
        %v5523 = vadd.f32 %v5362, %v5522
        %v5524 = vpop.f32.mrb[0].mxu0
        %5525 = vmatprep.mubr.bf16.mxu0 0
        %5526 = vmatmul.mubr.bf16.gmra.mrb[0].mxu0 %v5053
        %v5527 = vpop.f32.mrb[0].mxu0
        %v5528 = vadd.f32 %v5367, %v5527
        %v5529 = vpop.f32.mrb[0].mxu0
        %v5530 = vpop.f32.mrb[0].mxu0
        %v5531 = vadd.f32 %v5370, %v5530
        %v5532 = vpop.f32.mrb[0].mxu0
        %5533 = vmatprep.mubr.bf16.mxu0 0
        %5534 = vmatmul.mubr.bf16.gmra.mrb[0].mxu0 %v5056
        %v5535 = vpop.f32.mrb[0].mxu0
        %v5536 = vadd.f32 %v5375, %v5535
        %v5537 = vpop.f32.mrb[0].mxu0
        %v5538 = vpop.f32.mrb[0].mxu0
        %v5539 = vadd.f32 %v5378, %v5538
        %v5540 = vpop.f32.mrb[0].mxu0
        %5541 = vmatprep.mubr.bf16.mxu0 0
        %5542 = vmatmul.mubr.bf16.gmra.mrb[0].mxu0 %v5059
        %v5543 = vpop.f32.mrb[0].mxu0
        %v5544 = vadd.f32 %v5383, %v5543
        %v5545 = vpop.f32.mrb[0].mxu0
        %v5546 = vpop.f32.mrb[0].mxu0
        %v5547 = vadd.f32 %v5386, %v5546
        %v5548 = vpop.f32.mrb[0].mxu0
        %5549 = vmatprep.mubr.bf16.mxu0 0
        %5550 = vmatmul.mubr.bf16.gmra.mrb[0].mxu0 %v5062
        %v5551 = vpop.f32.mrb[0].mxu0
        %v5552 = vadd.f32 %v5391, %v5551
        %v5553 = vpop.f32.mrb[0].mxu0
        %v5554 = vpop.f32.mrb[0].mxu0
        %v5555 = vadd.f32 %v5394, %v5554
        %v5556 = vpop.f32.mrb[0].mxu0
        %5557 = vmatprep.mubr.bf16.mxu0 0
        %5558 = vmatmul.mubr.bf16.gmra.mrb[0].mxu0 %v5065
        %v5559 = vpop.f32.mrb[0].mxu0
        %v5560 = vadd.f32 %v5399, %v5559
        %v5561 = vpop.f32.mrb[0].mxu0
        %v5562 = vpop.f32.mrb[0].mxu0
        %v5563 = vadd.f32 %v5402, %v5562
        %v5564 = vpop.f32.mrb[0].mxu0
        %5565 = vmatprep.mubr.bf16.mxu0 0
        %5566 = vmatmul.mubr.bf16.gmra.mrb[0].mxu0 %v5068
        %v5567 = vpop.f32.mrb[0].mxu0
        %v5568 = vadd.f32 %v5407, %v5567
        %v5569 = vpop.f32.mrb[0].mxu0
        %v5570 = vpop.f32.mrb[0].mxu0
        %v5571 = vadd.f32 %v5410, %v5570
        %v5572 = vpop.f32.mrb[0].mxu0
        %5573 = vmatprep.mubr.bf16.mxu0 0
        %5574 = vmatmul.mubr.bf16.gmra.mrb[0].mxu0 %v5071
        %v5575 = vpop.f32.mrb[0].mxu0
        %v5576 = vadd.f32 %v5415, %v5575
        %v5577 = vpop.f32.mrb[0].mxu0
        %v5578 = vpop.f32.mrb[0].mxu0
        %v5579 = vadd.f32 %v5418, %v5578
        %v5580 = vpop.f32.mrb[0].mxu0
        %5581 = vmatprep.mubr.bf16.mxu0 0
        %5582 = vmatmul.mubr.bf16.gmra.mrb[0].mxu0 %v5074
        %v5583 = vpop.f32.mrb[0].mxu0
        %v5584 = vadd.f32 %v5423, %v5583
        %v5585 = vpop.f32.mrb[0].mxu0
        %v5586 = vpop.f32.mrb[0].mxu0
        %v5587 = vadd.f32 %v5426, %v5586
        %v5588 = vpop.f32.mrb[0].mxu0
        %5589 = vdwg.mxu0
        %v5590 = vadd.f32 %v4995, %v5464
        %v5591 = vadd.f32 %v4996, %v5467
        %v5592 = vadd.f32 %v4997, %v5472
        %v5593 = vadd.f32 %v4998, %v5475
        %v5594 = vadd.f32 %v4999, %v5480
        %v5595 = vadd.f32 %v5000, %v5483
        %v5596 = vadd.f32 %v5001, %v5488
        %v5597 = vadd.f32 %v5002, %v5491
        %v5598 = vadd.f32 %v5003, %v5496
        %v5599 = vadd.f32 %v5004, %v5499
        %v5600 = vadd.f32 %v5005, %v5504
        %v5601 = vadd.f32 %v5006, %v5507
        %v5602 = vadd.f32 %v5007, %v5512
        %v5603 = vadd.f32 %v5008, %v5515
        %v5604 = vadd.f32 %v5009, %v5520
        %v5605 = vadd.f32 %v5010, %v5523
        %v5606 = vadd.f32 %v5011, %v5528
        %v5607 = vadd.f32 %v5012, %v5531
        %v5608 = vadd.f32 %v5013, %v5536
        %v5609 = vadd.f32 %v5014, %v5539
        %v5610 = vadd.f32 %v5015, %v5544
        %v5611 = vadd.f32 %v5016, %v5547
        %v5612 = vadd.f32 %v5017, %v5552
        %v5613 = vadd.f32 %v5018, %v5555
        %v5614 = vadd.f32 %v5019, %v5560
        %v5615 = vadd.f32 %v5020, %v5563
        %v5616 = vadd.f32 %v5021, %v5568
        %v5617 = vadd.f32 %v5022, %v5571
        %v5618 = vadd.f32 %v5023, %v5576
        %v5619 = vadd.f32 %v5024, %v5579
        %v5620 = vadd.f32 %v5025, %v5584
        %v5621 = vadd.f32 %v5026, %v5587
        %5622 = vst [vmem:[#allocation2] sm:$0xff] %v5590
        %5623 = vst [vmem:[#allocation2 + $0x8] sm:$0xff] %v5591
        %5624 = vst [vmem:[#allocation2 + $0x10] sm:$0xff] %v5592
        %5625 = vst [vmem:[#allocation2 + $0x18] sm:$0xff] %v5593
        %5626 = vst [vmem:[#allocation2 + $0x20] sm:$0xff] %v5594
        %5627 = vst [vmem:[#allocation2 + $0x28] sm:$0xff] %v5595
        %5628 = vst [vmem:[#allocation2 + $0x30] sm:$0xff] %v5596
        %5629 = vst [vmem:[#allocation2 + $0x38] sm:$0xff] %v5597
        %5630 = vst [vmem:[#allocation2 + $0x40] sm:$0xff] %v5598
        %5631 = vst [vmem:[#allocation2 + $0x48] sm:$0xff] %v5599
        %5632 = vst [vmem:[#allocation2 + $0x50] sm:$0xff] %v5600
        %5633 = vst [vmem:[#allocation2 + $0x58] sm:$0xff] %v5601
        %5634 = vst [vmem:[#allocation2 + $0x60] sm:$0xff] %v5602
        %5635 = vst [vmem:[#allocation2 + $0x68] sm:$0xff] %v5603
        %5636 = vst [vmem:[#allocation2 + $0x70] sm:$0xff] %v5604
        %5637 = vst [vmem:[#allocation2 + $0x78] sm:$0xff] %v5605
        %5638 = vst [vmem:[#allocation2 + $0x80] sm:$0xff] %v5606
        %5639 = vst [vmem:[#allocation2 + $0x88] sm:$0xff] %v5607
        %5640 = vst [vmem:[#allocation2 + $0x90] sm:$0xff] %v5608
        %5641 = vst [vmem:[#allocation2 + $0x98] sm:$0xff] %v5609
        %5642 = vst [vmem:[#allocation2 + $0xa0] sm:$0xff] %v5610
        %5643 = vst [vmem:[#allocation2 + $0xa8] sm:$0xff] %v5611
        %5644 = vst [vmem:[#allocation2 + $0xb0] sm:$0xff] %v5612
        %5645 = vst [vmem:[#allocation2 + $0xb8] sm:$0xff] %v5613
        %5646 = vst [vmem:[#allocation2 + $0xc0] sm:$0xff] %v5614
        %5647 = vst [vmem:[#allocation2 + $0xc8] sm:$0xff] %v5615
        %5648 = vst [vmem:[#allocation2 + $0xd0] sm:$0xff] %v5616
        %5649 = vst [vmem:[#allocation2 + $0xd8] sm:$0xff] %v5617
        %5650 = vst [vmem:[#allocation2 + $0xe0] sm:$0xff] %v5618
        %5651 = vst [vmem:[#allocation2 + $0xe8] sm:$0xff] %v5619
        %5652 = vst [vmem:[#allocation2 + $0xf0] sm:$0xff] %v5620
        %5653 = vst [vmem:[#allocation2 + $0xf8] sm:$0xff] %v5621
        %v5654 = vld [vmem:[#allocation2] sm:$0xff]
        %v5655 = vld [vmem:[#allocation2 + $0x8] sm:$0xff]
        %v5656 = vld [vmem:[#allocation2 + $0x10] sm:$0xff]
        %v5657 = vld [vmem:[#allocation2 + $0x18] sm:$0xff]
        %v5658 = vld [vmem:[#allocation2 + $0x20] sm:$0xff]
        %v5659 = vld [vmem:[#allocation2 + $0x28] sm:$0xff]
        %v5660 = vld [vmem:[#allocation2 + $0x30] sm:$0xff]
        %v5661 = vld [vmem:[#allocation2 + $0x38] sm:$0xff]
        %v5662 = vld [vmem:[#allocation2 + $0x40] sm:$0xff]
        %v5663 = vld [vmem:[#allocation2 + $0x48] sm:$0xff]
        %v5664 = vld [vmem:[#allocation2 + $0x50] sm:$0xff]
        %v5665 = vld [vmem:[#allocation2 + $0x58] sm:$0xff]
        %v5666 = vld [vmem:[#allocation2 + $0x60] sm:$0xff]
        %v5667 = vld [vmem:[#allocation2 + $0x68] sm:$0xff]
        %v5668 = vld [vmem:[#allocation2 + $0x70] sm:$0xff]
        %v5669 = vld [vmem:[#allocation2 + $0x78] sm:$0xff]
        %v5670 = vld [vmem:[#allocation2 + $0x80] sm:$0xff]
        %v5671 = vld [vmem:[#allocation2 + $0x88] sm:$0xff]
        %v5672 = vld [vmem:[#allocation2 + $0x90] sm:$0xff]
        %v5673 = vld [vmem:[#allocation2 + $0x98] sm:$0xff]
        %v5674 = vld [vmem:[#allocation2 + $0xa0] sm:$0xff]
        %v5675 = vld [vmem:[#allocation2 + $0xa8] sm:$0xff]
        %v5676 = vld [vmem:[#allocation2 + $0xb0] sm:$0xff]
        %v5677 = vld [vmem:[#allocation2 + $0xb8] sm:$0xff]
        %v5678 = vld [vmem:[#allocation2 + $0xc0] sm:$0xff]
        %v5679 = vld [vmem:[#allocation2 + $0xc8] sm:$0xff]
        %v5680 = vld [vmem:[#allocation2 + $0xd0] sm:$0xff]
        %v5681 = vld [vmem:[#allocation2 + $0xd8] sm:$0xff]
        %v5682 = vld [vmem:[#allocation2 + $0xe0] sm:$0xff]
        %v5683 = vld [vmem:[#allocation2 + $0xe8] sm:$0xff]
        %v5684 = vld [vmem:[#allocation2 + $0xf0] sm:$0xff]
        %v5685 = vld [vmem:[#allocation2 + $0xf8] sm:$0xff]
        %v5686 = vld [vmem:[%s4] sm:$0x1]
        %v5688 = vlaneseq
        %v5689 = vshrl.u32 %v5688, 7
        %v5690 = vsub.s32 0, %v5689
        %v5691 = vrot.slane %v5686, %v5690
        %v5693 = vadd.f32 %v5654, %v5691
        %v5694 = vadd.f32 %v5655, %v5691
        %v5695 = vadd.f32 %v5656, %v5691
        %v5696 = vadd.f32 %v5657, %v5691
        %v5697 = vadd.f32 %v5658, %v5691
        %v5698 = vadd.f32 %v5659, %v5691
        %v5699 = vadd.f32 %v5660, %v5691
        %v5700 = vadd.f32 %v5661, %v5691
        %v5701 = vadd.f32 %v5662, %v5691
        %v5702 = vadd.f32 %v5663, %v5691
        %v5703 = vadd.f32 %v5664, %v5691
        %v5704 = vadd.f32 %v5665, %v5691
        %v5705 = vadd.f32 %v5666, %v5691
        %v5706 = vadd.f32 %v5667, %v5691
        %v5707 = vadd.f32 %v5668, %v5691
        %v5708 = vadd.f32 %v5669, %v5691
        %v5709 = vadd.f32 %v5670, %v5691
        %v5710 = vadd.f32 %v5671, %v5691
        %v5711 = vadd.f32 %v5672, %v5691
        %v5712 = vadd.f32 %v5673, %v5691
        %v5713 = vadd.f32 %v5674, %v5691
        %v5714 = vadd.f32 %v5675, %v5691
        %v5715 = vadd.f32 %v5676, %v5691
        %v5716 = vadd.f32 %v5677, %v5691
        %v5717 = vadd.f32 %v5678, %v5691
        %v5718 = vadd.f32 %v5679, %v5691
        %v5719 = vadd.f32 %v5680, %v5691
        %v5720 = vadd.f32 %v5681, %v5691
        %v5721 = vadd.f32 %v5682, %v5691
        %v5722 = vadd.f32 %v5683, %v5691
        %v5723 = vadd.f32 %v5684, %v5691
        %v5724 = vadd.f32 %v5685, %v5691
        %v5725 = vmul.f32 %v5693, 0.2
        %v5726 = vmul.f32 %v5694, 0.2
        %v5727 = vmul.f32 %v5695, 0.2
        %v5728 = vmul.f32 %v5696, 0.2
        %v5729 = vmul.f32 %v5697, 0.2
        %v5730 = vmul.f32 %v5698, 0.2
        %v5731 = vmul.f32 %v5699, 0.2
        %v5732 = vmul.f32 %v5700, 0.2
        %v5733 = vmul.f32 %v5701, 0.2
        %v5734 = vmul.f32 %v5702, 0.2
        %v5735 = vmul.f32 %v5703, 0.2
        %v5736 = vmul.f32 %v5704, 0.2
        %v5737 = vmul.f32 %v5705, 0.2
        %v5738 = vmul.f32 %v5706, 0.2
        %v5739 = vmul.f32 %v5707, 0.2
        %v5740 = vmul.f32 %v5708, 0.2
        %v5741 = vmul.f32 %v5709, 0.2
        %v5742 = vmul.f32 %v5710, 0.2
        %v5743 = vmul.f32 %v5711, 0.2
        %v5744 = vmul.f32 %v5712, 0.2
        %v5745 = vmul.f32 %v5713, 0.2
        %v5746 = vmul.f32 %v5714, 0.2
        %v5747 = vmul.f32 %v5715, 0.2
        %v5748 = vmul.f32 %v5716, 0.2
        %v5749 = vmul.f32 %v5717, 0.2
        %v5750 = vmul.f32 %v5718, 0.2
        %v5751 = vmul.f32 %v5719, 0.2
        %v5752 = vmul.f32 %v5720, 0.2
        %v5753 = vmul.f32 %v5721, 0.2
        %v5754 = vmul.f32 %v5722, 0.2
        %v5755 = vmul.f32 %v5723, 0.2
        %v5756 = vmul.f32 %v5724, 0.2
        %v5757 = vmax.f32 %v5693, %v5725
        %v5758 = vmax.f32 %v5694, %v5726
        %v5759 = vmax.f32 %v5695, %v5727
        %v5760 = vmax.f32 %v5696, %v5728
        %v5761 = vmax.f32 %v5697, %v5729
        %v5762 = vmax.f32 %v5698, %v5730
        %v5763 = vmax.f32 %v5699, %v5731
        %v5764 = vmax.f32 %v5700, %v5732
        %v5765 = vmax.f32 %v5701, %v5733
        %v5766 = vmax.f32 %v5702, %v5734
        %v5767 = vmax.f32 %v5703, %v5735
        %v5768 = vmax.f32 %v5704, %v5736
        %v5769 = vmax.f32 %v5705, %v5737
        %v5770 = vmax.f32 %v5706, %v5738
        %v5771 = vmax.f32 %v5707, %v5739
        %v5772 = vmax.f32 %v5708, %v5740
        %v5773 = vmax.f32 %v5709, %v5741
        %v5774 = vmax.f32 %v5710, %v5742
        %v5775 = vmax.f32 %v5711, %v5743
        %v5776 = vmax.f32 %v5712, %v5744
        %v5777 = vmax.f32 %v5713, %v5745
        %v5778 = vmax.f32 %v5714, %v5746
        %v5779 = vmax.f32 %v5715, %v5747
        %v5780 = vmax.f32 %v5716, %v5748
        %v5781 = vmax.f32 %v5717, %v5749
        %v5782 = vmax.f32 %v5718, %v5750
        %v5783 = vmax.f32 %v5719, %v5751
        %v5784 = vmax.f32 %v5720, %v5752
        %v5785 = vmax.f32 %v5721, %v5753
        %v5786 = vmax.f32 %v5722, %v5754
        %v5787 = vmax.f32 %v5723, %v5755
        %v5788 = vmax.f32 %v5724, %v5756
        %v5789 = vadd.f32 %v5757, %v5758
        %v5790 = vadd.f32 %v5789, %v5759
        %v5791 = vadd.f32 %v5790, %v5760
        %v5792 = vadd.f32 %v5791, %v5761
        %v5793 = vadd.f32 %v5792, %v5762
        %v5794 = vadd.f32 %v5793, %v5763
        %v5795 = vadd.f32 %v5794, %v5764
        %v5796 = vadd.f32 %v5795, %v5765
        %v5797 = vadd.f32 %v5796, %v5766
        %v5798 = vadd.f32 %v5797, %v5767
        %v5799 = vadd.f32 %v5798, %v5768
        %v5800 = vadd.f32 %v5799, %v5769
        %v5801 = vadd.f32 %v5800, %v5770
        %v5802 = vadd.f32 %v5801, %v5771
        %v5803 = vadd.f32 %v5802, %v5772
        %v5804 = vadd.f32 %v5803, %v5773
        %v5805 = vadd.f32 %v5804, %v5774
        %v5806 = vadd.f32 %v5805, %v5775
        %v5807 = vadd.f32 %v5806, %v5776
        %v5808 = vadd.f32 %v5807, %v5777
        %v5809 = vadd.f32 %v5808, %v5778
        %v5810 = vadd.f32 %v5809, %v5779
        %v5811 = vadd.f32 %v5810, %v5780
        %v5812 = vadd.f32 %v5811, %v5781
        %v5813 = vadd.f32 %v5812, %v5782
        %v5814 = vadd.f32 %v5813, %v5783
        %v5815 = vadd.f32 %v5814, %v5784
        %v5816 = vadd.f32 %v5815, %v5785
        %v5817 = vadd.f32 %v5816, %v5786
        %v5818 = vadd.f32 %v5817, %v5787
        %v5819 = vadd.f32 %v5818, %v5788
        %v5820 = vrot.slane %v5819, 4
        %v5821 = vadd.f32 %v5819, %v5820
        %v5822 = vrot.slane %v5821, 2
        %v5823 = vadd.f32 %v5821, %v5822
        %v5824 = vrot.slane %v5823, 1
        %v5825 = vadd.f32 %v5823, %v5824
        %v5826 = vmul.f32 %v5825, 0.00390625
        %v5827 = vld [vmem:[%s6] sm:$0xff]
        %v5828 = vld [vmem:[%s6 + $0x8] sm:$0xff]
        %v5829 = vld [vmem:[%s6 + $0x10] sm:$0xff]
        %v5830 = vld [vmem:[%s6 + $0x18] sm:$0xff]
        %v5831 = vld [vmem:[%s6 + $0x20] sm:$0xff]
        %v5832 = vld [vmem:[%s6 + $0x28] sm:$0xff]
        %v5833 = vld [vmem:[%s6 + $0x30] sm:$0xff]
        %v5834 = vld [vmem:[%s6 + $0x38] sm:$0xff]
        %v5835 = vld [vmem:[%s6 + $0x40] sm:$0xff]
        %v5836 = vld [vmem:[%s6 + $0x48] sm:$0xff]
        %v5837 = vld [vmem:[%s6 + $0x50] sm:$0xff]
        %v5838 = vld [vmem:[%s6 + $0x58] sm:$0xff]
        %v5839 = vld [vmem:[%s6 + $0x60] sm:$0xff]
        %v5840 = vld [vmem:[%s6 + $0x68] sm:$0xff]
        %v5841 = vld [vmem:[%s6 + $0x70] sm:$0xff]
        %v5842 = vld [vmem:[%s6 + $0x78] sm:$0xff]
        %v5843 = vld [vmem:[%s7] sm:$0x1]
        %5844 = vmatprep.subr.mxu0 0.0
        %5845 = vmatpush1.msra.mxu0 %v5827
        %5846 = vmatprep.subr.mxu0 0.0
        %5847 = vmatpush1.msra.mxu0 %v5828
        %5848 = vmatprep.subr.mxu0 0.0
        %5849 = vmatpush1.msra.mxu0 %v5829
        %5850 = vmatprep.subr.mxu0 0.0
        %5851 = vmatpush1.msra.mxu0 %v5830
        %5852 = vmatprep.subr.mxu0 0.0
        %5853 = vmatpush1.msra.mxu0 %v5831
        %5854 = vmatprep.subr.mxu0 0.0
        %5855 = vmatpush1.msra.mxu0 %v5832
        %5856 = vmatprep.subr.mxu0 0.0
        %5857 = vmatpush1.msra.mxu0 %v5833
        %5858 = vmatprep.subr.mxu0 0.0
        %5859 = vmatpush1.msra.mxu0 %v5834
        %5860 = vmatprep.subr.mxu0 0.0
        %5861 = vmatpush1.msra.mxu0 %v5835
        %5862 = vmatprep.subr.mxu0 0.0
        %5863 = vmatpush1.msra.mxu0 %v5836
        %5864 = vmatprep.subr.mxu0 0.0
        %5865 = vmatpush1.msra.mxu0 %v5837
        %5866 = vmatprep.subr.mxu0 0.0
        %5867 = vmatpush1.msra.mxu0 %v5838
        %5868 = vmatprep.subr.mxu0 0.0
        %5869 = vmatpush1.msra.mxu0 %v5839
        %5870 = vmatprep.subr.mxu0 0.0
        %5871 = vmatpush1.msra.mxu0 %v5840
        %5872 = vmatprep.subr.mxu0 0.0
        %5873 = vmatpush1.msra.mxu0 %v5841
        %5874 = vmatprep.subr.mxu0 0.0
        %5875 = vmatpush1.msra.mxu0 %v5842
        %5876 = vmatprep.subr.mxu0 0.0
        %5877 = vmatpush1.msra.mxu0 0.0
        %5878 = vmatprep.subr.mxu0 0.0
        %5879 = vmatpush1.msra.mxu0 0.0
        %5880 = vmatprep.subr.mxu0 0.0
        %5881 = vmatpush1.msra.mxu0 0.0
        %5882 = vmatprep.subr.mxu0 0.0
        %5883 = vmatpush1.msra.mxu0 0.0
        %5884 = vmatprep.subr.mxu0 0.0
        %5885 = vmatpush1.msra.mxu0 0.0
        %5886 = vmatprep.subr.mxu0 0.0
        %5887 = vmatpush1.msra.mxu0 0.0
        %5888 = vmatprep.subr.mxu0 0.0
        %5889 = vmatpush1.msra.mxu0 0.0
        %5890 = vmatprep.subr.mxu0 0.0
        %5891 = vmatpush1.msra.mxu0 0.0
        %5892 = vmatprep.subr.mxu0 0.0
        %5893 = vmatpush1.msra.mxu0 0.0
        %5894 = vmatprep.subr.mxu0 0.0
        %5895 = vmatpush1.msra.mxu0 0.0
        %5896 = vmatprep.subr.mxu0 0.0
        %5897 = vmatpush1.msra.mxu0 0.0
        %5898 = vmatprep.subr.mxu0 0.0
        %5899 = vmatpush1.msra.mxu0 0.0
        %5900 = vmatprep.subr.mxu0 0.0
        %5901 = vmatpush1.msra.mxu0 0.0
        %5902 = vmatprep.subr.mxu0 0.0
        %5903 = vmatpush1.msra.mxu0 0.0
        %5904 = vmatprep.subr.mxu0 0.0
        %5905 = vmatpush1.msra.mxu0 0.0
        %5906 = vmatprep.subr.mxu0 0.0
        %5907 = vmatpush1.msra.mxu0 0.0
        %5908 = vmatprep.mubr.f32.mxu0 0.0
        %5909 = vmatmul.mubr.f32.gmra.mrb[0].mxu0 %v5826
        %v5910 = vpop.f32.mrb[0].mxu0
        %v5911 = vadd.f32 %v5843, %v5910
        %v5912 = vpop.f32.mrb[0].mxu0
        %5913 = vdwg.mxu0
        %v5914 = vmax.f32 %v5911, 0.0
        %v5915 = vld [vmem:[%s8] sm:$0xff]
        %v5916 = vld [vmem:[%s9] sm:$0x1]
        %vm5917 = vcmask 64512
        %v5919 = vsel %vm5917, %v5914, 0
        %5921 = vmatprep.subr.mxu0 0.0
        %5922 = vmatpush1.msra.mxu0 %v5915
        %5923 = vmatprep.subr.mxu0 0.0
        %5924 = vmatpush1.msra.mxu0 0.0
        %5925 = vmatprep.subr.mxu0 0.0
        %5926 = vmatpush1.msra.mxu0 0.0
        %5927 = vmatprep.subr.mxu0 0.0
        %5928 = vmatpush1.msra.mxu0 0.0
        %5929 = vmatprep.subr.mxu0 0.0
        %5930 = vmatpush1.msra.mxu0 0.0
        %5931 = vmatprep.subr.mxu0 0.0
        %5932 = vmatpush1.msra.mxu0 0.0
        %5933 = vmatprep.subr.mxu0 0.0
        %5934 = vmatpush1.msra.mxu0 0.0
        %5935 = vmatprep.subr.mxu0 0.0
        %5936 = vmatpush1.msra.mxu0 0.0
        %5937 = vmatprep.subr.mxu0 0.0
        %5938 = vmatpush1.msra.mxu0 0.0
        %5939 = vmatprep.subr.mxu0 0.0
        %5940 = vmatpush1.msra.mxu0 0.0
        %5941 = vmatprep.subr.mxu0 0.0
        %5942 = vmatpush1.msra.mxu0 0.0
        %5943 = vmatprep.subr.mxu0 0.0
        %5944 = vmatpush1.msra.mxu0 0.0
        %5945 = vmatprep.subr.mxu0 0.0
        %5946 = vmatpush1.msra.mxu0 0.0
        %5947 = vmatprep.subr.mxu0 0.0
        %5948 = vmatpush1.msra.mxu0 0.0
        %5949 = vmatprep.subr.mxu0 0.0
        %5950 = vmatpush1.msra.mxu0 0.0
        %5951 = vmatprep.subr.mxu0 0.0
        %5952 = vmatpush1.msra.mxu0 0.0
        %5953 = vmatprep.subr.mxu0 0.0
        %5954 = vmatpush1.msra.mxu0 0.0
        %5955 = vmatprep.subr.mxu0 0.0
        %5956 = vmatpush1.msra.mxu0 0.0
        %5957 = vmatprep.subr.mxu0 0.0
        %5958 = vmatpush1.msra.mxu0 0.0
        %5959 = vmatprep.subr.mxu0 0.0
        %5960 = vmatpush1.msra.mxu0 0.0
        %5961 = vmatprep.subr.mxu0 0.0
        %5962 = vmatpush1.msra.mxu0 0.0
        %5963 = vmatprep.subr.mxu0 0.0
        %5964 = vmatpush1.msra.mxu0 0.0
        %5965 = vmatprep.subr.mxu0 0.0
        %5966 = vmatpush1.msra.mxu0 0.0
        %5967 = vmatprep.subr.mxu0 0.0
        %5968 = vmatpush1.msra.mxu0 0.0
        %5969 = vmatprep.subr.mxu0 0.0
        %5970 = vmatpush1.msra.mxu0 0.0
        %5971 = vmatprep.subr.mxu0 0.0
        %5972 = vmatpush1.msra.mxu0 0.0
        %5973 = vmatprep.subr.mxu0 0.0
        %5974 = vmatpush1.msra.mxu0 0.0
        %5975 = vmatprep.subr.mxu0 0.0
        %5976 = vmatpush1.msra.mxu0 0.0
        %5977 = vmatprep.subr.mxu0 0.0
        %5978 = vmatpush1.msra.mxu0 0.0
        %5979 = vmatprep.subr.mxu0 0.0
        %5980 = vmatpush1.msra.mxu0 0.0
        %5981 = vmatprep.subr.mxu0 0.0
        %5982 = vmatpush1.msra.mxu0 0.0
        %5983 = vmatprep.subr.mxu0 0.0
        %5984 = vmatpush1.msra.mxu0 0.0
        %5985 = vmatprep.mubr.f32.mxu0 0.0
        %5986 = vmatmul.mubr.f32.gmra.mrb[0].mxu0 %v5919
        %v5987 = vpop.f32.mrb[0].mxu0
        %v5988 = vadd.f32 %v5916, %v5987
        %v5989 = vpop.f32.mrb[0].mxu0
        %5990 = vdwg.mxu0
        %v5991 = vsub.f32 0.0, %v5988
        %v5992 = vmul.f32 %v5991, 1.442695
        %v5993 = vpow.pop %v5992
        %v5994 = vadd.f32 %v5993, 1.0
        %v5995 = vrcp.pop %v5994
        %v5996 = vmul.f32 1.0, %v5995
        %v5997 = vlaneseq
        %v5998 = vshrl.u32 %v5997, 7
        %v5999 = vsub.s32 0, %v5998
        %v6000 = vrot.slane %v5996, %v5999
        %v6001 = vmul.f32 %v5757, %v6000
        %v6002 = vmul.f32 %v5758, %v6000
        %v6003 = vmul.f32 %v5759, %v6000
        %v6004 = vmul.f32 %v5760, %v6000
        %v6005 = vmul.f32 %v5761, %v6000
        %v6006 = vmul.f32 %v5762, %v6000
        %v6007 = vmul.f32 %v5763, %v6000
        %v6008 = vmul.f32 %v5764, %v6000
        %v6009 = vmul.f32 %v5765, %v6000
        %v6010 = vmul.f32 %v5766, %v6000
        %v6011 = vmul.f32 %v5767, %v6000
        %v6012 = vmul.f32 %v5768, %v6000
        %v6013 = vmul.f32 %v5769, %v6000
        %v6014 = vmul.f32 %v5770, %v6000
        %v6015 = vmul.f32 %v5771, %v6000
        %v6016 = vmul.f32 %v5772, %v6000
        %v6017 = vmul.f32 %v5773, %v6000
        %v6018 = vmul.f32 %v5774, %v6000
        %v6019 = vmul.f32 %v5775, %v6000
        %v6020 = vmul.f32 %v5776, %v6000
        %v6021 = vmul.f32 %v5777, %v6000
        %v6022 = vmul.f32 %v5778, %v6000
        %v6023 = vmul.f32 %v5779, %v6000
        %v6024 = vmul.f32 %v5780, %v6000
        %v6025 = vmul.f32 %v5781, %v6000
        %v6026 = vmul.f32 %v5782, %v6000
        %v6027 = vmul.f32 %v5783, %v6000
        %v6028 = vmul.f32 %v5784, %v6000
        %v6029 = vmul.f32 %v5785, %v6000
        %v6030 = vmul.f32 %v5786, %v6000
        %v6031 = vmul.f32 %v5787, %v6000
        %v6032 = vmul.f32 %v5788, %v6000
        %6033 = vst [vmem:[%s352] sm:$0xff] %v6001
        %6034 = vst [vmem:[%s352 + $0x8] sm:$0xff] %v6002
        %6035 = vst [vmem:[%s352 + $0x10] sm:$0xff] %v6003
        %6036 = vst [vmem:[%s352 + $0x18] sm:$0xff] %v6004
        %6037 = vst [vmem:[%s352 + $0x20] sm:$0xff] %v6005
        %6038 = vst [vmem:[%s352 + $0x28] sm:$0xff] %v6006
        %6039 = vst [vmem:[%s352 + $0x30] sm:$0xff] %v6007
        %6040 = vst [vmem:[%s352 + $0x38] sm:$0xff] %v6008
        %6041 = vst [vmem:[%s352 + $0x40] sm:$0xff] %v6009
        %6042 = vst [vmem:[%s352 + $0x48] sm:$0xff] %v6010
        %6043 = vst [vmem:[%s352 + $0x50] sm:$0xff] %v6011
        %6044 = vst [vmem:[%s352 + $0x58] sm:$0xff] %v6012
        %6045 = vst [vmem:[%s352 + $0x60] sm:$0xff] %v6013
        %6046 = vst [vmem:[%s352 + $0x68] sm:$0xff] %v6014
        %6047 = vst [vmem:[%s352 + $0x70] sm:$0xff] %v6015
        %6048 = vst [vmem:[%s352 + $0x78] sm:$0xff] %v6016
        %6049 = vst [vmem:[%s352 + $0x80] sm:$0xff] %v6017
        %6050 = vst [vmem:[%s352 + $0x88] sm:$0xff] %v6018
        %6051 = vst [vmem:[%s352 + $0x90] sm:$0xff] %v6019
        %6052 = vst [vmem:[%s352 + $0x98] sm:$0xff] %v6020
        %6053 = vst [vmem:[%s352 + $0xa0] sm:$0xff] %v6021
        %6054 = vst [vmem:[%s352 + $0xa8] sm:$0xff] %v6022
        %6055 = vst [vmem:[%s352 + $0xb0] sm:$0xff] %v6023
        %6056 = vst [vmem:[%s352 + $0xb8] sm:$0xff] %v6024
        %6057 = vst [vmem:[%s352 + $0xc0] sm:$0xff] %v6025
        %6058 = vst [vmem:[%s352 + $0xc8] sm:$0xff] %v6026
        %6059 = vst [vmem:[%s352 + $0xd0] sm:$0xff] %v6027
        %6060 = vst [vmem:[%s352 + $0xd8] sm:$0xff] %v6028
        %6061 = vst [vmem:[%s352 + $0xe0] sm:$0xff] %v6029
        %6062 = vst [vmem:[%s352 + $0xe8] sm:$0xff] %v6030
        %6063 = vst [vmem:[%s352 + $0xf0] sm:$0xff] %v6031
        %6064 = vst [vmem:[%s352 + $0xf8] sm:$0xff] %v6032
        %s6065 = sand.u32 %s247, 1
        %s6066 = scalar_lea.sflag [#allocation5], %s6065
        %s6067 = sand.u32 %s247, 1
        %s6068 = smul.addr %s6067, 256
        %s6069 = scalar_lea.vmem [#allocation4], %s6068
        // Predicated region
        $region61: #{residual_block_forward.1} parent=59 // pred_check
          %p6070 = pneg %p257
        $region62: #{residual_block_forward.1} parent=59 // pred_check_branch
          %6072 = sbr.rel (%p6070) target = $region64
        $region63: #{residual_block_forward.1} parent=59 // pred_region
          %s6074 = ssub.s32 4096, 4096
          %6075 = vsyncadd %s6066, %s6074
          %s6076 = smul.addr %s24, 32
          %s6077 = smul.addr %s6076, 128
          %s6078 = scalar_lea.hbm %s10, %s6077
          %s6079 = sshll.u32 %s6069, 4
          %s6080 = int_to_ptr.vmem [resolvable:$true] %s6079
          %6085 = dma.vmem_to_hbm [thread:$0]  %s6080, 4096, %s6078, %s6066, 128, 128, 8
        $region64: #{residual_block_forward.1} parent=59 // pred_fallthru
          _
      $region60: #{residual_block_forward.1} parent=5 // pred_fallthru
        _
      %p6086 = scmp.le.s32.totalorder 2, %s19
      // Predicated region
      $region65: #{residual_block_forward.1} parent=5 // pred_check
        %p6087 = pneg %p6086
      $region66: #{residual_block_forward.1} parent=5 // pred_check_branch
        %6089 = sbr.rel (%p6087) target = $region68
      $region67: #{residual_block_forward.1} parent=5 // pred_region
        %s6090 = ssub.s32 %s19, 2
        // Predicated region
        $region69: #{residual_block_forward.1} parent=67 // pred_check
          %p6091 = pneg %p263
        $region70: #{residual_block_forward.1} parent=67 // pred_check_branch
          %6093 = sbr.rel (%p6091) target = $region72
        $region71: #{residual_block_forward.1} parent=67 // pred_region
          %s6094 = sand.u32 %s248, 1
          %s6095 = scalar_lea.sflag [#allocation5], %s6094
          %s6096 = sand.u32 %s248, 1
          %s6097 = smul.addr %s6096, 256
          %s6098 = scalar_lea.vmem [#allocation4], %s6097
          %6099 = dma.done %s6095, 4096
        $region72: #{residual_block_forward.1} parent=67 // pred_fallthru
          _
      $region68: #{residual_block_forward.1} parent=5 // pred_fallthru
        _
    $region6: #{residual_block_forward.1} parent=1 // loop_footer
      %s23 = sadd.s32 1, %s19
    $region7: #{residual_block_forward.1} parent=1 // loop_footer_branch
      %18 = sbr.rel target = $region3
    $region8: #{residual_block_forward.1} parent=1 // loop_exit
      _
    %6100 = vsyncpa [#allocation5], 1
    %s6101 = scalar_lea.sflag [#allocation5], 1
    %6102 = vsyncpa %s6101, 1

</llo_original>
